<compile_context>
chip_gen: v7x
topology: tpu7x:2x2x1
jax: 0.10.0
libtpu: 0.0.40
codegen_flags: <defaults>
</compile_context>

<pallas_src>
import math

import numpy as np
import jax
import jax.numpy as jnp
from jax.experimental import pallas as pl
from jax.experimental.pallas import tpu as pltpu


# ----------------------------------------------------------------------------
# host-side glue: fused orthonormal real-DFT matrices (freq axis padded to f_pad)
# ----------------------------------------------------------------------------
def _dft_matrices(n, f_pad):
    """Return C_stack (2*f_pad, n) = [Cr; Ci] forward rDFT and
    D_cat (n, 2*f_pad) = [Dr | Di] inverse rDFT (norm='ortho')."""
    nf = n // 2 + 1
    f = np.arange(nf)[:, None].astype(np.float64)
    t = np.arange(n)[None, :].astype(np.float64)
    ang = 2.0 * np.pi * f * t / n                      # (nf, n)
    scale = 1.0 / np.sqrt(n)
    cr = np.cos(ang) * scale                           # rfft real part
    ci = -np.sin(ang) * scale                          # rfft imag part
    w = np.full((nf, 1), 2.0)                          # Hermitian fold weights
    w[0, 0] = 1.0
    if n % 2 == 0:
        w[-1, 0] = 1.0
    dr = (w * np.cos(ang)).T * scale                   # (n, nf)
    di = (-w * np.sin(ang)).T * scale                  # (n, nf)

    crp = np.pad(cr, ((0, f_pad - nf), (0, 0)))
    cip = np.pad(ci, ((0, f_pad - nf), (0, 0)))
    drp = np.pad(dr, ((0, 0), (0, f_pad - nf)))
    dip = np.pad(di, ((0, 0), (0, f_pad - nf)))

    c_stack = np.concatenate([crp, cip], axis=0).astype(np.float32)   # (2*f_pad, n)
    d_cat = np.concatenate([drp, dip], axis=1).astype(np.float32)     # (n, 2*f_pad)
    return c_stack, d_cat


# ----------------------------------------------------------------------------
# in-kernel helpers (pure jnp, trace into the Pallas kernel)
# ----------------------------------------------------------------------------
def _group_layernorm(x, p_bf16, w, b, eps=1e-12):
    """LayerNorm over each D-chunk of the packed (N, Bt*D) layout.

    p_bf16 is a bf16 (G, G) block-diagonal matrix of 1/D blocks, so x @ p is the
    per-chunk mean broadcast back over the chunk: one small bf16 MXU matmul with f32
    accumulation instead of a partial-lane cross-lane reduction (and not an f32xf32
    multi-pass MXU matmul).  All elementwise math stays f32."""
    u = jnp.dot(x.astype(jnp.bfloat16), p_bf16, preferred_element_type=jnp.float32)
    d = x - u
    s = jnp.dot((d * d).astype(jnp.bfloat16), p_bf16,
                preferred_element_type=jnp.float32)
    return d * jax.lax.rsqrt(s + eps) * w + b          # rsqrt -> EUP slot


def _gelu_tanh(x):
    # tanh-approx GELU: tanh runs on the EUP (its own bundle slot).
    c = math.sqrt(2.0 / math.pi)
    return 0.5 * x * (1.0 + jnp.tanh(c * (x + 0.044715 * x * x * x)))


# ----------------------------------------------------------------------------
# Pallas kernel: one batch group (Bt sequences packed as (N, Bt*D)) per grid step
# ----------------------------------------------------------------------------
def basic_layer_kernel(x_ref, cs_ref, dc_ref, k1_ref, k2_ref, p_ref,
                       ln1w_ref, ln1b_ref, w1_ref, b1_ref, w2_ref, b2_ref,
                       ln2w_ref, ln2b_ref, o_ref):
    f_pad = k1_ref.shape[0] // 2
    x = x_ref[0]                                                        # (N, G) f32

    # ---- FilterLayer: rfft -> complex filter -> irfft (fused real matmuls) ----
    # forward: one bf16 MXU matmul producing stacked [xr; xi]
    xf = jnp.dot(cs_ref[...], x.astype(jnp.bfloat16),
                 preferred_element_type=jnp.float32)                    # (2F, G)
    # complex filter in the stacked layout (no slice/concat copies):
    #   [yr; yi] = [xr; xi] * [kr; kr] + [xi; xr] * [-ki; ki]
    # pltpu.roll swaps the two F-row halves (XLU slot; F is a multiple of 8).
    ys = xf * k1_ref[...] + pltpu.roll(xf, shift=f_pad, axis=0) * k2_ref[...]
    # inverse + the "Dr@yr + Di@yi" add: one bf16 MXU matmul
    y = jnp.dot(dc_ref[...], ys.astype(jnp.bfloat16),
                preferred_element_type=jnp.float32)                     # (N, G)

    # Dropout(0.5) -> identity (eval mode)
    p = p_ref[...]                                                      # (G, G) bf16
    h = _group_layernorm(y + x, p, ln1w_ref[...], ln1b_ref[...])        # (N, G) f32

    # ---- FFN: Linear -> GELU -> Linear -> (+res) -> LayerNorm ----
    z = jnp.dot(h.astype(jnp.bfloat16), w1_ref[...],
                preferred_element_type=jnp.float32) + b1_ref[...]       # (N, Bt*H)
    g = _gelu_tanh(z)
    z2 = jnp.dot(g.astype(jnp.bfloat16), w2_ref[...],
                 preferred_element_type=jnp.float32) + b2_ref[...]      # (N, G)
    # Dropout(0.5) -> identity (eval mode)
    o_ref[0] = _group_layernorm(z2 + h, p, ln2w_ref[...], ln2b_ref[...])


# ----------------------------------------------------------------------------
# batch-group packing (done ONCE for a stack of layers, not per layer)
# ----------------------------------------------------------------------------
def _default_lane_target():
    """256-wide MXU RHS on v6e/v7x, 128 on v5e/v4 and anything unknown."""
    try:
        kind = jax.devices()[0].device_kind.lower()
    except Exception:
        return 128
    return 256 if ("v6" in kind or "v7" in kind) else 128


def _pick_batch_tile(batch, d_model, lane_target):
    """Smallest divisor Bt of `batch` so the packed lane dim Bt*D reaches
    `lane_target`, preferring choices that (a) keep >=2 batch groups so both v7x
    TensorCores get grid steps and (b) keep Bt <= 4 so the kron(I_Bt, W) block-diag
    FFN weights don't blow up (Bt^2 VMEM, Bt x MXU FLOPs).  Falls back to a 128-lane
    target, then to the best available (may leave G < 128 for tiny B*D)."""
    def smallest(target, need_two_groups, bt_cap):
        for bt in range(1, batch + 1):
            if bt > bt_cap:
                break
            if batch % bt:
                continue
            if bt * d_model < target:
                continue
            if need_two_groups and batch // bt < 2:
                continue
            return bt
        return None

    for target, cap in ((lane_target, 4), (128, 4), (128, batch)):
        bt = smallest(target, True, cap)
        if bt is not None:
            return bt
    return smallest(128, False, batch) or batch


def pack_batch(x, bt):
    """(B, N, D) -> (B//bt, N, bt*D): lane-dense layout for the kernel."""
    b, n, d = x.shape
    gb = b // bt
    return x.reshape(gb, bt, n, d).transpose(0, 2, 1, 3).reshape(gb, n, bt * d)


def unpack_batch(xg, bt, d):
    """(B//bt, N, bt*D) -> (B, N, D)."""
    gb, n, _ = xg.shape
    return xg.reshape(gb, n, bt, d).transpose(0, 2, 1, 3).reshape(gb * bt, n, d)


# ----------------------------------------------------------------------------
# host-side operand prep (done ONCE per layer, reusable across calls)
# ----------------------------------------------------------------------------
def prepare_packed_params(params, max_len, bt):
    n = max_len
    d, h = params["w1"].shape
    nf = n // 2 + 1
    # Sublane-aligned padding only (multiple of 8, so 2F is a multiple of 16 for bf16
    # packing).  Constants are full-array blocks -> no (8,128) BlockSpec constraint,
    # and the MXU pads the short contraction dim internally.
    f_pad = ((nf + 7) // 8) * 8

    c_stack_np, d_cat_np = _dft_matrices(n, f_pad)
    cs = jnp.asarray(c_stack_np, jnp.bfloat16)             # (2F, N)
    dc = jnp.asarray(d_cat_np, jnp.bfloat16)               # (N, 2F)

    # learned complex filter, padded to f_pad, tiled across the Bt chunks, and laid
    # out for the stacked formulation [yr;yi] = [xr;xi]*k1 + [xi;xr]*k2
    padF = ((0, f_pad - nf), (0, 0))
    kr_t = jnp.tile(jnp.pad(params["kr"], padF), (1, bt))   # (F, G) f32
    ki_t = jnp.tile(jnp.pad(params["ki"], padF), (1, bt))
    k1 = jnp.concatenate([kr_t, kr_t], axis=0)              # (2F, G)
    k2 = jnp.concatenate([-ki_t, ki_t], axis=0)             # (2F, G)

    # block-diagonal FFN weights (shared across the Bt packed sequences)
    eye = jnp.eye(bt, dtype=jnp.float32)
    w1_bd = jnp.kron(eye, params["w1"]).astype(jnp.bfloat16)    # (G, Bt*H)
    w2_bd = jnp.kron(eye, params["w2"]).astype(jnp.bfloat16)    # (Bt*H, G)
    b1_t = jnp.tile(params["b1"].reshape(1, h), (1, bt))        # (1, Bt*H) f32
    b2_t = jnp.tile(params["b2"].reshape(1, d), (1, bt))        # (1, G)    f32

    # per-chunk block-mean matrix (bf16 operand, exact for power-of-two D) and tiled
    # LayerNorm affine params (f32)
    p_blk = jnp.kron(eye, jnp.full((d, d), 1.0 / d, jnp.float32)).astype(jnp.bfloat16)
    ln1w_t = jnp.tile(params["ln1w"].reshape(1, d), (1, bt))
    ln1b_t = jnp.tile(params["ln1b"].reshape(1, d), (1, bt))
    ln2w_t = jnp.tile(params["ln2w"].reshape(1, d), (1, bt))
    ln2b_t = jnp.tile(params["ln2b"].reshape(1, d), (1, bt))

    return dict(cs=cs, dc=dc, k1=k1, k2=k2, p=p_blk,
                ln1w=ln1w_t, ln1b=ln1b_t, w1=w1_bd, b1=b1_t,
                w2=w2_bd, b2=b2_t, ln2w=ln2w_t, ln2b=ln2b_t, bt=bt)


# ----------------------------------------------------------------------------
# packed-layout layer (call this per layer when stacking; pack/unpack once outside)
# ----------------------------------------------------------------------------
def basic_layer_packed(xg, pk):
    gb, n, g = xg.shape
    consts = (pk["cs"], pk["dc"], pk["k1"], pk["k2"], pk["p"],
              pk["ln1w"], pk["ln1b"], pk["w1"], pk["b1"],
              pk["w2"], pk["b2"], pk["ln2w"], pk["ln2b"])

    def build(single_buffer_consts):
        def fixed(arr):
            # constant operand: whole (2-D) array as one block every grid step; its
            # block index never changes so a single buffer is enough.
            kw = {"pipeline_mode": pl.Buffered(1)} if single_buffer_consts else {}
            return pl.BlockSpec(arr.shape, lambda b: (0, 0), **kw)

        in_specs = [pl.BlockSpec((1, n, g), lambda b: (b, 0, 0))] + \
                   [fixed(a) for a in consts]
        return pl.pallas_call(
            basic_layer_kernel,
            out_shape=jax.ShapeDtypeStruct((gb, n, g), jnp.float32),
            grid=(gb,),
            in_specs=in_specs,
            out_specs=pl.BlockSpec((1, n, g), lambda b: (b, 0, 0)),
            # no vmem_limit override: usage here is ~2 MiB; pinning it at physical
            # capacity (64 MiB on v7x) would leave no compiler-scratch headroom.
            compiler_params=pltpu.CompilerParams(
                dimension_semantics=("parallel",)),
        )

    try:
        return build(True)(xg, *consts)
    except Exception:
        # Fallback for jax versions that reject single-buffered (Buffered(1)) specs;
        # identical kernel, default double-buffered constants.
        return build(False)(xg, *consts)


# ----------------------------------------------------------------------------
# single-layer convenience wrapper (pack -> kernel -> unpack).
# A stack of BasicLayers should call pack_batch / prepare_packed_params once and
# chain basic_layer_packed() in the packed layout to avoid per-layer HBM repacks.
# ----------------------------------------------------------------------------
def basic_layer(x, params):
    b, n, d = x.shape
    bt = _pick_batch_tile(b, d, _default_lane_target())
    pk = prepare_packed_params(params, max_len=n, bt=bt)
    xg = pack_batch(x, bt)
    og = basic_layer_packed(xg, pk)
    return unpack_batch(og, bt, d)


# ----------------------------------------------------------------------------
# deterministic parameter init (shapes follow the PyTorch __init__)
# ----------------------------------------------------------------------------
def init_params(key, d_model, max_len):
    nf = max_len // 2 + 1
    hidden = 4 * d_model
    ks = jax.random.split(key, 5)
    filt = 0.02 * jax.random.normal(ks[0], (nf, d_model, 2), jnp.float32)
    return dict(
        kr=filt[..., 0], ki=filt[..., 1],                       # (nf, D)
        ln1w=jnp.ones((d_model,), jnp.float32),
        ln1b=jnp.zeros((d_model,), jnp.float32),
        w1=0.02 * jax.random.normal(ks[1], (d_model, hidden), jnp.float32),
        b1=0.02 * jax.random.normal(ks[2], (hidden,), jnp.float32),
        w2=0.02 * jax.random.normal(ks[3], (hidden, d_model), jnp.float32),
        b2=0.02 * jax.random.normal(ks[4], (d_model,), jnp.float32),
        ln2w=jnp.ones((d_model,), jnp.float32),
        ln2b=jnp.zeros((d_model,), jnp.float32),
    )


# ----------------------------------------------------------------------------
# pure-JAX reference (real FFTs + exact erf, all f32) for validation
# ----------------------------------------------------------------------------
def reference(x, params):
    n = x.shape[1]

    def ln(v, w, b, eps=1e-12):
        u = jnp.mean(v, -1, keepdims=True)
        s = jnp.mean((v - u) ** 2, -1, keepdims=True)
        return w * ((v - u) / jnp.sqrt(s + eps)) + b

    kern = (params["kr"] + 1j * params["ki"])[None]             # (1, nf, D)
    y = jnp.fft.rfft(x, axis=1, norm="ortho") * kern
    y = jnp.fft.irfft(y, n=n, axis=1, norm="ortho")
    h = ln(y + x, params["ln1w"], params["ln1b"])
    z = h @ params["w1"] + params["b1"]
    z = z * 0.5 * (1.0 + jax.scipy.special.erf(z / math.sqrt(2.0)))
    z = z @ params["w2"] + params["b2"]
    return ln(z + h, params["ln2w"], params["ln2b"])


if __name__ == "__main__":
    B, N, D = 8, 8, 32          # batch, max_len (seq), d_model  -> Bt=4, grid=(2,)
    key = jax.random.PRNGKey(0)
    kx, kp = jax.random.split(key)
    x = jax.random.normal(kx, (B, N, D), jnp.float32)
    params = init_params(kp, d_model=D, max_len=N)

    out = jax.block_until_ready(basic_layer(x, params))
    ref = reference(x, params)
    assert out.shape == (B, N, D)
    # tolerance reflects bf16 MXU operands (f32 accumulation) + tanh-GELU; the f32
    # reference uses exact FFTs and exact erf.
    np.testing.assert_allclose(np.asarray(out), np.asarray(ref), rtol=1e-2, atol=1e-2)
    print("KERNEL_OK")
</pallas_src>

<mosaic_0001>
module attributes {stable_mosaic.version = 11 : i64} {
  func.func @basic_layer_kernel(%arg0: i32, %arg1: memref<1x8x128xf32, #tpu.memory_space<vmem>>, %arg2: memref<16x8xbf16, #tpu.memory_space<vmem>>, %arg3: memref<8x16xbf16, #tpu.memory_space<vmem>>, %arg4: memref<16x128xf32, #tpu.memory_space<vmem>>, %arg5: memref<16x128xf32, #tpu.memory_space<vmem>>, %arg6: memref<128x128xbf16, #tpu.memory_space<vmem>>, %arg7: memref<1x128xf32, #tpu.memory_space<vmem>>, %arg8: memref<1x128xf32, #tpu.memory_space<vmem>>, %arg9: memref<128x512xbf16, #tpu.memory_space<vmem>>, %arg10: memref<1x512xf32, #tpu.memory_space<vmem>>, %arg11: memref<512x128xbf16, #tpu.memory_space<vmem>>, %arg12: memref<1x128xf32, #tpu.memory_space<vmem>>, %arg13: memref<1x128xf32, #tpu.memory_space<vmem>>, %arg14: memref<1x128xf32, #tpu.memory_space<vmem>>, %arg15: memref<1x8x128xf32, #tpu.memory_space<vmem>>) attributes {dimension_semantics = [#tpu.dimension_semantics<parallel>], iteration_bounds = array<i64: 2>, scalar_prefetch = 0 : i64, scratch_operands = 0 : i64, tpu.core_type = #tpu.core_type<tc>, window_params = [{transform_indices = @transform_0, window_bounds = array<i64: 1, 8, 128>}, {pipeline_mode = #tpu.pipeline_mode<synchronous>, transform_indices = @transform_1, window_bounds = array<i64: 16, 8>}, {pipeline_mode = #tpu.pipeline_mode<synchronous>, transform_indices = @transform_2, window_bounds = array<i64: 8, 16>}, {pipeline_mode = #tpu.pipeline_mode<synchronous>, transform_indices = @transform_3, window_bounds = array<i64: 16, 128>}, {pipeline_mode = #tpu.pipeline_mode<synchronous>, transform_indices = @transform_4, window_bounds = array<i64: 16, 128>}, {pipeline_mode = #tpu.pipeline_mode<synchronous>, transform_indices = @transform_5, window_bounds = array<i64: 128, 128>}, {pipeline_mode = #tpu.pipeline_mode<synchronous>, transform_indices = @transform_6, window_bounds = array<i64: 1, 128>}, {pipeline_mode = #tpu.pipeline_mode<synchronous>, transform_indices = @transform_7, window_bounds = array<i64: 1, 128>}, {pipeline_mode = #tpu.pipeline_mode<synchronous>, transform_indices = @transform_8, window_bounds = array<i64: 128, 512>}, {pipeline_mode = #tpu.pipeline_mode<synchronous>, transform_indices = @transform_9, window_bounds = array<i64: 1, 512>}, {pipeline_mode = #tpu.pipeline_mode<synchronous>, transform_indices = @transform_10, window_bounds = array<i64: 512, 128>}, {pipeline_mode = #tpu.pipeline_mode<synchronous>, transform_indices = @transform_11, window_bounds = array<i64: 1, 128>}, {pipeline_mode = #tpu.pipeline_mode<synchronous>, transform_indices = @transform_12, window_bounds = array<i64: 1, 128>}, {pipeline_mode = #tpu.pipeline_mode<synchronous>, transform_indices = @transform_13, window_bounds = array<i64: 1, 128>}, {transform_indices = @transform_14, window_bounds = array<i64: 1, 8, 128>}]} {
    %c0 = arith.constant 0 : index
    %c0_0 = arith.constant 0 : index
    %c0_1 = arith.constant 0 : index
    %0 = vector.load %arg1[%c0, %c0_0, %c0_1] : memref<1x8x128xf32, #tpu.memory_space<vmem>>, vector<1x8x128xf32>
    %1 = vector.shape_cast %0 : vector<1x8x128xf32> to vector<8x128xf32>
    %c0_2 = arith.constant 0 : index
    %c0_3 = arith.constant 0 : index
    %2 = vector.load %arg2[%c0_2, %c0_3] : memref<16x8xbf16, #tpu.memory_space<vmem>>, vector<16x8xbf16>
    %3 = arith.truncf %1 : vector<8x128xf32> to vector<8x128xbf16>
    %cst = arith.constant dense<0.000000e+00> : vector<16x128xf32>
    %4 = tpu.matmul %2, %3, %cst {dimension_numbers = #tpu.dot_dimension_numbers<[1], [0], [0], [1], [0, 0, 1, 1], [], []>} : vector<16x8xbf16>, vector<8x128xbf16>, vector<16x128xf32> -> vector<16x128xf32>
    %c0_4 = arith.constant 0 : index
    %c0_5 = arith.constant 0 : index
    %5 = vector.load %arg4[%c0_4, %c0_5] : memref<16x128xf32, #tpu.memory_space<vmem>>, vector<16x128xf32>
    %6 = arith.mulf %4, %5 : vector<16x128xf32>
    %c8_i32 = arith.constant 8 : i32
    %7 = tpu.dynamic_rotate %4 by %c8_i32 dim 0 : vector<16x128xf32>, i32 -> vector<16x128xf32>
    %c0_6 = arith.constant 0 : index
    %c0_7 = arith.constant 0 : index
    %8 = vector.load %arg5[%c0_6, %c0_7] : memref<16x128xf32, #tpu.memory_space<vmem>>, vector<16x128xf32>
    %9 = arith.mulf %7, %8 : vector<16x128xf32>
    %10 = arith.addf %6, %9 : vector<16x128xf32>
    %c0_8 = arith.constant 0 : index
    %c0_9 = arith.constant 0 : index
    %11 = vector.load %arg3[%c0_8, %c0_9] : memref<8x16xbf16, #tpu.memory_space<vmem>>, vector<8x16xbf16>
    %12 = arith.truncf %10 : vector<16x128xf32> to vector<16x128xbf16>
    %cst_10 = arith.constant dense<0.000000e+00> : vector<8x128xf32>
    %13 = tpu.matmul %11, %12, %cst_10 {dimension_numbers = #tpu.dot_dimension_numbers<[1], [0], [0], [1], [0, 0, 1, 1], [], []>} : vector<8x16xbf16>, vector<16x128xbf16>, vector<8x128xf32> -> vector<8x128xf32>
    %c0_11 = arith.constant 0 : index
    %c0_12 = arith.constant 0 : index
    %14 = vector.load %arg6[%c0_11, %c0_12] : memref<128x128xbf16, #tpu.memory_space<vmem>>, vector<128x128xbf16>
    %15 = arith.addf %13, %1 : vector<8x128xf32>
    %c0_13 = arith.constant 0 : index
    %c0_14 = arith.constant 0 : index
    %16 = vector.load %arg7[%c0_13, %c0_14] : memref<1x128xf32, #tpu.memory_space<vmem>>, vector<1x128xf32>
    %c0_15 = arith.constant 0 : index
    %c0_16 = arith.constant 0 : index
    %17 = vector.load %arg8[%c0_15, %c0_16] : memref<1x128xf32, #tpu.memory_space<vmem>>, vector<1x128xf32>
    %18 = arith.truncf %15 : vector<8x128xf32> to vector<8x128xbf16>
    %cst_17 = arith.constant dense<0.000000e+00> : vector<8x128xf32>
    %19 = tpu.matmul %18, %14, %cst_17 {dimension_numbers = #tpu.dot_dimension_numbers<[1], [0], [0], [1], [0, 0, 1, 1], [], []>} : vector<8x128xbf16>, vector<128x128xbf16>, vector<8x128xf32> -> vector<8x128xf32>
    %20 = arith.subf %15, %19 : vector<8x128xf32>
    %21 = arith.mulf %20, %20 : vector<8x128xf32>
    %22 = arith.truncf %21 : vector<8x128xf32> to vector<8x128xbf16>
    %cst_18 = arith.constant dense<0.000000e+00> : vector<8x128xf32>
    %23 = tpu.matmul %22, %14, %cst_18 {dimension_numbers = #tpu.dot_dimension_numbers<[1], [0], [0], [1], [0, 0, 1, 1], [], []>} : vector<8x128xbf16>, vector<128x128xbf16>, vector<8x128xf32> -> vector<8x128xf32>
    %cst_19 = arith.constant 9.99999996E-13 : f32
    %24 = vector.broadcast %cst_19 : f32 to vector<8x128xf32>
    %25 = arith.addf %23, %24 : vector<8x128xf32>
    %26 = math.rsqrt %25 : vector<8x128xf32>
    %27 = arith.mulf %20, %26 : vector<8x128xf32>
    %28 = vector.broadcast %16 : vector<1x128xf32> to vector<8x128xf32>
    %29 = arith.mulf %27, %28 : vector<8x128xf32>
    %30 = vector.broadcast %17 : vector<1x128xf32> to vector<8x128xf32>
    %31 = arith.addf %29, %30 : vector<8x128xf32>
    %32 = arith.truncf %31 : vector<8x128xf32> to vector<8x128xbf16>
    %c0_20 = arith.constant 0 : index
    %c0_21 = arith.constant 0 : index
    %33 = vector.load %arg9[%c0_20, %c0_21] : memref<128x512xbf16, #tpu.memory_space<vmem>>, vector<128x512xbf16>
    %cst_22 = arith.constant dense<0.000000e+00> : vector<8x512xf32>
    %34 = tpu.matmul %32, %33, %cst_22 {dimension_numbers = #tpu.dot_dimension_numbers<[1], [0], [0], [1], [0, 0, 1, 1], [], []>} : vector<8x128xbf16>, vector<128x512xbf16>, vector<8x512xf32> -> vector<8x512xf32>
    %c0_23 = arith.constant 0 : index
    %c0_24 = arith.constant 0 : index
    %35 = vector.load %arg10[%c0_23, %c0_24] : memref<1x512xf32, #tpu.memory_space<vmem>>, vector<1x512xf32>
    %36 = vector.broadcast %35 : vector<1x512xf32> to vector<8x512xf32>
    %37 = arith.addf %34, %36 : vector<8x512xf32>
    %cst_25 = arith.constant 5.000000e-01 : f32
    %38 = vector.broadcast %cst_25 : f32 to vector<8x512xf32>
    %39 = arith.mulf %38, %37 : vector<8x512xf32>
    %cst_26 = arith.constant 4.471500e-02 : f32
    %40 = vector.broadcast %cst_26 : f32 to vector<8x512xf32>
    %41 = arith.mulf %40, %37 : vector<8x512xf32>
    %42 = arith.mulf %41, %37 : vector<8x512xf32>
    %43 = arith.mulf %42, %37 : vector<8x512xf32>
    %44 = arith.addf %37, %43 : vector<8x512xf32>
    %cst_27 = arith.constant 0.797884583 : f32
    %45 = vector.broadcast %cst_27 : f32 to vector<8x512xf32>
    %46 = arith.mulf %45, %44 : vector<8x512xf32>
    %47 = math.tanh %46 : vector<8x512xf32>
    %cst_28 = arith.constant 1.000000e+00 : f32
    %48 = vector.broadcast %cst_28 : f32 to vector<8x512xf32>
    %49 = arith.addf %48, %47 : vector<8x512xf32>
    %50 = arith.mulf %39, %49 : vector<8x512xf32>
    %51 = arith.truncf %50 : vector<8x512xf32> to vector<8x512xbf16>
    %c0_29 = arith.constant 0 : index
    %c0_30 = arith.constant 0 : index
    %52 = vector.load %arg11[%c0_29, %c0_30] : memref<512x128xbf16, #tpu.memory_space<vmem>>, vector<512x128xbf16>
    %cst_31 = arith.constant dense<0.000000e+00> : vector<8x128xf32>
    %53 = tpu.matmul %51, %52, %cst_31 {dimension_numbers = #tpu.dot_dimension_numbers<[1], [0], [0], [1], [0, 0, 1, 1], [], []>} : vector<8x512xbf16>, vector<512x128xbf16>, vector<8x128xf32> -> vector<8x128xf32>
    %c0_32 = arith.constant 0 : index
    %c0_33 = arith.constant 0 : index
    %54 = vector.load %arg12[%c0_32, %c0_33] : memref<1x128xf32, #tpu.memory_space<vmem>>, vector<1x128xf32>
    %55 = vector.broadcast %54 : vector<1x128xf32> to vector<8x128xf32>
    %56 = arith.addf %53, %55 : vector<8x128xf32>
    %57 = arith.addf %56, %31 : vector<8x128xf32>
    %c0_34 = arith.constant 0 : index
    %c0_35 = arith.constant 0 : index
    %58 = vector.load %arg13[%c0_34, %c0_35] : memref<1x128xf32, #tpu.memory_space<vmem>>, vector<1x128xf32>
    %c0_36 = arith.constant 0 : index
    %c0_37 = arith.constant 0 : index
    %59 = vector.load %arg14[%c0_36, %c0_37] : memref<1x128xf32, #tpu.memory_space<vmem>>, vector<1x128xf32>
    %60 = arith.truncf %57 : vector<8x128xf32> to vector<8x128xbf16>
    %cst_38 = arith.constant dense<0.000000e+00> : vector<8x128xf32>
    %61 = tpu.matmul %60, %14, %cst_38 {dimension_numbers = #tpu.dot_dimension_numbers<[1], [0], [0], [1], [0, 0, 1, 1], [], []>} : vector<8x128xbf16>, vector<128x128xbf16>, vector<8x128xf32> -> vector<8x128xf32>
    %62 = arith.subf %57, %61 : vector<8x128xf32>
    %63 = arith.mulf %62, %62 : vector<8x128xf32>
    %64 = arith.truncf %63 : vector<8x128xf32> to vector<8x128xbf16>
    %cst_39 = arith.constant dense<0.000000e+00> : vector<8x128xf32>
    %65 = tpu.matmul %64, %14, %cst_39 {dimension_numbers = #tpu.dot_dimension_numbers<[1], [0], [0], [1], [0, 0, 1, 1], [], []>} : vector<8x128xbf16>, vector<128x128xbf16>, vector<8x128xf32> -> vector<8x128xf32>
    %cst_40 = arith.constant 9.99999996E-13 : f32
    %66 = vector.broadcast %cst_40 : f32 to vector<8x128xf32>
    %67 = arith.addf %65, %66 : vector<8x128xf32>
    %68 = math.rsqrt %67 : vector<8x128xf32>
    %69 = arith.mulf %62, %68 : vector<8x128xf32>
    %70 = vector.broadcast %58 : vector<1x128xf32> to vector<8x128xf32>
    %71 = arith.mulf %69, %70 : vector<8x128xf32>
    %72 = vector.broadcast %59 : vector<1x128xf32> to vector<8x128xf32>
    %73 = arith.addf %71, %72 : vector<8x128xf32>
    %c0_41 = arith.constant 0 : index
    %c0_42 = arith.constant 0 : index
    %c0_43 = arith.constant 0 : index
    %74 = vector.load %arg15[%c0_41, %c0_42, %c0_43] : memref<1x8x128xf32, #tpu.memory_space<vmem>>, vector<1x8x128xf32>
    %75 = vector.shape_cast %74 : vector<1x8x128xf32> to vector<8x128xf32>
    %76 = vector.shape_cast %73 : vector<8x128xf32> to vector<1x8x128xf32>
    tpu.vector_store %arg15[%c0_41, %c0_42, %c0_43], %76 {strides = array<i32>} : memref<1x8x128xf32, #tpu.memory_space<vmem>>, vector<1x8x128xf32>,
    return
  }
  func.func @transform_0(%arg0: i32) -> (i32, i32, i32) {
    %c0_i32 = arith.constant 0 : i32
    %c0_i32_0 = arith.constant 0 : i32
    %c0_i32_1 = arith.constant 0 : i32
    return %arg0, %c0_i32, %c0_i32_0 : i32, i32, i32
  }
  func.func @transform_1(%arg0: i32) -> (i32, i32) {
    %c0_i32 = arith.constant 0 : i32
    %c0_i32_0 = arith.constant 0 : i32
    %c0_i32_1 = arith.constant 0 : i32
    return %c0_i32, %c0_i32_0 : i32, i32
  }
  func.func @transform_2(%arg0: i32) -> (i32, i32) {
    %c0_i32 = arith.constant 0 : i32
    %c0_i32_0 = arith.constant 0 : i32
    %c0_i32_1 = arith.constant 0 : i32
    return %c0_i32, %c0_i32_0 : i32, i32
  }
  func.func @transform_3(%arg0: i32) -> (i32, i32) {
    %c0_i32 = arith.constant 0 : i32
    %c0_i32_0 = arith.constant 0 : i32
    %c0_i32_1 = arith.constant 0 : i32
    return %c0_i32, %c0_i32_0 : i32, i32
  }
  func.func @transform_4(%arg0: i32) -> (i32, i32) {
    %c0_i32 = arith.constant 0 : i32
    %c0_i32_0 = arith.constant 0 : i32
    %c0_i32_1 = arith.constant 0 : i32
    return %c0_i32, %c0_i32_0 : i32, i32
  }
  func.func @transform_5(%arg0: i32) -> (i32, i32) {
    %c0_i32 = arith.constant 0 : i32
    %c0_i32_0 = arith.constant 0 : i32
    %c0_i32_1 = arith.constant 0 : i32
    return %c0_i32, %c0_i32_0 : i32, i32
  }
  func.func @transform_6(%arg0: i32) -> (i32, i32) {
    %c0_i32 = arith.constant 0 : i32
    %c0_i32_0 = arith.constant 0 : i32
    %c0_i32_1 = arith.constant 0 : i32
    return %c0_i32, %c0_i32_0 : i32, i32
  }
  func.func @transform_7(%arg0: i32) -> (i32, i32) {
    %c0_i32 = arith.constant 0 : i32
    %c0_i32_0 = arith.constant 0 : i32
    %c0_i32_1 = arith.constant 0 : i32
    return %c0_i32, %c0_i32_0 : i32, i32
  }
  func.func @transform_8(%arg0: i32) -> (i32, i32) {
    %c0_i32 = arith.constant 0 : i32
    %c0_i32_0 = arith.constant 0 : i32
    %c0_i32_1 = arith.constant 0 : i32
    return %c0_i32, %c0_i32_0 : i32, i32
  }
  func.func @transform_9(%arg0: i32) -> (i32, i32) {
    %c0_i32 = arith.constant 0 : i32
    %c0_i32_0 = arith.constant 0 : i32
    %c0_i32_1 = arith.constant 0 : i32
    return %c0_i32, %c0_i32_0 : i32, i32
  }
  func.func @transform_10(%arg0: i32) -> (i32, i32) {
    %c0_i32 = arith.constant 0 : i32
    %c0_i32_0 = arith.constant 0 : i32
    %c0_i32_1 = arith.constant 0 : i32
    return %c0_i32, %c0_i32_0 : i32, i32
  }
  func.func @transform_11(%arg0: i32) -> (i32, i32) {
    %c0_i32 = arith.constant 0 : i32
    %c0_i32_0 = arith.constant 0 : i32
    %c0_i32_1 = arith.constant 0 : i32
    return %c0_i32, %c0_i32_0 : i32, i32
  }
  func.func @transform_12(%arg0: i32) -> (i32, i32) {
    %c0_i32 = arith.constant 0 : i32
    %c0_i32_0 = arith.constant 0 : i32
    %c0_i32_1 = arith.constant 0 : i32
    return %c0_i32, %c0_i32_0 : i32, i32
  }
  func.func @transform_13(%arg0: i32) -> (i32, i32) {
    %c0_i32 = arith.constant 0 : i32
    %c0_i32_0 = arith.constant 0 : i32
    %c0_i32_1 = arith.constant 0 : i32
    return %c0_i32, %c0_i32_0 : i32, i32
  }
  func.func @transform_14(%arg0: i32) -> (i32, i32, i32) {
    %c0_i32 = arith.constant 0 : i32
    %c0_i32_0 = arith.constant 0 : i32
    %c0_i32_1 = arith.constant 0 : i32
    return %arg0, %c0_i32, %c0_i32_0 : i32, i32, i32
  }
}

module attributes {stable_mosaic.version = 11 : i64} {
  func.func @basic_layer_kernel(%arg0: i32, %arg1: memref<1x8x128xf32, #tpu.memory_space<vmem>>, %arg2: memref<16x8xbf16, #tpu.memory_space<vmem>>, %arg3: memref<8x16xbf16, #tpu.memory_space<vmem>>, %arg4: memref<16x128xf32, #tpu.memory_space<vmem>>, %arg5: memref<16x128xf32, #tpu.memory_space<vmem>>, %arg6: memref<128x128xbf16, #tpu.memory_space<vmem>>, %arg7: memref<1x128xf32, #tpu.memory_space<vmem>>, %arg8: memref<1x128xf32, #tpu.memory_space<vmem>>, %arg9: memref<128x512xbf16, #tpu.memory_space<vmem>>, %arg10: memref<1x512xf32, #tpu.memory_space<vmem>>, %arg11: memref<512x128xbf16, #tpu.memory_space<vmem>>, %arg12: memref<1x128xf32, #tpu.memory_space<vmem>>, %arg13: memref<1x128xf32, #tpu.memory_space<vmem>>, %arg14: memref<1x128xf32, #tpu.memory_space<vmem>>, %arg15: memref<1x8x128xf32, #tpu.memory_space<vmem>>) attributes {dimension_semantics = [#tpu.dimension_semantics<parallel>], iteration_bounds = array<i64: 2>, scalar_prefetch = 0 : i64, scratch_operands = 0 : i64, tpu.core_type = #tpu.core_type<tc>, window_params = [{transform_indices = @transform_0, window_bounds = array<i64: 1, 8, 128>}, {pipeline_mode = #tpu.pipeline_mode<synchronous>, transform_indices = @transform_1, window_bounds = array<i64: 16, 8>}, {pipeline_mode = #tpu.pipeline_mode<synchronous>, transform_indices = @transform_2, window_bounds = array<i64: 8, 16>}, {pipeline_mode = #tpu.pipeline_mode<synchronous>, transform_indices = @transform_3, window_bounds = array<i64: 16, 128>}, {pipeline_mode = #tpu.pipeline_mode<synchronous>, transform_indices = @transform_4, window_bounds = array<i64: 16, 128>}, {pipeline_mode = #tpu.pipeline_mode<synchronous>, transform_indices = @transform_5, window_bounds = array<i64: 128, 128>}, {pipeline_mode = #tpu.pipeline_mode<synchronous>, transform_indices = @transform_6, window_bounds = array<i64: 1, 128>}, {pipeline_mode = #tpu.pipeline_mode<synchronous>, transform_indices = @transform_7, window_bounds = array<i64: 1, 128>}, {pipeline_mode = #tpu.pipeline_mode<synchronous>, transform_indices = @transform_8, window_bounds = array<i64: 128, 512>}, {pipeline_mode = #tpu.pipeline_mode<synchronous>, transform_indices = @transform_9, window_bounds = array<i64: 1, 512>}, {pipeline_mode = #tpu.pipeline_mode<synchronous>, transform_indices = @transform_10, window_bounds = array<i64: 512, 128>}, {pipeline_mode = #tpu.pipeline_mode<synchronous>, transform_indices = @transform_11, window_bounds = array<i64: 1, 128>}, {pipeline_mode = #tpu.pipeline_mode<synchronous>, transform_indices = @transform_12, window_bounds = array<i64: 1, 128>}, {pipeline_mode = #tpu.pipeline_mode<synchronous>, transform_indices = @transform_13, window_bounds = array<i64: 1, 128>}, {transform_indices = @transform_14, window_bounds = array<i64: 1, 8, 128>}]} {
    %c0 = arith.constant 0 : index
    %c0_0 = arith.constant 0 : index
    %c0_1 = arith.constant 0 : index
    %0 = vector.load %arg1[%c0, %c0_0, %c0_1] : memref<1x8x128xf32, #tpu.memory_space<vmem>>, vector<1x8x128xf32>
    %1 = vector.shape_cast %0 : vector<1x8x128xf32> to vector<8x128xf32>
    %c0_2 = arith.constant 0 : index
    %c0_3 = arith.constant 0 : index
    %2 = vector.load %arg2[%c0_2, %c0_3] : memref<16x8xbf16, #tpu.memory_space<vmem>>, vector<16x8xbf16>
    %3 = arith.truncf %1 : vector<8x128xf32> to vector<8x128xbf16>
    %cst = arith.constant dense<0.000000e+00> : vector<16x128xf32>
    %4 = tpu.matmul %2, %3, %cst {dimension_numbers = #tpu.dot_dimension_numbers<[1], [0], [0], [1], [0, 0, 1, 1], [], []>} : vector<16x8xbf16>, vector<8x128xbf16>, vector<16x128xf32> -> vector<16x128xf32>
    %c0_4 = arith.constant 0 : index
    %c0_5 = arith.constant 0 : index
    %5 = vector.load %arg4[%c0_4, %c0_5] : memref<16x128xf32, #tpu.memory_space<vmem>>, vector<16x128xf32>
    %6 = arith.mulf %4, %5 : vector<16x128xf32>
    %c8_i32 = arith.constant 8 : i32
    %7 = tpu.dynamic_rotate %4 by %c8_i32 dim 0 : vector<16x128xf32>, i32 -> vector<16x128xf32>
    %c0_6 = arith.constant 0 : index
    %c0_7 = arith.constant 0 : index
    %8 = vector.load %arg5[%c0_6, %c0_7] : memref<16x128xf32, #tpu.memory_space<vmem>>, vector<16x128xf32>
    %9 = arith.mulf %7, %8 : vector<16x128xf32>
    %10 = arith.addf %6, %9 : vector<16x128xf32>
    %c0_8 = arith.constant 0 : index
    %c0_9 = arith.constant 0 : index
    %11 = vector.load %arg3[%c0_8, %c0_9] : memref<8x16xbf16, #tpu.memory_space<vmem>>, vector<8x16xbf16>
    %12 = arith.truncf %10 : vector<16x128xf32> to vector<16x128xbf16>
    %cst_10 = arith.constant dense<0.000000e+00> : vector<8x128xf32>
    %13 = tpu.matmul %11, %12, %cst_10 {dimension_numbers = #tpu.dot_dimension_numbers<[1], [0], [0], [1], [0, 0, 1, 1], [], []>} : vector<8x16xbf16>, vector<16x128xbf16>, vector<8x128xf32> -> vector<8x128xf32>
    %c0_11 = arith.constant 0 : index
    %c0_12 = arith.constant 0 : index
    %14 = vector.load %arg6[%c0_11, %c0_12] : memref<128x128xbf16, #tpu.memory_space<vmem>>, vector<128x128xbf16>
    %15 = arith.addf %13, %1 : vector<8x128xf32>
    %c0_13 = arith.constant 0 : index
    %c0_14 = arith.constant 0 : index
    %16 = vector.load %arg7[%c0_13, %c0_14] : memref<1x128xf32, #tpu.memory_space<vmem>>, vector<1x128xf32>
    %c0_15 = arith.constant 0 : index
    %c0_16 = arith.constant 0 : index
    %17 = vector.load %arg8[%c0_15, %c0_16] : memref<1x128xf32, #tpu.memory_space<vmem>>, vector<1x128xf32>
    %18 = arith.truncf %15 : vector<8x128xf32> to vector<8x128xbf16>
    %cst_17 = arith.constant dense<0.000000e+00> : vector<8x128xf32>
    %19 = tpu.matmul %18, %14, %cst_17 {dimension_numbers = #tpu.dot_dimension_numbers<[1], [0], [0], [1], [0, 0, 1, 1], [], []>} : vector<8x128xbf16>, vector<128x128xbf16>, vector<8x128xf32> -> vector<8x128xf32>
    %20 = arith.subf %15, %19 : vector<8x128xf32>
    %21 = arith.mulf %20, %20 : vector<8x128xf32>
    %22 = arith.truncf %21 : vector<8x128xf32> to vector<8x128xbf16>
    %cst_18 = arith.constant dense<0.000000e+00> : vector<8x128xf32>
    %23 = tpu.matmul %22, %14, %cst_18 {dimension_numbers = #tpu.dot_dimension_numbers<[1], [0], [0], [1], [0, 0, 1, 1], [], []>} : vector<8x128xbf16>, vector<128x128xbf16>, vector<8x128xf32> -> vector<8x128xf32>
    %cst_19 = arith.constant 9.99999996E-13 : f32
    %24 = vector.broadcast %cst_19 : f32 to vector<8x128xf32>
    %25 = arith.addf %23, %24 : vector<8x128xf32>
    %26 = math.rsqrt %25 : vector<8x128xf32>
    %27 = arith.mulf %20, %26 : vector<8x128xf32>
    %28 = vector.broadcast %16 : vector<1x128xf32> to vector<8x128xf32>
    %29 = arith.mulf %27, %28 : vector<8x128xf32>
    %30 = vector.broadcast %17 : vector<1x128xf32> to vector<8x128xf32>
    %31 = arith.addf %29, %30 : vector<8x128xf32>
    %32 = arith.truncf %31 : vector<8x128xf32> to vector<8x128xbf16>
    %c0_20 = arith.constant 0 : index
    %c0_21 = arith.constant 0 : index
    %33 = vector.load %arg9[%c0_20, %c0_21] : memref<128x512xbf16, #tpu.memory_space<vmem>>, vector<128x512xbf16>
    %cst_22 = arith.constant dense<0.000000e+00> : vector<8x512xf32>
    %34 = tpu.matmul %32, %33, %cst_22 {dimension_numbers = #tpu.dot_dimension_numbers<[1], [0], [0], [1], [0, 0, 1, 1], [], []>} : vector<8x128xbf16>, vector<128x512xbf16>, vector<8x512xf32> -> vector<8x512xf32>
    %c0_23 = arith.constant 0 : index
    %c0_24 = arith.constant 0 : index
    %35 = vector.load %arg10[%c0_23, %c0_24] : memref<1x512xf32, #tpu.memory_space<vmem>>, vector<1x512xf32>
    %36 = vector.broadcast %35 : vector<1x512xf32> to vector<8x512xf32>
    %37 = arith.addf %34, %36 : vector<8x512xf32>
    %cst_25 = arith.constant 5.000000e-01 : f32
    %38 = vector.broadcast %cst_25 : f32 to vector<8x512xf32>
    %39 = arith.mulf %38, %37 : vector<8x512xf32>
    %cst_26 = arith.constant 4.471500e-02 : f32
    %40 = vector.broadcast %cst_26 : f32 to vector<8x512xf32>
    %41 = arith.mulf %40, %37 : vector<8x512xf32>
    %42 = arith.mulf %41, %37 : vector<8x512xf32>
    %43 = arith.mulf %42, %37 : vector<8x512xf32>
    %44 = arith.addf %37, %43 : vector<8x512xf32>
    %cst_27 = arith.constant 0.797884583 : f32
    %45 = vector.broadcast %cst_27 : f32 to vector<8x512xf32>
    %46 = arith.mulf %45, %44 : vector<8x512xf32>
    %47 = math.tanh %46 : vector<8x512xf32>
    %cst_28 = arith.constant 1.000000e+00 : f32
    %48 = vector.broadcast %cst_28 : f32 to vector<8x512xf32>
    %49 = arith.addf %48, %47 : vector<8x512xf32>
    %50 = arith.mulf %39, %49 : vector<8x512xf32>
    %51 = arith.truncf %50 : vector<8x512xf32> to vector<8x512xbf16>
    %c0_29 = arith.constant 0 : index
    %c0_30 = arith.constant 0 : index
    %52 = vector.load %arg11[%c0_29, %c0_30] : memref<512x128xbf16, #tpu.memory_space<vmem>>, vector<512x128xbf16>
    %cst_31 = arith.constant dense<0.000000e+00> : vector<8x128xf32>
    %53 = tpu.matmul %51, %52, %cst_31 {dimension_numbers = #tpu.dot_dimension_numbers<[1], [0], [0], [1], [0, 0, 1, 1], [], []>} : vector<8x512xbf16>, vector<512x128xbf16>, vector<8x128xf32> -> vector<8x128xf32>
    %c0_32 = arith.constant 0 : index
    %c0_33 = arith.constant 0 : index
    %54 = vector.load %arg12[%c0_32, %c0_33] : memref<1x128xf32, #tpu.memory_space<vmem>>, vector<1x128xf32>
    %55 = vector.broadcast %54 : vector<1x128xf32> to vector<8x128xf32>
    %56 = arith.addf %53, %55 : vector<8x128xf32>
    %57 = arith.addf %56, %31 : vector<8x128xf32>
    %c0_34 = arith.constant 0 : index
    %c0_35 = arith.constant 0 : index
    %58 = vector.load %arg13[%c0_34, %c0_35] : memref<1x128xf32, #tpu.memory_space<vmem>>, vector<1x128xf32>
    %c0_36 = arith.constant 0 : index
    %c0_37 = arith.constant 0 : index
    %59 = vector.load %arg14[%c0_36, %c0_37] : memref<1x128xf32, #tpu.memory_space<vmem>>, vector<1x128xf32>
    %60 = arith.truncf %57 : vector<8x128xf32> to vector<8x128xbf16>
    %cst_38 = arith.constant dense<0.000000e+00> : vector<8x128xf32>
    %61 = tpu.matmul %60, %14, %cst_38 {dimension_numbers = #tpu.dot_dimension_numbers<[1], [0], [0], [1], [0, 0, 1, 1], [], []>} : vector<8x128xbf16>, vector<128x128xbf16>, vector<8x128xf32> -> vector<8x128xf32>
    %62 = arith.subf %57, %61 : vector<8x128xf32>
    %63 = arith.mulf %62, %62 : vector<8x128xf32>
    %64 = arith.truncf %63 : vector<8x128xf32> to vector<8x128xbf16>
    %cst_39 = arith.constant dense<0.000000e+00> : vector<8x128xf32>
    %65 = tpu.matmul %64, %14, %cst_39 {dimension_numbers = #tpu.dot_dimension_numbers<[1], [0], [0], [1], [0, 0, 1, 1], [], []>} : vector<8x128xbf16>, vector<128x128xbf16>, vector<8x128xf32> -> vector<8x128xf32>
    %cst_40 = arith.constant 9.99999996E-13 : f32
    %66 = vector.broadcast %cst_40 : f32 to vector<8x128xf32>
    %67 = arith.addf %65, %66 : vector<8x128xf32>
    %68 = math.rsqrt %67 : vector<8x128xf32>
    %69 = arith.mulf %62, %68 : vector<8x128xf32>
    %70 = vector.broadcast %58 : vector<1x128xf32> to vector<8x128xf32>
    %71 = arith.mulf %69, %70 : vector<8x128xf32>
    %72 = vector.broadcast %59 : vector<1x128xf32> to vector<8x128xf32>
    %73 = arith.addf %71, %72 : vector<8x128xf32>
    %c0_41 = arith.constant 0 : index
    %c0_42 = arith.constant 0 : index
    %c0_43 = arith.constant 0 : index
    %74 = vector.load %arg15[%c0_41, %c0_42, %c0_43] : memref<1x8x128xf32, #tpu.memory_space<vmem>>, vector<1x8x128xf32>
    %75 = vector.shape_cast %74 : vector<1x8x128xf32> to vector<8x128xf32>
    %76 = vector.shape_cast %73 : vector<8x128xf32> to vector<1x8x128xf32>
    tpu.vector_store %arg15[%c0_41, %c0_42, %c0_43], %76 {strides = array<i32>} : memref<1x8x128xf32, #tpu.memory_space<vmem>>, vector<1x8x128xf32>,
    return
  }
  func.func @transform_0(%arg0: i32) -> (i32, i32, i32) {
    %c0_i32 = arith.constant 0 : i32
    %c0_i32_0 = arith.constant 0 : i32
    %c0_i32_1 = arith.constant 0 : i32
    return %arg0, %c0_i32, %c0_i32_0 : i32, i32, i32
  }
  func.func @transform_1(%arg0: i32) -> (i32, i32) {
    %c0_i32 = arith.constant 0 : i32
    %c0_i32_0 = arith.constant 0 : i32
    %c0_i32_1 = arith.constant 0 : i32
    return %c0_i32, %c0_i32_0 : i32, i32
  }
  func.func @transform_2(%arg0: i32) -> (i32, i32) {
    %c0_i32 = arith.constant 0 : i32
    %c0_i32_0 = arith.constant 0 : i32
    %c0_i32_1 = arith.constant 0 : i32
    return %c0_i32, %c0_i32_0 : i32, i32
  }
  func.func @transform_3(%arg0: i32) -> (i32, i32) {
    %c0_i32 = arith.constant 0 : i32
    %c0_i32_0 = arith.constant 0 : i32
    %c0_i32_1 = arith.constant 0 : i32
    return %c0_i32, %c0_i32_0 : i32, i32
  }
  func.func @transform_4(%arg0: i32) -> (i32, i32) {
    %c0_i32 = arith.constant 0 : i32
    %c0_i32_0 = arith.constant 0 : i32
    %c0_i32_1 = arith.constant 0 : i32
    return %c0_i32, %c0_i32_0 : i32, i32
  }
  func.func @transform_5(%arg0: i32) -> (i32, i32) {
    %c0_i32 = arith.constant 0 : i32
    %c0_i32_0 = arith.constant 0 : i32
    %c0_i32_1 = arith.constant 0 : i32
    return %c0_i32, %c0_i32_0 : i32, i32
  }
  func.func @transform_6(%arg0: i32) -> (i32, i32) {
    %c0_i32 = arith.constant 0 : i32
    %c0_i32_0 = arith.constant 0 : i32
    %c0_i32_1 = arith.constant 0 : i32
    return %c0_i32, %c0_i32_0 : i32, i32
  }
  func.func @transform_7(%arg0: i32) -> (i32, i32) {
    %c0_i32 = arith.constant 0 : i32
    %c0_i32_0 = arith.constant 0 : i32
    %c0_i32_1 = arith.constant 0 : i32
    return %c0_i32, %c0_i32_0 : i32, i32
  }
  func.func @transform_8(%arg0: i32) -> (i32, i32) {
    %c0_i32 = arith.constant 0 : i32
    %c0_i32_0 = arith.constant 0 : i32
    %c0_i32_1 = arith.constant 0 : i32
    return %c0_i32, %c0_i32_0 : i32, i32
  }
  func.func @transform_9(%arg0: i32) -> (i32, i32) {
    %c0_i32 = arith.constant 0 : i32
    %c0_i32_0 = arith.constant 0 : i32
    %c0_i32_1 = arith.constant 0 : i32
    return %c0_i32, %c0_i32_0 : i32, i32
  }
  func.func @transform_10(%arg0: i32) -> (i32, i32) {
    %c0_i32 = arith.constant 0 : i32
    %c0_i32_0 = arith.constant 0 : i32
    %c0_i32_1 = arith.constant 0 : i32
    return %c0_i32, %c0_i32_0 : i32, i32
  }
  func.func @transform_11(%arg0: i32) -> (i32, i32) {
    %c0_i32 = arith.constant 0 : i32
    %c0_i32_0 = arith.constant 0 : i32
    %c0_i32_1 = arith.constant 0 : i32
    return %c0_i32, %c0_i32_0 : i32, i32
  }
  func.func @transform_12(%arg0: i32) -> (i32, i32) {
    %c0_i32 = arith.constant 0 : i32
    %c0_i32_0 = arith.constant 0 : i32
    %c0_i32_1 = arith.constant 0 : i32
    return %c0_i32, %c0_i32_0 : i32, i32
  }
  func.func @transform_13(%arg0: i32) -> (i32, i32) {
    %c0_i32 = arith.constant 0 : i32
    %c0_i32_0 = arith.constant 0 : i32
    %c0_i32_1 = arith.constant 0 : i32
    return %c0_i32, %c0_i32_0 : i32, i32
  }
  func.func @transform_14(%arg0: i32) -> (i32, i32, i32) {
    %c0_i32 = arith.constant 0 : i32
    %c0_i32_0 = arith.constant 0 : i32
    %c0_i32_1 = arith.constant 0 : i32
    return %arg0, %c0_i32, %c0_i32_0 : i32, i32, i32
  }
}

</mosaic_0001>

<llo_original>
// kernel: tpu_custom_call.1
$region0: #{tpu_custom_call.1}
  #allocation0 [shape = 'u32[]', space=smem, size = 0x4, offset = 0x4, fixed_abs, tag = 'smem constant byte address 0x4 - core index']
  #allocation1 [shape = 'u32[144,128]{1,0:T(1,128)}', space=vmem, size = 0x12000, scoped, tag = 'internal scratch']
  %s0 = inlined_call_operand.hbm [shape: f32[2,8,128], index: 0, kind: input, shape index: {}]
  %s1 = inlined_call_operand.vmem [shape: bf16[16,8], index: 1, kind: input, shape index: {}]
  %s2 = inlined_call_operand.vmem [shape: bf16[8,16], index: 2, kind: input, shape index: {}]
  %s3 = inlined_call_operand.vmem [shape: f32[16,128], index: 3, kind: input, shape index: {}]
  %s4 = inlined_call_operand.hbm [shape: f32[16,128], index: 4, kind: input, shape index: {}]
  %s5 = inlined_call_operand.hbm [shape: bf16[128,128], index: 5, kind: input, shape index: {}]
  %s6 = inlined_call_operand.vmem [shape: f32[1,128], index: 6, kind: input, shape index: {}]
  %s7 = inlined_call_operand.vmem [shape: f32[1,128], index: 7, kind: input, shape index: {}]
  %s8 = inlined_call_operand.hbm [shape: bf16[128,512], index: 8, kind: input, shape index: {}]
  %s9 = inlined_call_operand.vmem [shape: f32[1,512], index: 9, kind: input, shape index: {}]
  %s10 = inlined_call_operand.hbm [shape: bf16[512,128], index: 10, kind: input, shape index: {}]
  %s11 = inlined_call_operand.vmem [shape: f32[1,128], index: 11, kind: input, shape index: {}]
  %s12 = inlined_call_operand.vmem [shape: f32[1,128], index: 12, kind: input, shape index: {}]
  %s13 = inlined_call_operand.vmem [shape: f32[1,128], index: 13, kind: input, shape index: {}]
  %s14 = inlined_call_operand.hbm [shape: f32[2,8,128], index: 14, kind: output, shape index: {}]
  %s15 = sld [smem:[#allocation0]]
  $region109: #{tpu_custom_call.1} parent=0
    _
  %s17 = ssub.s32 1, %s15
  %s18 = scalar_select 0, %s17, %s15
  $region1: #{tpu_custom_call.1} parent=0
    #allocation2 [shape = 'u8[8192]{0}', space=vmem, size = 0x2000, scoped, tag = 'input window, operand 0']
    #allocation3 [shape = 's32[2]{0}', space=sflag, size = 0x8, scoped, tag = 'scoped memory for tpu_custom_call.1']
    #allocation4 [shape = 's32[2]{0}', space=sflag, size = 0x8, scoped, tag = 'scoped memory for tpu_custom_call.1']
    #allocation5 [shape = 'u8[8192]{0}', space=vmem, size = 0x2000, scoped, tag = 'input window, operand 4, single buffered']
    #allocation6 [shape = 's32[1]{0}', space=sflag, size = 0x4, scoped, tag = 'scoped memory for tpu_custom_call.1']
    #allocation7 [shape = 'u8[32768]{0}', space=vmem, size = 0x8000, scoped, tag = 'input window, operand 5, single buffered']
    #allocation8 [shape = 'u8[131072]{0}', space=vmem, size = 0x20000, scoped, tag = 'input window, operand 8, single buffered']
    #allocation9 [shape = 's32[1]{0}', space=sflag, size = 0x4, scoped, tag = 'scoped memory for tpu_custom_call.1']
    #allocation10 [shape = 'u8[131072]{0}', space=vmem, size = 0x20000, scoped, tag = 'input window, operand 10, single buffered']
    #allocation11 [shape = 'u8[8192]{0}', space=vmem, size = 0x2000, scoped, tag = 'output window, operand 0']
    %19 = vsyncpa [#allocation3], 0
    %s20 = scalar_lea.sflag [#allocation3], 1
    %21 = vsyncpa %s20, 0
    %22 = vsyncpa [#allocation6], 0
    %23 = vsyncpa [#allocation9], 0
    %24 = vsyncpa [#allocation4], 0
    %s25 = scalar_lea.sflag [#allocation4], 1
    %26 = vsyncpa %s25, 0
    loop: start=0, step=1, limit=4
    $region2: #{tpu_custom_call.1} parent=1 // loop_pre_header
      _
    $region3: #{tpu_custom_call.1} parent=1 // loop_header
      %s28 = sphi 0, %s32
      %p29 = scmp.ge.s32.totalorder %s28, 4
      %s38 = sphi 0, %s40
      %s41 = sphi 0, %s38
      %s42 = sphi 0, %s41
      %s58 = sphi 0, %s42
      %s62 = sphi 0, %s62
      %s64 = sphi 0, %s62
      %s65 = sphi 0, %s64
      %s79 = sphi 0, %s65
      %s83 = sphi 0, %s83
      %s85 = sphi 0, %s83
      %s86 = sphi 0, %s85
      %s100 = sphi 0, %s86
      %s104 = sphi 0, %s104
      %s106 = sphi 0, %s104
      %s107 = sphi 0, %s106
      %s121 = sphi 0, %s107
      %s125 = sphi 0, %s125
      %s127 = sphi 0, %s125
      %s128 = sphi 0, %s127
      %s142 = sphi 0, %s128
      %s146 = sphi 0, %s146
      %s148 = sphi 0, %s146
      %s149 = sphi 0, %s148
      %s163 = sphi 0, %s149
      %s167 = sphi 0, %s167
      %s169 = sphi 0, %s167
      %s170 = sphi 0, %s169
      %s184 = sphi 0, %s170
      %s188 = sphi 0, %s188
      %s190 = sphi 0, %s188
      %s191 = sphi 0, %s190
      %s205 = sphi 0, %s191
      %s209 = sphi 0, %s209
      %s211 = sphi 0, %s209
      %s212 = sphi 0, %s211
      %s226 = sphi 0, %s212
      %s230 = sphi 0, %s230
      %s232 = sphi 0, %s230
      %s233 = sphi 0, %s232
      %s247 = sphi 0, %s233
      %s251 = sphi 0, %s251
      %s253 = sphi 0, %s251
      %s254 = sphi 0, %s253
      %s268 = sphi 0, %s254
      %s272 = sphi 0, %s272
      %s274 = sphi 0, %s272
      %s275 = sphi 0, %s274
      %s289 = sphi 0, %s275
      %s293 = sphi 0, %s293
      %s295 = sphi 0, %s293
      %s296 = sphi 0, %s295
      %s310 = sphi 0, %s296
      %s314 = sphi 0, %s314
      %s316 = sphi 0, %s314
      %s317 = sphi 0, %s316
      %s331 = sphi 0, %s317
      %s337 = sphi 0, %s339
      %s340 = sphi 0, %s337
      %s341 = sphi 0, %s340
      %s357 = sphi 0, %s341
    $region4: #{tpu_custom_call.1} parent=1 // loop_header_branch
      %31 = sbr.rel (%p29) target = $region8
    $region5: #{tpu_custom_call.1} parent=1 // loop_body
      %s33 = ssub.s32 %s28, 1
      %s34 = ssub.s32 %s28, 2
      %s35 = sadd.s32 %s28, 1
      %s36 = ssub.s32 %s28, %s35
      %p37 = scmp.eq.s32.totalorder %s36, 0
      %s39 = sadd.s32 %s38, 1
      %s40 = scalar_select %p37, %s38, %s39
      %p43 = pneg %p37
      %p44 = scmp.eq.s32.totalorder %s28, 1
      %p45 = por %p43, %p44
      %p46 = scmp.ne.s32.totalorder %s38, %s41
      %p47 = scmp.eq.s32.totalorder %s28, 0
      %p48 = por %p46, %p47
      %p49 = scmp.ne.s32.totalorder %s38, %s41
      %p50 = scmp.eq.s32.totalorder %s33, 1
      %p51 = por %p49, %p50
      %p52 = scmp.ne.s32.totalorder %s41, %s42
      %p53 = scmp.eq.s32.totalorder %s33, 0
      %p54 = por %p52, %p53
      %p55 = scmp.ne.s32.totalorder %s41, %s42
      %p56 = scmp.eq.s32.totalorder %s34, 1
      %p57 = por %p55, %p56
      %p59 = scmp.ne.s32.totalorder %s42, %s58
      %p60 = scmp.eq.s32.totalorder %s34, 0
      %p61 = por %p59, %p60
      %s63 = sadd.s32 %s62, 1
      %p66 = scmp.eq.s32.totalorder %s28, 1
      %p67 = scmp.ne.s32.totalorder %s62, %s64
      %p68 = scmp.eq.s32.totalorder %s28, 0
      %p69 = por %p67, %p68
      %p70 = scmp.ne.s32.totalorder %s62, %s64
      %p71 = scmp.eq.s32.totalorder %s33, 1
      %p72 = por %p70, %p71
      %p73 = scmp.ne.s32.totalorder %s64, %s65
      %p74 = scmp.eq.s32.totalorder %s33, 0
      %p75 = por %p73, %p74
      %p76 = scmp.ne.s32.totalorder %s64, %s65
      %p77 = scmp.eq.s32.totalorder %s34, 1
      %p78 = por %p76, %p77
      %p80 = scmp.ne.s32.totalorder %s65, %s79
      %p81 = scmp.eq.s32.totalorder %s34, 0
      %p82 = por %p80, %p81
      %s84 = sadd.s32 %s83, 1
      %p87 = scmp.eq.s32.totalorder %s28, 1
      %p88 = scmp.ne.s32.totalorder %s83, %s85
      %p89 = scmp.eq.s32.totalorder %s28, 0
      %p90 = por %p88, %p89
      %p91 = scmp.ne.s32.totalorder %s83, %s85
      %p92 = scmp.eq.s32.totalorder %s33, 1
      %p93 = por %p91, %p92
      %p94 = scmp.ne.s32.totalorder %s85, %s86
      %p95 = scmp.eq.s32.totalorder %s33, 0
      %p96 = por %p94, %p95
      %p97 = scmp.ne.s32.totalorder %s85, %s86
      %p98 = scmp.eq.s32.totalorder %s34, 1
      %p99 = por %p97, %p98
      %p101 = scmp.ne.s32.totalorder %s86, %s100
      %p102 = scmp.eq.s32.totalorder %s34, 0
      %p103 = por %p101, %p102
      %s105 = sadd.s32 %s104, 1
      %p108 = scmp.eq.s32.totalorder %s28, 1
      %p109 = scmp.ne.s32.totalorder %s104, %s106
      %p110 = scmp.eq.s32.totalorder %s28, 0
      %p111 = por %p109, %p110
      %p112 = scmp.ne.s32.totalorder %s104, %s106
      %p113 = scmp.eq.s32.totalorder %s33, 1
      %p114 = por %p112, %p113
      %p115 = scmp.ne.s32.totalorder %s106, %s107
      %p116 = scmp.eq.s32.totalorder %s33, 0
      %p117 = por %p115, %p116
      %p118 = scmp.ne.s32.totalorder %s106, %s107
      %p119 = scmp.eq.s32.totalorder %s34, 1
      %p120 = por %p118, %p119
      %p122 = scmp.ne.s32.totalorder %s107, %s121
      %p123 = scmp.eq.s32.totalorder %s34, 0
      %p124 = por %p122, %p123
      %s126 = sadd.s32 %s125, 1
      %p129 = scmp.eq.s32.totalorder %s28, 1
      %p130 = scmp.ne.s32.totalorder %s125, %s127
      %p131 = scmp.eq.s32.totalorder %s28, 0
      %p132 = por %p130, %p131
      %p133 = scmp.ne.s32.totalorder %s125, %s127
      %p134 = scmp.eq.s32.totalorder %s33, 1
      %p135 = por %p133, %p134
      %p136 = scmp.ne.s32.totalorder %s127, %s128
      %p137 = scmp.eq.s32.totalorder %s33, 0
      %p138 = por %p136, %p137
      %p139 = scmp.ne.s32.totalorder %s127, %s128
      %p140 = scmp.eq.s32.totalorder %s34, 1
      %p141 = por %p139, %p140
      %p143 = scmp.ne.s32.totalorder %s128, %s142
      %p144 = scmp.eq.s32.totalorder %s34, 0
      %p145 = por %p143, %p144
      %s147 = sadd.s32 %s146, 1
      %p150 = scmp.eq.s32.totalorder %s28, 1
      %p151 = scmp.ne.s32.totalorder %s146, %s148
      %p152 = scmp.eq.s32.totalorder %s28, 0
      %p153 = por %p151, %p152
      %p154 = scmp.ne.s32.totalorder %s146, %s148
      %p155 = scmp.eq.s32.totalorder %s33, 1
      %p156 = por %p154, %p155
      %p157 = scmp.ne.s32.totalorder %s148, %s149
      %p158 = scmp.eq.s32.totalorder %s33, 0
      %p159 = por %p157, %p158
      %p160 = scmp.ne.s32.totalorder %s148, %s149
      %p161 = scmp.eq.s32.totalorder %s34, 1
      %p162 = por %p160, %p161
      %p164 = scmp.ne.s32.totalorder %s149, %s163
      %p165 = scmp.eq.s32.totalorder %s34, 0
      %p166 = por %p164, %p165
      %s168 = sadd.s32 %s167, 1
      %p171 = scmp.eq.s32.totalorder %s28, 1
      %p172 = scmp.ne.s32.totalorder %s167, %s169
      %p173 = scmp.eq.s32.totalorder %s28, 0
      %p174 = por %p172, %p173
      %p175 = scmp.ne.s32.totalorder %s167, %s169
      %p176 = scmp.eq.s32.totalorder %s33, 1
      %p177 = por %p175, %p176
      %p178 = scmp.ne.s32.totalorder %s169, %s170
      %p179 = scmp.eq.s32.totalorder %s33, 0
      %p180 = por %p178, %p179
      %p181 = scmp.ne.s32.totalorder %s169, %s170
      %p182 = scmp.eq.s32.totalorder %s34, 1
      %p183 = por %p181, %p182
      %p185 = scmp.ne.s32.totalorder %s170, %s184
      %p186 = scmp.eq.s32.totalorder %s34, 0
      %p187 = por %p185, %p186
      %s189 = sadd.s32 %s188, 1
      %p192 = scmp.eq.s32.totalorder %s28, 1
      %p193 = scmp.ne.s32.totalorder %s188, %s190
      %p194 = scmp.eq.s32.totalorder %s28, 0
      %p195 = por %p193, %p194
      %p196 = scmp.ne.s32.totalorder %s188, %s190
      %p197 = scmp.eq.s32.totalorder %s33, 1
      %p198 = por %p196, %p197
      %p199 = scmp.ne.s32.totalorder %s190, %s191
      %p200 = scmp.eq.s32.totalorder %s33, 0
      %p201 = por %p199, %p200
      %p202 = scmp.ne.s32.totalorder %s190, %s191
      %p203 = scmp.eq.s32.totalorder %s34, 1
      %p204 = por %p202, %p203
      %p206 = scmp.ne.s32.totalorder %s191, %s205
      %p207 = scmp.eq.s32.totalorder %s34, 0
      %p208 = por %p206, %p207
      %s210 = sadd.s32 %s209, 1
      %p213 = scmp.eq.s32.totalorder %s28, 1
      %p214 = scmp.ne.s32.totalorder %s209, %s211
      %p215 = scmp.eq.s32.totalorder %s28, 0
      %p216 = por %p214, %p215
      %p217 = scmp.ne.s32.totalorder %s209, %s211
      %p218 = scmp.eq.s32.totalorder %s33, 1
      %p219 = por %p217, %p218
      %p220 = scmp.ne.s32.totalorder %s211, %s212
      %p221 = scmp.eq.s32.totalorder %s33, 0
      %p222 = por %p220, %p221
      %p223 = scmp.ne.s32.totalorder %s211, %s212
      %p224 = scmp.eq.s32.totalorder %s34, 1
      %p225 = por %p223, %p224
      %p227 = scmp.ne.s32.totalorder %s212, %s226
      %p228 = scmp.eq.s32.totalorder %s34, 0
      %p229 = por %p227, %p228
      %s231 = sadd.s32 %s230, 1
      %p234 = scmp.eq.s32.totalorder %s28, 1
      %p235 = scmp.ne.s32.totalorder %s230, %s232
      %p236 = scmp.eq.s32.totalorder %s28, 0
      %p237 = por %p235, %p236
      %p238 = scmp.ne.s32.totalorder %s230, %s232
      %p239 = scmp.eq.s32.totalorder %s33, 1
      %p240 = por %p238, %p239
      %p241 = scmp.ne.s32.totalorder %s232, %s233
      %p242 = scmp.eq.s32.totalorder %s33, 0
      %p243 = por %p241, %p242
      %p244 = scmp.ne.s32.totalorder %s232, %s233
      %p245 = scmp.eq.s32.totalorder %s34, 1
      %p246 = por %p244, %p245
      %p248 = scmp.ne.s32.totalorder %s233, %s247
      %p249 = scmp.eq.s32.totalorder %s34, 0
      %p250 = por %p248, %p249
      %s252 = sadd.s32 %s251, 1
      %p255 = scmp.eq.s32.totalorder %s28, 1
      %p256 = scmp.ne.s32.totalorder %s251, %s253
      %p257 = scmp.eq.s32.totalorder %s28, 0
      %p258 = por %p256, %p257
      %p259 = scmp.ne.s32.totalorder %s251, %s253
      %p260 = scmp.eq.s32.totalorder %s33, 1
      %p261 = por %p259, %p260
      %p262 = scmp.ne.s32.totalorder %s253, %s254
      %p263 = scmp.eq.s32.totalorder %s33, 0
      %p264 = por %p262, %p263
      %p265 = scmp.ne.s32.totalorder %s253, %s254
      %p266 = scmp.eq.s32.totalorder %s34, 1
      %p267 = por %p265, %p266
      %p269 = scmp.ne.s32.totalorder %s254, %s268
      %p270 = scmp.eq.s32.totalorder %s34, 0
      %p271 = por %p269, %p270
      %s273 = sadd.s32 %s272, 1
      %p276 = scmp.eq.s32.totalorder %s28, 1
      %p277 = scmp.ne.s32.totalorder %s272, %s274
      %p278 = scmp.eq.s32.totalorder %s28, 0
      %p279 = por %p277, %p278
      %p280 = scmp.ne.s32.totalorder %s272, %s274
      %p281 = scmp.eq.s32.totalorder %s33, 1
      %p282 = por %p280, %p281
      %p283 = scmp.ne.s32.totalorder %s274, %s275
      %p284 = scmp.eq.s32.totalorder %s33, 0
      %p285 = por %p283, %p284
      %p286 = scmp.ne.s32.totalorder %s274, %s275
      %p287 = scmp.eq.s32.totalorder %s34, 1
      %p288 = por %p286, %p287
      %p290 = scmp.ne.s32.totalorder %s275, %s289
      %p291 = scmp.eq.s32.totalorder %s34, 0
      %p292 = por %p290, %p291
      %s294 = sadd.s32 %s293, 1
      %p297 = scmp.eq.s32.totalorder %s28, 1
      %p298 = scmp.ne.s32.totalorder %s293, %s295
      %p299 = scmp.eq.s32.totalorder %s28, 0
      %p300 = por %p298, %p299
      %p301 = scmp.ne.s32.totalorder %s293, %s295
      %p302 = scmp.eq.s32.totalorder %s33, 1
      %p303 = por %p301, %p302
      %p304 = scmp.ne.s32.totalorder %s295, %s296
      %p305 = scmp.eq.s32.totalorder %s33, 0
      %p306 = por %p304, %p305
      %p307 = scmp.ne.s32.totalorder %s295, %s296
      %p308 = scmp.eq.s32.totalorder %s34, 1
      %p309 = por %p307, %p308
      %p311 = scmp.ne.s32.totalorder %s296, %s310
      %p312 = scmp.eq.s32.totalorder %s34, 0
      %p313 = por %p311, %p312
      %s315 = sadd.s32 %s314, 1
      %p318 = scmp.eq.s32.totalorder %s28, 1
      %p319 = scmp.ne.s32.totalorder %s314, %s316
      %p320 = scmp.eq.s32.totalorder %s28, 0
      %p321 = por %p319, %p320
      %p322 = scmp.ne.s32.totalorder %s314, %s316
      %p323 = scmp.eq.s32.totalorder %s33, 1
      %p324 = por %p322, %p323
      %p325 = scmp.ne.s32.totalorder %s316, %s317
      %p326 = scmp.eq.s32.totalorder %s33, 0
      %p327 = por %p325, %p326
      %p328 = scmp.ne.s32.totalorder %s316, %s317
      %p329 = scmp.eq.s32.totalorder %s34, 1
      %p330 = por %p328, %p329
      %p332 = scmp.ne.s32.totalorder %s317, %s331
      %p333 = scmp.eq.s32.totalorder %s34, 0
      %p334 = por %p332, %p333
      %s335 = ssub.s32 %s28, %s35
      %p336 = scmp.eq.s32.totalorder %s335, 0
      %s338 = sadd.s32 %s337, 1
      %s339 = scalar_select %p336, %s337, %s338
      %p342 = pneg %p336
      %p343 = scmp.eq.s32.totalorder %s28, 1
      %p344 = por %p342, %p343
      %p345 = scmp.ne.s32.totalorder %s337, %s340
      %p346 = scmp.eq.s32.totalorder %s28, 0
      %p347 = por %p345, %p346
      %p348 = scmp.ne.s32.totalorder %s337, %s340
      %p349 = scmp.eq.s32.totalorder %s33, 1
      %p350 = por %p348, %p349
      %p351 = scmp.ne.s32.totalorder %s340, %s341
      %p352 = scmp.eq.s32.totalorder %s33, 0
      %p353 = por %p351, %p352
      %p354 = scmp.ne.s32.totalorder %s340, %s341
      %p355 = scmp.eq.s32.totalorder %s34, 1
      %p356 = por %p354, %p355
      %p358 = scmp.ne.s32.totalorder %s341, %s357
      %p359 = scmp.eq.s32.totalorder %s34, 0
      %p360 = por %p358, %p359
      %p361 = scmp.le.s32.totalorder 1, %s28
      %p362 = scmp.lt.s32.totalorder %s28, 3
      %p363 = pnand %p361, %p362
      %p364 = pneg %p363
      // Predicated region
      $region9: #{tpu_custom_call.1} parent=5 // pred_check
        _
      $region10: #{tpu_custom_call.1} parent=5 // pred_check_branch
        %366 = sbr.rel (%p363) target = $region12
      $region11: #{tpu_custom_call.1} parent=5 // pred_region
        %s367 = ssub.s32 %s28, 1
        // Predicated region
        $region13: #{tpu_custom_call.1} parent=11 // pred_check
          %p368 = pneg %p75
        $region14: #{tpu_custom_call.1} parent=11 // pred_check_branch
          %370 = sbr.rel (%p368) target = $region16
        $region15: #{tpu_custom_call.1} parent=11 // pred_region
          _
        $region16: #{tpu_custom_call.1} parent=11 // pred_fallthru
          _
        // Predicated region
        $region17: #{tpu_custom_call.1} parent=11 // pred_check
          %p371 = pneg %p96
        $region18: #{tpu_custom_call.1} parent=11 // pred_check_branch
          %373 = sbr.rel (%p371) target = $region20
        $region19: #{tpu_custom_call.1} parent=11 // pred_region
          _
        $region20: #{tpu_custom_call.1} parent=11 // pred_fallthru
          _
        // Predicated region
        $region21: #{tpu_custom_call.1} parent=11 // pred_check
          %p374 = pneg %p117
        $region22: #{tpu_custom_call.1} parent=11 // pred_check_branch
          %376 = sbr.rel (%p374) target = $region24
        $region23: #{tpu_custom_call.1} parent=11 // pred_region
          _
        $region24: #{tpu_custom_call.1} parent=11 // pred_fallthru
          _
        // Predicated region
        $region25: #{tpu_custom_call.1} parent=11 // pred_check
          %p377 = pneg %p138
        $region26: #{tpu_custom_call.1} parent=11 // pred_check_branch
          %379 = sbr.rel (%p377) target = $region28
        $region27: #{tpu_custom_call.1} parent=11 // pred_region
          %s381 = ssub.s32 256, 256
          %382 = vsyncadd [#allocation6], %s381
          %s383 = sshll.u32 [#allocation5], 4
          %s384 = int_to_ptr.vmem [resolvable:$true] %s383
          %389 = dma.hbm_to_vmem [thread:$0]  %s4, 256, %s384, [#allocation6], 128, 128, 8
        $region28: #{tpu_custom_call.1} parent=11 // pred_fallthru
          _
        // Predicated region
        $region29: #{tpu_custom_call.1} parent=11 // pred_check
          %p390 = pneg %p159
        $region30: #{tpu_custom_call.1} parent=11 // pred_check_branch
          %392 = sbr.rel (%p390) target = $region32
        $region31: #{tpu_custom_call.1} parent=11 // pred_region
          %s394 = ssub.s32 1024, 1024
          %395 = vsyncadd [#allocation6], %s394
          %s396 = sshll.u32 [#allocation7], 4
          %s397 = int_to_ptr.vmem [resolvable:$true] %s396
          %402 = dma.hbm_to_vmem [thread:$0]  %s5, 1024, %s397, [#allocation6], 64, 64, 4
        $region32: #{tpu_custom_call.1} parent=11 // pred_fallthru
          _
        // Predicated region
        $region33: #{tpu_custom_call.1} parent=11 // pred_check
          %p403 = pneg %p180
        $region34: #{tpu_custom_call.1} parent=11 // pred_check_branch
          %405 = sbr.rel (%p403) target = $region36
        $region35: #{tpu_custom_call.1} parent=11 // pred_region
          _
        $region36: #{tpu_custom_call.1} parent=11 // pred_fallthru
          _
        // Predicated region
        $region37: #{tpu_custom_call.1} parent=11 // pred_check
          %p406 = pneg %p201
        $region38: #{tpu_custom_call.1} parent=11 // pred_check_branch
          %408 = sbr.rel (%p406) target = $region40
        $region39: #{tpu_custom_call.1} parent=11 // pred_region
          _
        $region40: #{tpu_custom_call.1} parent=11 // pred_fallthru
          _
        // Predicated region
        $region41: #{tpu_custom_call.1} parent=11 // pred_check
          %p409 = pneg %p222
        $region42: #{tpu_custom_call.1} parent=11 // pred_check_branch
          %411 = sbr.rel (%p409) target = $region44
        $region43: #{tpu_custom_call.1} parent=11 // pred_region
          %s413 = ssub.s32 4096, 4096
          %414 = vsyncadd [#allocation9], %s413
          %s415 = sshll.u32 [#allocation8], 4
          %s416 = int_to_ptr.vmem [resolvable:$true] %s415
          %421 = dma.hbm_to_vmem [thread:$0]  %s8, 4096, %s416, [#allocation9], 256, 256, 16
        $region44: #{tpu_custom_call.1} parent=11 // pred_fallthru
          _
        // Predicated region
        $region45: #{tpu_custom_call.1} parent=11 // pred_check
          %p422 = pneg %p243
        $region46: #{tpu_custom_call.1} parent=11 // pred_check_branch
          %424 = sbr.rel (%p422) target = $region48
        $region47: #{tpu_custom_call.1} parent=11 // pred_region
          _
        $region48: #{tpu_custom_call.1} parent=11 // pred_fallthru
          _
        // Predicated region
        $region49: #{tpu_custom_call.1} parent=11 // pred_check
          %p425 = pneg %p264
        $region50: #{tpu_custom_call.1} parent=11 // pred_check_branch
          %427 = sbr.rel (%p425) target = $region52
        $region51: #{tpu_custom_call.1} parent=11 // pred_region
          %s429 = ssub.s32 4096, 4096
          %430 = vsyncadd [#allocation9], %s429
          %s431 = sshll.u32 [#allocation10], 4
          %s432 = int_to_ptr.vmem [resolvable:$true] %s431
          %437 = dma.hbm_to_vmem [thread:$0]  %s10, 4096, %s432, [#allocation9], 64, 64, 4
        $region52: #{tpu_custom_call.1} parent=11 // pred_fallthru
          _
        // Predicated region
        $region53: #{tpu_custom_call.1} parent=11 // pred_check
          %p438 = pneg %p285
        $region54: #{tpu_custom_call.1} parent=11 // pred_check_branch
          %440 = sbr.rel (%p438) target = $region56
        $region55: #{tpu_custom_call.1} parent=11 // pred_region
          _
        $region56: #{tpu_custom_call.1} parent=11 // pred_fallthru
          _
        // Predicated region
        $region57: #{tpu_custom_call.1} parent=11 // pred_check
          %p441 = pneg %p306
        $region58: #{tpu_custom_call.1} parent=11 // pred_check_branch
          %443 = sbr.rel (%p441) target = $region60
        $region59: #{tpu_custom_call.1} parent=11 // pred_region
          _
        $region60: #{tpu_custom_call.1} parent=11 // pred_fallthru
          _
        // Predicated region
        $region61: #{tpu_custom_call.1} parent=11 // pred_check
          %p444 = pneg %p327
        $region62: #{tpu_custom_call.1} parent=11 // pred_check_branch
          %446 = sbr.rel (%p444) target = $region64
        $region63: #{tpu_custom_call.1} parent=11 // pred_region
          _
        $region64: #{tpu_custom_call.1} parent=11 // pred_fallthru
          _
      $region12: #{tpu_custom_call.1} parent=5 // pred_fallthru
        _
      %p447 = scmp.lt.s32.totalorder %s28, 2
      // Predicated region
      $region65: #{tpu_custom_call.1} parent=5 // pred_check
        %p448 = pneg %p447
      $region66: #{tpu_custom_call.1} parent=5 // pred_check_branch
        %450 = sbr.rel (%p448) target = $region68
      $region67: #{tpu_custom_call.1} parent=5 // pred_region
        // Predicated region
        $region69: #{tpu_custom_call.1} parent=67 // pred_check
          %p451 = pneg %p48
        $region70: #{tpu_custom_call.1} parent=67 // pred_check_branch
          %453 = sbr.rel (%p451) target = $region72
        $region71: #{tpu_custom_call.1} parent=67 // pred_region
          %s454 = sand.u32 %s38, 1
          %s455 = scalar_lea.sflag [#allocation3], %s454
          %s456 = sand.u32 %s38, 1
          %s457 = smul.addr %s456, 8
          %s458 = scalar_lea.vmem [#allocation2], %s457
          %s460 = ssub.s32 128, 128
          %461 = vsyncadd %s455, %s460
          %s462 = smul.addr %s28, 128
          %s463 = scalar_lea.hbm %s0, %s462
          %s465 = sshll.u32 %s458, 4
          %s466 = int_to_ptr.vmem [resolvable:$true] %s465
          %468 = dma.hbm_to_vmem [thread:$0]  %s463, 128, %s466, %s455
        $region72: #{tpu_custom_call.1} parent=67 // pred_fallthru
          _
      $region68: #{tpu_custom_call.1} parent=5 // pred_fallthru
        _
      %p469 = scmp.le.s32.totalorder 1, %s28
      %p470 = scmp.lt.s32.totalorder %s28, 3
      %p471 = pnand %p469, %p470
      %p472 = pneg %p471
      // Predicated region
      $region73: #{tpu_custom_call.1} parent=5 // pred_check
        _
      $region74: #{tpu_custom_call.1} parent=5 // pred_check_branch
        %474 = sbr.rel (%p471) target = $region76
      $region75: #{tpu_custom_call.1} parent=5 // pred_region
        %s475 = ssub.s32 %s28, 1
        %s476 = sand.u32 %s41, 1
        %s477 = scalar_lea.sflag [#allocation3], %s476
        %s478 = sand.u32 %s41, 1
        %s479 = smul.addr %s478, 8
        %s480 = scalar_lea.vmem [#allocation2], %s479
        // Predicated region
        $region77: #{tpu_custom_call.1} parent=75 // pred_check
          %p481 = pneg %p54
        $region78: #{tpu_custom_call.1} parent=75 // pred_check_branch
          %483 = sbr.rel (%p481) target = $region80
        $region79: #{tpu_custom_call.1} parent=75 // pred_region
          %484 = dma.done %s477, 128
        $region80: #{tpu_custom_call.1} parent=75 // pred_fallthru
          _
        // Predicated region
        $region81: #{tpu_custom_call.1} parent=75 // pred_check
          %p485 = pneg %p138
        $region82: #{tpu_custom_call.1} parent=75 // pred_check_branch
          %487 = sbr.rel (%p485) target = $region84
        $region83: #{tpu_custom_call.1} parent=75 // pred_region
          %488 = dma.done [#allocation6], 256
        $region84: #{tpu_custom_call.1} parent=75 // pred_fallthru
          _
        // Predicated region
        $region85: #{tpu_custom_call.1} parent=75 // pred_check
          %p489 = pneg %p159
        $region86: #{tpu_custom_call.1} parent=75 // pred_check_branch
          %491 = sbr.rel (%p489) target = $region88
        $region87: #{tpu_custom_call.1} parent=75 // pred_region
          %492 = dma.done [#allocation6], 1024
        $region88: #{tpu_custom_call.1} parent=75 // pred_fallthru
          _
        // Predicated region
        $region89: #{tpu_custom_call.1} parent=75 // pred_check
          %p493 = pneg %p222
        $region90: #{tpu_custom_call.1} parent=75 // pred_check_branch
          %495 = sbr.rel (%p493) target = $region92
        $region91: #{tpu_custom_call.1} parent=75 // pred_region
          %496 = dma.done [#allocation9], 4096
        $region92: #{tpu_custom_call.1} parent=75 // pred_fallthru
          _
        // Predicated region
        $region93: #{tpu_custom_call.1} parent=75 // pred_check
          %p497 = pneg %p264
        $region94: #{tpu_custom_call.1} parent=75 // pred_check_branch
          %499 = sbr.rel (%p497) target = $region96
        $region95: #{tpu_custom_call.1} parent=75 // pred_region
          %500 = dma.done [#allocation9], 4096
        $region96: #{tpu_custom_call.1} parent=75 // pred_fallthru
          _
        %s501 = sand.u32 %s41, 1
        %s502 = scalar_lea.sflag [#allocation3], %s501
        %s503 = sand.u32 %s41, 1
        %s504 = smul.addr %s503, 8
        %s505 = scalar_lea.vmem [#allocation2], %s504
        %p506 = pneg %p54
        %p507 = pneg %p51
        %p508 = pneg %p75
        %p509 = pneg %p72
        %p510 = pneg %p96
        %p511 = pneg %p93
        %p512 = pneg %p117
        %p513 = pneg %p114
        %p514 = pneg %p138
        %p515 = pneg %p135
        %p516 = pneg %p159
        %p517 = pneg %p156
        %p518 = pneg %p180
        %p519 = pneg %p177
        %p520 = pneg %p201
        %p521 = pneg %p198
        %p522 = pneg %p222
        %p523 = pneg %p219
        %p524 = pneg %p243
        %p525 = pneg %p240
        %p526 = pneg %p264
        %p527 = pneg %p261
        %p528 = pneg %p285
        %p529 = pneg %p282
        %p530 = pneg %p306
        %p531 = pneg %p303
        %p532 = pneg %p327
        %p533 = pneg %p324
        %p534 = pneg %p353
        %p535 = pneg %p350
        %s536 = sand.u32 %s340, 1
        %s537 = scalar_lea.sflag [#allocation4], %s536
        %s538 = sand.u32 %s340, 1
        %s539 = smul.addr %s538, 8
        %s540 = scalar_lea.vmem [#allocation11], %s539
        %v542 = vld [vmem:[%s480] sm:$0xff]
        %v543 = vld [vmem:[%s1] sm:$0xf]
        %v544 = vld [vmem:[%s1 + $0x4] sm:$0xf]
        %v545 = vpack.c.bf16 %v542, %v542
        %v548 = vunpack.c.l.b16 %v543
        %v549 = vunpack.c.l.b16 %v544
        %v550 = vpack.c.b16 %v549, %v548
        %vm551 = vcmask 64512
        %v553 = vsel %vm551, %v550, 0
        %vm555 = vcmask 1043456
        %v557 = vsel %vm555, %v545, 0
        %559 = vmatprep.subr.bf16.mxu0 0
        %560 = vmatpush1.bf16.msra.mxu0 %v557
        %561 = vmatprep.subr.bf16.mxu0 0
        %562 = vmatpush1.bf16.msra.mxu0 0
        %563 = vmatprep.subr.bf16.mxu0 0
        %564 = vmatpush1.bf16.msra.mxu0 0
        %565 = vmatprep.subr.bf16.mxu0 0
        %566 = vmatpush1.bf16.msra.mxu0 0
        %567 = vmatprep.subr.bf16.mxu0 0
        %568 = vmatpush1.bf16.msra.mxu0 0
        %569 = vmatprep.subr.bf16.mxu0 0
        %570 = vmatpush1.bf16.msra.mxu0 0
        %571 = vmatprep.subr.bf16.mxu0 0
        %572 = vmatpush1.bf16.msra.mxu0 0
        %573 = vmatprep.subr.bf16.mxu0 0
        %574 = vmatpush1.bf16.msra.mxu0 0
        %575 = vmatprep.subr.bf16.mxu0 0
        %576 = vmatpush1.bf16.msra.mxu0 0
        %577 = vmatprep.subr.bf16.mxu0 0
        %578 = vmatpush1.bf16.msra.mxu0 0
        %579 = vmatprep.subr.bf16.mxu0 0
        %580 = vmatpush1.bf16.msra.mxu0 0
        %581 = vmatprep.subr.bf16.mxu0 0
        %582 = vmatpush1.bf16.msra.mxu0 0
        %583 = vmatprep.subr.bf16.mxu0 0
        %584 = vmatpush1.bf16.msra.mxu0 0
        %585 = vmatprep.subr.bf16.mxu0 0
        %586 = vmatpush1.bf16.msra.mxu0 0
        %587 = vmatprep.subr.bf16.mxu0 0
        %588 = vmatpush1.bf16.msra.mxu0 0
        %589 = vmatprep.subr.bf16.mxu0 0
        %590 = vmatpush1.bf16.msra.mxu0 0
        %591 = vmatprep.mubr.bf16.mxu0 0
        %592 = vmatmul.mubr.bf16.gmra.mrb[0].mxu0 %v553
        %v593 = vpop.f32.mrb[0].mxu0
        %v594 = vadd.f32 0.0, %v593
        %v595 = vpop.f32.mrb[0].mxu0
        %v596 = vpop.f32.mrb[0].mxu0
        %v597 = vadd.f32 0.0, %v596
        %v598 = vpop.f32.mrb[0].mxu0
        %599 = vdwg.mxu0
        %v600 = vld [vmem:[%s3] sm:$0xff]
        %v601 = vld [vmem:[%s3 + $0x8] sm:$0xff]
        %v602 = vmul.f32 %v594, %v600
        %v603 = vmul.f32 %v597, %v601
        %v604 = vld [vmem:[#allocation5] sm:$0xff]
        %v605 = vld [vmem:[#allocation5 + $0x8] sm:$0xff]
        %v606 = vmul.f32 %v597, %v604
        %v607 = vmul.f32 %v594, %v605
        %v608 = vadd.f32 %v602, %v606
        %v609 = vadd.f32 %v603, %v607
        %v610 = vld [vmem:[%s2] sm:$0xf]
        %v611 = vpack.c.bf16 %v609, %v608
        %v612 = vld [vmem:[#allocation7] sm:$0xf]
        %v613 = vld [vmem:[#allocation7 + $0x4] sm:$0xf]
        %v614 = vld [vmem:[#allocation7 + $0x8] sm:$0xf]
        %v615 = vld [vmem:[#allocation7 + $0xc] sm:$0xf]
        %v616 = vld [vmem:[#allocation7 + $0x10] sm:$0xf]
        %v617 = vld [vmem:[#allocation7 + $0x14] sm:$0xf]
        %v618 = vld [vmem:[#allocation7 + $0x18] sm:$0xf]
        %v619 = vld [vmem:[#allocation7 + $0x1c] sm:$0xf]
        %v620 = vld [vmem:[#allocation7 + $0x20] sm:$0xf]
        %v621 = vld [vmem:[#allocation7 + $0x24] sm:$0xf]
        %v622 = vld [vmem:[#allocation7 + $0x28] sm:$0xf]
        %v623 = vld [vmem:[#allocation7 + $0x2c] sm:$0xf]
        %v624 = vld [vmem:[#allocation7 + $0x30] sm:$0xf]
        %v625 = vld [vmem:[#allocation7 + $0x34] sm:$0xf]
        %v626 = vld [vmem:[#allocation7 + $0x38] sm:$0xf]
        %v627 = vld [vmem:[#allocation7 + $0x3c] sm:$0xf]
        %vm628 = vcmask 130048
        %v630 = vsel %vm628, %v610, 0
        %632 = vmatprep.subr.bf16.mxu0 0
        %633 = vmatpush1.bf16.msra.mxu0 %v611
        %634 = vmatprep.subr.bf16.mxu0 0
        %635 = vmatpush1.bf16.msra.mxu0 0
        %636 = vmatprep.subr.bf16.mxu0 0
        %637 = vmatpush1.bf16.msra.mxu0 0
        %638 = vmatprep.subr.bf16.mxu0 0
        %639 = vmatpush1.bf16.msra.mxu0 0
        %640 = vmatprep.subr.bf16.mxu0 0
        %641 = vmatpush1.bf16.msra.mxu0 0
        %642 = vmatprep.subr.bf16.mxu0 0
        %643 = vmatpush1.bf16.msra.mxu0 0
        %644 = vmatprep.subr.bf16.mxu0 0
        %645 = vmatpush1.bf16.msra.mxu0 0
        %646 = vmatprep.subr.bf16.mxu0 0
        %647 = vmatpush1.bf16.msra.mxu0 0
        %648 = vmatprep.subr.bf16.mxu0 0
        %649 = vmatpush1.bf16.msra.mxu0 0
        %650 = vmatprep.subr.bf16.mxu0 0
        %651 = vmatpush1.bf16.msra.mxu0 0
        %652 = vmatprep.subr.bf16.mxu0 0
        %653 = vmatpush1.bf16.msra.mxu0 0
        %654 = vmatprep.subr.bf16.mxu0 0
        %655 = vmatpush1.bf16.msra.mxu0 0
        %656 = vmatprep.subr.bf16.mxu0 0
        %657 = vmatpush1.bf16.msra.mxu0 0
        %658 = vmatprep.subr.bf16.mxu0 0
        %659 = vmatpush1.bf16.msra.mxu0 0
        %660 = vmatprep.subr.bf16.mxu0 0
        %661 = vmatpush1.bf16.msra.mxu0 0
        %662 = vmatprep.subr.bf16.mxu0 0
        %663 = vmatpush1.bf16.msra.mxu0 0
        %664 = vmatprep.mubr.bf16.mxu0 0
        %665 = vmatmul.mubr.bf16.gmra.mrb[0].mxu0 %v630
        %v666 = vpop.f32.mrb[0].mxu0
        %v667 = vadd.f32 %v542, %v666
        %v668 = vpop.f32.mrb[0].mxu0
        %v669 = vpop.f32.mrb[0].mxu0
        %v670 = vpop.f32.mrb[0].mxu0
        %671 = vdwg.mxu0
        %v672 = vld [vmem:[%s6] sm:$0x1]
        %v673 = vld [vmem:[%s7] sm:$0x1]
        %v674 = vpack.c.bf16 %v667, %v667
        %v691 = vunpack.c.l.b16 %v612
        %v692 = vunpack.c.l.b16 %v613
        %v693 = vunpack.c.l.b16 %v614
        %v694 = vunpack.c.l.b16 %v615
        %v695 = vunpack.c.l.b16 %v616
        %v696 = vunpack.c.l.b16 %v617
        %v697 = vunpack.c.l.b16 %v618
        %v698 = vunpack.c.l.b16 %v619
        %v699 = vunpack.c.l.b16 %v620
        %v700 = vunpack.c.l.b16 %v621
        %v701 = vunpack.c.l.b16 %v622
        %v702 = vunpack.c.l.b16 %v623
        %v703 = vunpack.c.l.b16 %v624
        %v704 = vunpack.c.l.b16 %v625
        %v705 = vunpack.c.l.b16 %v626
        %v706 = vunpack.c.l.b16 %v627
        %v707 = vpack.c.b16 %v692, %v691
        %v708 = vpack.c.b16 %v694, %v693
        %v709 = vpack.c.b16 %v696, %v695
        %v710 = vpack.c.b16 %v698, %v697
        %v711 = vpack.c.b16 %v700, %v699
        %v712 = vpack.c.b16 %v702, %v701
        %v713 = vpack.c.b16 %v704, %v703
        %v714 = vpack.c.b16 %v706, %v705
        %723 = vmatprep.subr.bf16.mxu0 0
        %724 = vmatpush1.bf16.msra.mxu0 %v707
        %725 = vmatprep.subr.bf16.mxu0 0
        %726 = vmatpush1.bf16.msra.mxu0 %v708
        %727 = vmatprep.subr.bf16.mxu0 0
        %728 = vmatpush1.bf16.msra.mxu0 %v709
        %729 = vmatprep.subr.bf16.mxu0 0
        %730 = vmatpush1.bf16.msra.mxu0 %v710
        %731 = vmatprep.subr.bf16.mxu0 0
        %732 = vmatpush1.bf16.msra.mxu0 %v711
        %733 = vmatprep.subr.bf16.mxu0 0
        %734 = vmatpush1.bf16.msra.mxu0 %v712
        %735 = vmatprep.subr.bf16.mxu0 0
        %736 = vmatpush1.bf16.msra.mxu0 %v713
        %737 = vmatprep.subr.bf16.mxu0 0
        %738 = vmatpush1.bf16.msra.mxu0 %v714
        %739 = vmatprep.subr.bf16.mxu0 0
        %740 = vmatpush1.bf16.msra.mxu0 0
        %741 = vmatprep.subr.bf16.mxu0 0
        %742 = vmatpush1.bf16.msra.mxu0 0
        %743 = vmatprep.subr.bf16.mxu0 0
        %744 = vmatpush1.bf16.msra.mxu0 0
        %745 = vmatprep.subr.bf16.mxu0 0
        %746 = vmatpush1.bf16.msra.mxu0 0
        %747 = vmatprep.subr.bf16.mxu0 0
        %748 = vmatpush1.bf16.msra.mxu0 0
        %749 = vmatprep.subr.bf16.mxu0 0
        %750 = vmatpush1.bf16.msra.mxu0 0
        %751 = vmatprep.subr.bf16.mxu0 0
        %752 = vmatpush1.bf16.msra.mxu0 0
        %753 = vmatprep.subr.bf16.mxu0 0
        %754 = vmatpush1.bf16.msra.mxu0 0
        %755 = vmatprep.mubr.bf16.mxu0 0
        %756 = vmatmul.mubr.bf16.gmra.mrb[0].mxu0 %v674
        %v757 = vpop.f32.mrb[0].mxu0
        %v758 = vadd.f32 0.0, %v757
        %v759 = vpop.f32.mrb[0].mxu0
        %v760 = vpop.f32.mrb[0].mxu0
        %v761 = vpop.f32.mrb[0].mxu0
        %762 = vdwg.mxu0
        %v763 = vsub.f32 %v667, %v758
        %v764 = vmul.f32 %v763, %v763
        %v765 = vpack.c.bf16 %v764, %v764
        %766 = vmatprep.subr.bf16.mxu0 0
        %767 = vmatpush1.bf16.msra.mxu0 %v707
        %768 = vmatprep.subr.bf16.mxu0 0
        %769 = vmatpush1.bf16.msra.mxu0 %v708
        %770 = vmatprep.subr.bf16.mxu0 0
        %771 = vmatpush1.bf16.msra.mxu0 %v709
        %772 = vmatprep.subr.bf16.mxu0 0
        %773 = vmatpush1.bf16.msra.mxu0 %v710
        %774 = vmatprep.subr.bf16.mxu0 0
        %775 = vmatpush1.bf16.msra.mxu0 %v711
        %776 = vmatprep.subr.bf16.mxu0 0
        %777 = vmatpush1.bf16.msra.mxu0 %v712
        %778 = vmatprep.subr.bf16.mxu0 0
        %779 = vmatpush1.bf16.msra.mxu0 %v713
        %780 = vmatprep.subr.bf16.mxu0 0
        %781 = vmatpush1.bf16.msra.mxu0 %v714
        %782 = vmatprep.subr.bf16.mxu0 0
        %783 = vmatpush1.bf16.msra.mxu0 0
        %784 = vmatprep.subr.bf16.mxu0 0
        %785 = vmatpush1.bf16.msra.mxu0 0
        %786 = vmatprep.subr.bf16.mxu0 0
        %787 = vmatpush1.bf16.msra.mxu0 0
        %788 = vmatprep.subr.bf16.mxu0 0
        %789 = vmatpush1.bf16.msra.mxu0 0
        %790 = vmatprep.subr.bf16.mxu0 0
        %791 = vmatpush1.bf16.msra.mxu0 0
        %792 = vmatprep.subr.bf16.mxu0 0
        %793 = vmatpush1.bf16.msra.mxu0 0
        %794 = vmatprep.subr.bf16.mxu0 0
        %795 = vmatpush1.bf16.msra.mxu0 0
        %796 = vmatprep.subr.bf16.mxu0 0
        %797 = vmatpush1.bf16.msra.mxu0 0
        %798 = vmatprep.mubr.bf16.mxu0 0
        %799 = vmatmul.mubr.bf16.gmra.mrb[0].mxu0 %v765
        %v800 = vpop.f32.mrb[0].mxu0
        %v801 = vadd.f32 1e-12, %v800
        %v802 = vpop.f32.mrb[0].mxu0
        %v803 = vpop.f32.mrb[0].mxu0
        %v804 = vpop.f32.mrb[0].mxu0
        %805 = vdwg.mxu0
        %v806 = vrsqrt.pop %v801
        %v807 = vmul.f32 %v763, %v806
        %v809 = vlaneseq
        %v810 = vshrl.u32 %v809, 7
        %v811 = vsub.s32 0, %v810
        %v812 = vrot.slane %v672, %v811
        %v814 = vmul.f32 %v807, %v812
        %v816 = vlaneseq
        %v817 = vshrl.u32 %v816, 7
        %v818 = vsub.s32 0, %v817
        %v819 = vrot.slane %v673, %v818
        %v821 = vadd.f32 %v814, %v819
        %v822 = vpack.c.bf16 %v821, %v821
        %v823 = vld [vmem:[#allocation8] sm:$0xff]
        %v824 = vld [vmem:[#allocation8 + $0x8] sm:$0xff]
        %v825 = vld [vmem:[#allocation8 + $0x10] sm:$0xff]
        %v826 = vld [vmem:[#allocation8 + $0x18] sm:$0xff]
        %v827 = vld [vmem:[#allocation8 + $0x20] sm:$0xff]
        %v828 = vld [vmem:[#allocation8 + $0x28] sm:$0xff]
        %v829 = vld [vmem:[#allocation8 + $0x30] sm:$0xff]
        %v830 = vld [vmem:[#allocation8 + $0x38] sm:$0xff]
        %v831 = vld [vmem:[#allocation8 + $0x40] sm:$0xff]
        %v832 = vld [vmem:[#allocation8 + $0x48] sm:$0xff]
        %v833 = vld [vmem:[#allocation8 + $0x50] sm:$0xff]
        %v834 = vld [vmem:[#allocation8 + $0x58] sm:$0xff]
        %v835 = vld [vmem:[#allocation8 + $0x60] sm:$0xff]
        %v836 = vld [vmem:[#allocation8 + $0x68] sm:$0xff]
        %v837 = vld [vmem:[#allocation8 + $0x70] sm:$0xff]
        %v838 = vld [vmem:[#allocation8 + $0x78] sm:$0xff]
        %v839 = vld [vmem:[#allocation8 + $0x80] sm:$0xff]
        %v840 = vld [vmem:[#allocation8 + $0x88] sm:$0xff]
        %v841 = vld [vmem:[#allocation8 + $0x90] sm:$0xff]
        %v842 = vld [vmem:[#allocation8 + $0x98] sm:$0xff]
        %v843 = vld [vmem:[#allocation8 + $0xa0] sm:$0xff]
        %v844 = vld [vmem:[#allocation8 + $0xa8] sm:$0xff]
        %v845 = vld [vmem:[#allocation8 + $0xb0] sm:$0xff]
        %v846 = vld [vmem:[#allocation8 + $0xb8] sm:$0xff]
        %v847 = vld [vmem:[#allocation8 + $0xc0] sm:$0xff]
        %v848 = vld [vmem:[#allocation8 + $0xc8] sm:$0xff]
        %v849 = vld [vmem:[#allocation8 + $0xd0] sm:$0xff]
        %v850 = vld [vmem:[#allocation8 + $0xd8] sm:$0xff]
        %v851 = vld [vmem:[#allocation8 + $0xe0] sm:$0xff]
        %v852 = vld [vmem:[#allocation8 + $0xe8] sm:$0xff]
        %v853 = vld [vmem:[#allocation8 + $0xf0] sm:$0xff]
        %v854 = vld [vmem:[#allocation8 + $0xf8] sm:$0xff]
        %v855 = vld [vmem:[%s9] sm:$0xf]
        %v857 = vlaneseq
        %v858 = vshrl.u32 %v857, 7
        %v859 = vsub.s32 0, %v858
        %v860 = vrot.slane %v855, %v859
        %v861 = vlaneseq
        %v862 = vshrl.u32 %v861, 7
        %v863 = vsub.s32 1, %v862
        %v864 = vrot.slane %v855, %v863
        %v865 = vlaneseq
        %v866 = vshrl.u32 %v865, 7
        %v867 = vsub.s32 2, %v866
        %v868 = vrot.slane %v855, %v867
        %v869 = vlaneseq
        %v870 = vshrl.u32 %v869, 7
        %v871 = vsub.s32 3, %v870
        %v872 = vrot.slane %v855, %v871
        %v909 = vunpack.c.l.b16 %v823
        %v910 = vunpack.c.h.b16 %v823
        %v911 = vunpack.c.l.b16 %v824
        %v912 = vunpack.c.h.b16 %v824
        %v913 = vunpack.c.l.b16 %v825
        %v914 = vunpack.c.h.b16 %v825
        %v915 = vunpack.c.l.b16 %v826
        %v916 = vunpack.c.h.b16 %v826
        %v917 = vunpack.c.l.b16 %v827
        %v918 = vunpack.c.h.b16 %v827
        %v919 = vunpack.c.l.b16 %v828
        %v920 = vunpack.c.h.b16 %v828
        %v921 = vunpack.c.l.b16 %v829
        %v922 = vunpack.c.h.b16 %v829
        %v923 = vunpack.c.l.b16 %v830
        %v924 = vunpack.c.h.b16 %v830
        %v925 = vunpack.c.l.b16 %v831
        %v926 = vunpack.c.h.b16 %v831
        %v927 = vunpack.c.l.b16 %v832
        %v928 = vunpack.c.h.b16 %v832
        %v929 = vunpack.c.l.b16 %v833
        %v930 = vunpack.c.h.b16 %v833
        %v931 = vunpack.c.l.b16 %v834
        %v932 = vunpack.c.h.b16 %v834
        %v933 = vunpack.c.l.b16 %v835
        %v934 = vunpack.c.h.b16 %v835
        %v935 = vunpack.c.l.b16 %v836
        %v936 = vunpack.c.h.b16 %v836
        %v937 = vunpack.c.l.b16 %v837
        %v938 = vunpack.c.h.b16 %v837
        %v939 = vunpack.c.l.b16 %v838
        %v940 = vunpack.c.h.b16 %v838
        %v941 = vunpack.c.l.b16 %v839
        %v942 = vunpack.c.h.b16 %v839
        %v943 = vunpack.c.l.b16 %v840
        %v944 = vunpack.c.h.b16 %v840
        %v945 = vunpack.c.l.b16 %v841
        %v946 = vunpack.c.h.b16 %v841
        %v947 = vunpack.c.l.b16 %v842
        %v948 = vunpack.c.h.b16 %v842
        %v949 = vunpack.c.l.b16 %v843
        %v950 = vunpack.c.h.b16 %v843
        %v951 = vunpack.c.l.b16 %v844
        %v952 = vunpack.c.h.b16 %v844
        %v953 = vunpack.c.l.b16 %v845
        %v954 = vunpack.c.h.b16 %v845
        %v955 = vunpack.c.l.b16 %v846
        %v956 = vunpack.c.h.b16 %v846
        %v957 = vunpack.c.l.b16 %v847
        %v958 = vunpack.c.h.b16 %v847
        %v959 = vunpack.c.l.b16 %v848
        %v960 = vunpack.c.h.b16 %v848
        %v961 = vunpack.c.l.b16 %v849
        %v962 = vunpack.c.h.b16 %v849
        %v963 = vunpack.c.l.b16 %v850
        %v964 = vunpack.c.h.b16 %v850
        %v965 = vunpack.c.l.b16 %v851
        %v966 = vunpack.c.h.b16 %v851
        %v967 = vunpack.c.l.b16 %v852
        %v968 = vunpack.c.h.b16 %v852
        %v969 = vunpack.c.l.b16 %v853
        %v970 = vunpack.c.h.b16 %v853
        %v971 = vunpack.c.l.b16 %v854
        %v972 = vunpack.c.h.b16 %v854
        %v973 = vpack.c.b16 %v913, %v909
        %v974 = vpack.c.b16 %v914, %v910
        %v975 = vpack.c.b16 %v915, %v911
        %v976 = vpack.c.b16 %v916, %v912
        %v977 = vpack.c.b16 %v921, %v917
        %v978 = vpack.c.b16 %v922, %v918
        %v979 = vpack.c.b16 %v923, %v919
        %v980 = vpack.c.b16 %v924, %v920
        %v981 = vpack.c.b16 %v929, %v925
        %v982 = vpack.c.b16 %v930, %v926
        %v983 = vpack.c.b16 %v931, %v927
        %v984 = vpack.c.b16 %v932, %v928
        %v985 = vpack.c.b16 %v937, %v933
        %v986 = vpack.c.b16 %v938, %v934
        %v987 = vpack.c.b16 %v939, %v935
        %v988 = vpack.c.b16 %v940, %v936
        %v989 = vpack.c.b16 %v945, %v941
        %v990 = vpack.c.b16 %v946, %v942
        %v991 = vpack.c.b16 %v947, %v943
        %v992 = vpack.c.b16 %v948, %v944
        %v993 = vpack.c.b16 %v953, %v949
        %v994 = vpack.c.b16 %v954, %v950
        %v995 = vpack.c.b16 %v955, %v951
        %v996 = vpack.c.b16 %v956, %v952
        %v997 = vpack.c.b16 %v961, %v957
        %v998 = vpack.c.b16 %v962, %v958
        %v999 = vpack.c.b16 %v963, %v959
        %v1000 = vpack.c.b16 %v964, %v960
        %v1001 = vpack.c.b16 %v969, %v965
        %v1002 = vpack.c.b16 %v970, %v966
        %v1003 = vpack.c.b16 %v971, %v967
        %v1004 = vpack.c.b16 %v972, %v968
        %1037 = vmatprep.subr.bf16.mxu0 %v974
        %1038 = vmatpush1.bf16.msra.mxu0 %v973
        %1039 = vmatprep.subr.bf16.mxu0 %v978
        %1040 = vmatpush1.bf16.msra.mxu0 %v977
        %1041 = vmatprep.subr.bf16.mxu0 %v982
        %1042 = vmatpush1.bf16.msra.mxu0 %v981
        %1043 = vmatprep.subr.bf16.mxu0 %v986
        %1044 = vmatpush1.bf16.msra.mxu0 %v985
        %1045 = vmatprep.subr.bf16.mxu0 %v990
        %1046 = vmatpush1.bf16.msra.mxu0 %v989
        %1047 = vmatprep.subr.bf16.mxu0 %v994
        %1048 = vmatpush1.bf16.msra.mxu0 %v993
        %1049 = vmatprep.subr.bf16.mxu0 %v998
        %1050 = vmatpush1.bf16.msra.mxu0 %v997
        %1051 = vmatprep.subr.bf16.mxu0 %v1002
        %1052 = vmatpush1.bf16.msra.mxu0 %v1001
        %1053 = vmatprep.subr.bf16.mxu0 0
        %1054 = vmatpush1.bf16.msra.mxu0 0
        %1055 = vmatprep.subr.bf16.mxu0 0
        %1056 = vmatpush1.bf16.msra.mxu0 0
        %1057 = vmatprep.subr.bf16.mxu0 0
        %1058 = vmatpush1.bf16.msra.mxu0 0
        %1059 = vmatprep.subr.bf16.mxu0 0
        %1060 = vmatpush1.bf16.msra.mxu0 0
        %1061 = vmatprep.subr.bf16.mxu0 0
        %1062 = vmatpush1.bf16.msra.mxu0 0
        %1063 = vmatprep.subr.bf16.mxu0 0
        %1064 = vmatpush1.bf16.msra.mxu0 0
        %1065 = vmatprep.subr.bf16.mxu0 0
        %1066 = vmatpush1.bf16.msra.mxu0 0
        %1067 = vmatprep.subr.bf16.mxu0 0
        %1068 = vmatpush1.bf16.msra.mxu0 0
        %1069 = vmatprep.mubr.bf16.mxu0 0
        %1070 = vmatmul.mubr.bf16.gmra.mrb[0].mxu0 %v822
        %v1071 = vpop.f32.mrb[0].mxu0
        %v1072 = vadd.f32 %v860, %v1071
        %v1073 = vpop.f32.mrb[0].mxu0
        %v1074 = vadd.f32 %v864, %v1073
        %v1075 = vpop.f32.mrb[0].mxu0
        %v1076 = vpop.f32.mrb[0].mxu0
        %1077 = vdwg.mxu0
        %1078 = vmatprep.subr.bf16.mxu0 %v976
        %1079 = vmatpush1.bf16.msra.mxu0 %v975
        %1080 = vmatprep.subr.bf16.mxu0 %v980
        %1081 = vmatpush1.bf16.msra.mxu0 %v979
        %1082 = vmatprep.subr.bf16.mxu0 %v984
        %1083 = vmatpush1.bf16.msra.mxu0 %v983
        %1084 = vmatprep.subr.bf16.mxu0 %v988
        %1085 = vmatpush1.bf16.msra.mxu0 %v987
        %1086 = vmatprep.subr.bf16.mxu0 %v992
        %1087 = vmatpush1.bf16.msra.mxu0 %v991
        %1088 = vmatprep.subr.bf16.mxu0 %v996
        %1089 = vmatpush1.bf16.msra.mxu0 %v995
        %1090 = vmatprep.subr.bf16.mxu0 %v1000
        %1091 = vmatpush1.bf16.msra.mxu0 %v999
        %1092 = vmatprep.subr.bf16.mxu0 %v1004
        %1093 = vmatpush1.bf16.msra.mxu0 %v1003
        %1094 = vmatprep.subr.bf16.mxu0 0
        %1095 = vmatpush1.bf16.msra.mxu0 0
        %1096 = vmatprep.subr.bf16.mxu0 0
        %1097 = vmatpush1.bf16.msra.mxu0 0
        %1098 = vmatprep.subr.bf16.mxu0 0
        %1099 = vmatpush1.bf16.msra.mxu0 0
        %1100 = vmatprep.subr.bf16.mxu0 0
        %1101 = vmatpush1.bf16.msra.mxu0 0
        %1102 = vmatprep.subr.bf16.mxu0 0
        %1103 = vmatpush1.bf16.msra.mxu0 0
        %1104 = vmatprep.subr.bf16.mxu0 0
        %1105 = vmatpush1.bf16.msra.mxu0 0
        %1106 = vmatprep.subr.bf16.mxu0 0
        %1107 = vmatpush1.bf16.msra.mxu0 0
        %1108 = vmatprep.subr.bf16.mxu0 0
        %1109 = vmatpush1.bf16.msra.mxu0 0
        %1110 = vmatprep.mubr.bf16.mxu0 0
        %1111 = vmatmul.mubr.bf16.gmra.mrb[0].mxu0 %v822
        %v1112 = vpop.f32.mrb[0].mxu0
        %v1113 = vadd.f32 %v868, %v1112
        %v1114 = vpop.f32.mrb[0].mxu0
        %v1115 = vadd.f32 %v872, %v1114
        %v1116 = vpop.f32.mrb[0].mxu0
        %v1117 = vpop.f32.mrb[0].mxu0
        %1118 = vdwg.mxu0
        %v1119 = vmul.f32 %v1072, 0.5
        %v1120 = vmul.f32 %v1074, 0.5
        %v1121 = vmul.f32 %v1113, 0.5
        %v1122 = vmul.f32 %v1115, 0.5
        %v1123 = vmul.f32 %v1072, 0.044715
        %v1124 = vmul.f32 %v1074, 0.044715
        %v1125 = vmul.f32 %v1113, 0.044715
        %v1126 = vmul.f32 %v1115, 0.044715
        %v1127 = vmul.f32 %v1123, %v1072
        %v1128 = vmul.f32 %v1124, %v1074
        %v1129 = vmul.f32 %v1125, %v1113
        %v1130 = vmul.f32 %v1126, %v1115
        %v1131 = vmul.f32 %v1127, %v1072
        %v1132 = vmul.f32 %v1128, %v1074
        %v1133 = vmul.f32 %v1129, %v1113
        %v1134 = vmul.f32 %v1130, %v1115
        %v1135 = vadd.f32 %v1072, %v1131
        %v1136 = vadd.f32 %v1074, %v1132
        %v1137 = vadd.f32 %v1113, %v1133
        %v1138 = vadd.f32 %v1115, %v1134
        %v1139 = vmul.f32 %v1135, 0.7978846
        %v1140 = vmul.f32 %v1136, 0.7978846
        %v1141 = vmul.f32 %v1137, 0.7978846
        %v1142 = vmul.f32 %v1138, 0.7978846
        %v1143 = vtanh.pop %v1139
        %v1144 = vtanh.pop %v1140
        %v1145 = vtanh.pop %v1141
        %v1146 = vtanh.pop %v1142
        %v1147 = vadd.f32 %v1143, 1.0
        %v1148 = vadd.f32 %v1144, 1.0
        %v1149 = vadd.f32 %v1145, 1.0
        %v1150 = vadd.f32 %v1146, 1.0
        %v1151 = vmul.f32 %v1119, %v1147
        %v1152 = vmul.f32 %v1120, %v1148
        %v1153 = vmul.f32 %v1121, %v1149
        %v1154 = vmul.f32 %v1122, %v1150
        %v1155 = vpack.c.bf16 %v1151, %v1151
        %v1156 = vpack.c.bf16 %v1152, %v1152
        %v1157 = vpack.c.bf16 %v1153, %v1153
        %v1158 = vpack.c.bf16 %v1154, %v1154
        %v1159 = vld [vmem:[#allocation10] sm:$0xf]
        %v1160 = vld [vmem:[#allocation10 + $0x4] sm:$0xf]
        %v1161 = vld [vmem:[#allocation10 + $0x8] sm:$0xf]
        %v1162 = vld [vmem:[#allocation10 + $0xc] sm:$0xf]
        %v1163 = vld [vmem:[#allocation10 + $0x10] sm:$0xf]
        %v1164 = vld [vmem:[#allocation10 + $0x14] sm:$0xf]
        %v1165 = vld [vmem:[#allocation10 + $0x18] sm:$0xf]
        %v1166 = vld [vmem:[#allocation10 + $0x1c] sm:$0xf]
        %v1167 = vld [vmem:[#allocation10 + $0x20] sm:$0xf]
        %v1168 = vld [vmem:[#allocation10 + $0x24] sm:$0xf]
        %v1169 = vld [vmem:[#allocation10 + $0x28] sm:$0xf]
        %v1170 = vld [vmem:[#allocation10 + $0x2c] sm:$0xf]
        %v1171 = vld [vmem:[#allocation10 + $0x30] sm:$0xf]
        %v1172 = vld [vmem:[#allocation10 + $0x34] sm:$0xf]
        %v1173 = vld [vmem:[#allocation10 + $0x38] sm:$0xf]
        %v1174 = vld [vmem:[#allocation10 + $0x3c] sm:$0xf]
        %v1175 = vld [vmem:[#allocation10 + $0x40] sm:$0xf]
        %v1176 = vld [vmem:[#allocation10 + $0x44] sm:$0xf]
        %v1177 = vld [vmem:[#allocation10 + $0x48] sm:$0xf]
        %v1178 = vld [vmem:[#allocation10 + $0x4c] sm:$0xf]
        %v1179 = vld [vmem:[#allocation10 + $0x50] sm:$0xf]
        %v1180 = vld [vmem:[#allocation10 + $0x54] sm:$0xf]
        %v1181 = vld [vmem:[#allocation10 + $0x58] sm:$0xf]
        %v1182 = vld [vmem:[#allocation10 + $0x5c] sm:$0xf]
        %v1183 = vld [vmem:[#allocation10 + $0x60] sm:$0xf]
        %v1184 = vld [vmem:[#allocation10 + $0x64] sm:$0xf]
        %v1185 = vld [vmem:[#allocation10 + $0x68] sm:$0xf]
        %v1186 = vld [vmem:[#allocation10 + $0x6c] sm:$0xf]
        %v1187 = vld [vmem:[#allocation10 + $0x70] sm:$0xf]
        %v1188 = vld [vmem:[#allocation10 + $0x74] sm:$0xf]
        %v1189 = vld [vmem:[#allocation10 + $0x78] sm:$0xf]
        %v1190 = vld [vmem:[#allocation10 + $0x7c] sm:$0xf]
        %v1191 = vld [vmem:[#allocation10 + $0x80] sm:$0xf]
        %v1192 = vld [vmem:[#allocation10 + $0x84] sm:$0xf]
        %v1193 = vld [vmem:[#allocation10 + $0x88] sm:$0xf]
        %v1194 = vld [vmem:[#allocation10 + $0x8c] sm:$0xf]
        %v1195 = vld [vmem:[#allocation10 + $0x90] sm:$0xf]
        %v1196 = vld [vmem:[#allocation10 + $0x94] sm:$0xf]
        %v1197 = vld [vmem:[#allocation10 + $0x98] sm:$0xf]
        %v1198 = vld [vmem:[#allocation10 + $0x9c] sm:$0xf]
        %v1199 = vld [vmem:[#allocation10 + $0xa0] sm:$0xf]
        %v1200 = vld [vmem:[#allocation10 + $0xa4] sm:$0xf]
        %v1201 = vld [vmem:[#allocation10 + $0xa8] sm:$0xf]
        %v1202 = vld [vmem:[#allocation10 + $0xac] sm:$0xf]
        %v1203 = vld [vmem:[#allocation10 + $0xb0] sm:$0xf]
        %v1204 = vld [vmem:[#allocation10 + $0xb4] sm:$0xf]
        %v1205 = vld [vmem:[#allocation10 + $0xb8] sm:$0xf]
        %v1206 = vld [vmem:[#allocation10 + $0xbc] sm:$0xf]
        %v1207 = vld [vmem:[#allocation10 + $0xc0] sm:$0xf]
        %v1208 = vld [vmem:[#allocation10 + $0xc4] sm:$0xf]
        %v1209 = vld [vmem:[#allocation10 + $0xc8] sm:$0xf]
        %v1210 = vld [vmem:[#allocation10 + $0xcc] sm:$0xf]
        %v1211 = vld [vmem:[#allocation10 + $0xd0] sm:$0xf]
        %v1212 = vld [vmem:[#allocation10 + $0xd4] sm:$0xf]
        %v1213 = vld [vmem:[#allocation10 + $0xd8] sm:$0xf]
        %v1214 = vld [vmem:[#allocation10 + $0xdc] sm:$0xf]
        %v1215 = vld [vmem:[#allocation10 + $0xe0] sm:$0xf]
        %v1216 = vld [vmem:[#allocation10 + $0xe4] sm:$0xf]
        %v1217 = vld [vmem:[#allocation10 + $0xe8] sm:$0xf]
        %v1218 = vld [vmem:[#allocation10 + $0xec] sm:$0xf]
        %v1219 = vld [vmem:[#allocation10 + $0xf0] sm:$0xf]
        %v1220 = vld [vmem:[#allocation10 + $0xf4] sm:$0xf]
        %v1221 = vld [vmem:[#allocation10 + $0xf8] sm:$0xf]
        %v1222 = vld [vmem:[#allocation10 + $0xfc] sm:$0xf]
        %v1223 = vld [vmem:[%s11] sm:$0x1]
        %v1225 = vlaneseq
        %v1226 = vshrl.u32 %v1225, 7
        %v1227 = vsub.s32 0, %v1226
        %v1228 = vrot.slane %v1223, %v1227
        %v1294 = vunpack.c.l.b16 %v1159
        %v1295 = vunpack.c.l.b16 %v1160
        %v1296 = vunpack.c.l.b16 %v1161
        %v1297 = vunpack.c.l.b16 %v1162
        %v1298 = vunpack.c.l.b16 %v1163
        %v1299 = vunpack.c.l.b16 %v1164
        %v1300 = vunpack.c.l.b16 %v1165
        %v1301 = vunpack.c.l.b16 %v1166
        %v1302 = vunpack.c.l.b16 %v1167
        %v1303 = vunpack.c.l.b16 %v1168
        %v1304 = vunpack.c.l.b16 %v1169
        %v1305 = vunpack.c.l.b16 %v1170
        %v1306 = vunpack.c.l.b16 %v1171
        %v1307 = vunpack.c.l.b16 %v1172
        %v1308 = vunpack.c.l.b16 %v1173
        %v1309 = vunpack.c.l.b16 %v1174
        %v1310 = vunpack.c.l.b16 %v1175
        %v1311 = vunpack.c.l.b16 %v1176
        %v1312 = vunpack.c.l.b16 %v1177
        %v1313 = vunpack.c.l.b16 %v1178
        %v1314 = vunpack.c.l.b16 %v1179
        %v1315 = vunpack.c.l.b16 %v1180
        %v1316 = vunpack.c.l.b16 %v1181
        %v1317 = vunpack.c.l.b16 %v1182
        %v1318 = vunpack.c.l.b16 %v1183
        %v1319 = vunpack.c.l.b16 %v1184
        %v1320 = vunpack.c.l.b16 %v1185
        %v1321 = vunpack.c.l.b16 %v1186
        %v1322 = vunpack.c.l.b16 %v1187
        %v1323 = vunpack.c.l.b16 %v1188
        %v1324 = vunpack.c.l.b16 %v1189
        %v1325 = vunpack.c.l.b16 %v1190
        %v1326 = vunpack.c.l.b16 %v1191
        %v1327 = vunpack.c.l.b16 %v1192
        %v1328 = vunpack.c.l.b16 %v1193
        %v1329 = vunpack.c.l.b16 %v1194
        %v1330 = vunpack.c.l.b16 %v1195
        %v1331 = vunpack.c.l.b16 %v1196
        %v1332 = vunpack.c.l.b16 %v1197
        %v1333 = vunpack.c.l.b16 %v1198
        %v1334 = vunpack.c.l.b16 %v1199
        %v1335 = vunpack.c.l.b16 %v1200
        %v1336 = vunpack.c.l.b16 %v1201
        %v1337 = vunpack.c.l.b16 %v1202
        %v1338 = vunpack.c.l.b16 %v1203
        %v1339 = vunpack.c.l.b16 %v1204
        %v1340 = vunpack.c.l.b16 %v1205
        %v1341 = vunpack.c.l.b16 %v1206
        %v1342 = vunpack.c.l.b16 %v1207
        %v1343 = vunpack.c.l.b16 %v1208
        %v1344 = vunpack.c.l.b16 %v1209
        %v1345 = vunpack.c.l.b16 %v1210
        %v1346 = vunpack.c.l.b16 %v1211
        %v1347 = vunpack.c.l.b16 %v1212
        %v1348 = vunpack.c.l.b16 %v1213
        %v1349 = vunpack.c.l.b16 %v1214
        %v1350 = vunpack.c.l.b16 %v1215
        %v1351 = vunpack.c.l.b16 %v1216
        %v1352 = vunpack.c.l.b16 %v1217
        %v1353 = vunpack.c.l.b16 %v1218
        %v1354 = vunpack.c.l.b16 %v1219
        %v1355 = vunpack.c.l.b16 %v1220
        %v1356 = vunpack.c.l.b16 %v1221
        %v1357 = vunpack.c.l.b16 %v1222
        %v1358 = vpack.c.b16 %v1295, %v1294
        %v1359 = vpack.c.b16 %v1297, %v1296
        %v1360 = vpack.c.b16 %v1299, %v1298
        %v1361 = vpack.c.b16 %v1301, %v1300
        %v1362 = vpack.c.b16 %v1303, %v1302
        %v1363 = vpack.c.b16 %v1305, %v1304
        %v1364 = vpack.c.b16 %v1307, %v1306
        %v1365 = vpack.c.b16 %v1309, %v1308
        %v1366 = vpack.c.b16 %v1311, %v1310
        %v1367 = vpack.c.b16 %v1313, %v1312
        %v1368 = vpack.c.b16 %v1315, %v1314
        %v1369 = vpack.c.b16 %v1317, %v1316
        %v1370 = vpack.c.b16 %v1319, %v1318
        %v1371 = vpack.c.b16 %v1321, %v1320
        %v1372 = vpack.c.b16 %v1323, %v1322
        %v1373 = vpack.c.b16 %v1325, %v1324
        %v1374 = vpack.c.b16 %v1327, %v1326
        %v1375 = vpack.c.b16 %v1329, %v1328
        %v1376 = vpack.c.b16 %v1331, %v1330
        %v1377 = vpack.c.b16 %v1333, %v1332
        %v1378 = vpack.c.b16 %v1335, %v1334
        %v1379 = vpack.c.b16 %v1337, %v1336
        %v1380 = vpack.c.b16 %v1339, %v1338
        %v1381 = vpack.c.b16 %v1341, %v1340
        %v1382 = vpack.c.b16 %v1343, %v1342
        %v1383 = vpack.c.b16 %v1345, %v1344
        %v1384 = vpack.c.b16 %v1347, %v1346
        %v1385 = vpack.c.b16 %v1349, %v1348
        %v1386 = vpack.c.b16 %v1351, %v1350
        %v1387 = vpack.c.b16 %v1353, %v1352
        %v1388 = vpack.c.b16 %v1355, %v1354
        %v1389 = vpack.c.b16 %v1357, %v1356
        %1422 = vmatprep.subr.bf16.mxu0 0
        %1423 = vmatpush1.bf16.msra.mxu0 %v1358
        %1424 = vmatprep.subr.bf16.mxu0 0
        %1425 = vmatpush1.bf16.msra.mxu0 %v1359
        %1426 = vmatprep.subr.bf16.mxu0 0
        %1427 = vmatpush1.bf16.msra.mxu0 %v1360
        %1428 = vmatprep.subr.bf16.mxu0 0
        %1429 = vmatpush1.bf16.msra.mxu0 %v1361
        %1430 = vmatprep.subr.bf16.mxu0 0
        %1431 = vmatpush1.bf16.msra.mxu0 %v1362
        %1432 = vmatprep.subr.bf16.mxu0 0
        %1433 = vmatpush1.bf16.msra.mxu0 %v1363
        %1434 = vmatprep.subr.bf16.mxu0 0
        %1435 = vmatpush1.bf16.msra.mxu0 %v1364
        %1436 = vmatprep.subr.bf16.mxu0 0
        %1437 = vmatpush1.bf16.msra.mxu0 %v1365
        %1438 = vmatprep.subr.bf16.mxu0 0
        %1439 = vmatpush1.bf16.msra.mxu0 %v1366
        %1440 = vmatprep.subr.bf16.mxu0 0
        %1441 = vmatpush1.bf16.msra.mxu0 %v1367
        %1442 = vmatprep.subr.bf16.mxu0 0
        %1443 = vmatpush1.bf16.msra.mxu0 %v1368
        %1444 = vmatprep.subr.bf16.mxu0 0
        %1445 = vmatpush1.bf16.msra.mxu0 %v1369
        %1446 = vmatprep.subr.bf16.mxu0 0
        %1447 = vmatpush1.bf16.msra.mxu0 %v1370
        %1448 = vmatprep.subr.bf16.mxu0 0
        %1449 = vmatpush1.bf16.msra.mxu0 %v1371
        %1450 = vmatprep.subr.bf16.mxu0 0
        %1451 = vmatpush1.bf16.msra.mxu0 %v1372
        %1452 = vmatprep.subr.bf16.mxu0 0
        %1453 = vmatpush1.bf16.msra.mxu0 %v1373
        %1454 = vmatprep.mubr.bf16.mxu0 %v1156
        %1455 = vmatmul.mubr.bf16.gmra.mrb[0].mxu0 %v1155
        %v1456 = vpop.f32.mrb[0].mxu0
        %v1457 = vadd.f32 %v1228, %v1456
        %v1458 = vpop.f32.mrb[0].mxu0
        %v1459 = vpop.f32.mrb[0].mxu0
        %v1460 = vpop.f32.mrb[0].mxu0
        %1461 = vdwg.mxu0
        %1462 = vmatprep.subr.bf16.mxu0 0
        %1463 = vmatpush1.bf16.msra.mxu0 %v1374
        %1464 = vmatprep.subr.bf16.mxu0 0
        %1465 = vmatpush1.bf16.msra.mxu0 %v1375
        %1466 = vmatprep.subr.bf16.mxu0 0
        %1467 = vmatpush1.bf16.msra.mxu0 %v1376
        %1468 = vmatprep.subr.bf16.mxu0 0
        %1469 = vmatpush1.bf16.msra.mxu0 %v1377
        %1470 = vmatprep.subr.bf16.mxu0 0
        %1471 = vmatpush1.bf16.msra.mxu0 %v1378
        %1472 = vmatprep.subr.bf16.mxu0 0
        %1473 = vmatpush1.bf16.msra.mxu0 %v1379
        %1474 = vmatprep.subr.bf16.mxu0 0
        %1475 = vmatpush1.bf16.msra.mxu0 %v1380
        %1476 = vmatprep.subr.bf16.mxu0 0
        %1477 = vmatpush1.bf16.msra.mxu0 %v1381
        %1478 = vmatprep.subr.bf16.mxu0 0
        %1479 = vmatpush1.bf16.msra.mxu0 %v1382
        %1480 = vmatprep.subr.bf16.mxu0 0
        %1481 = vmatpush1.bf16.msra.mxu0 %v1383
        %1482 = vmatprep.subr.bf16.mxu0 0
        %1483 = vmatpush1.bf16.msra.mxu0 %v1384
        %1484 = vmatprep.subr.bf16.mxu0 0
        %1485 = vmatpush1.bf16.msra.mxu0 %v1385
        %1486 = vmatprep.subr.bf16.mxu0 0
        %1487 = vmatpush1.bf16.msra.mxu0 %v1386
        %1488 = vmatprep.subr.bf16.mxu0 0
        %1489 = vmatpush1.bf16.msra.mxu0 %v1387
        %1490 = vmatprep.subr.bf16.mxu0 0
        %1491 = vmatpush1.bf16.msra.mxu0 %v1388
        %1492 = vmatprep.subr.bf16.mxu0 0
        %1493 = vmatpush1.bf16.msra.mxu0 %v1389
        %1494 = vmatprep.mubr.bf16.mxu0 %v1158
        %1495 = vmatmul.mubr.bf16.gmra.mrb[0].mxu0 %v1157
        %v1496 = vpop.f32.mrb[0].mxu0
        %v1497 = vadd.f32 %v1457, %v1496
        %v1498 = vpop.f32.mrb[0].mxu0
        %v1499 = vpop.f32.mrb[0].mxu0
        %v1500 = vpop.f32.mrb[0].mxu0
        %1501 = vdwg.mxu0
        %v1502 = vadd.f32 %v1497, %v821
        %v1503 = vld [vmem:[%s12] sm:$0x1]
        %v1504 = vld [vmem:[%s13] sm:$0x1]
        %v1505 = vpack.c.bf16 %v1502, %v1502
        %1506 = vmatprep.subr.bf16.mxu0 0
        %1507 = vmatpush1.bf16.msra.mxu0 %v707
        %1508 = vmatprep.subr.bf16.mxu0 0
        %1509 = vmatpush1.bf16.msra.mxu0 %v708
        %1510 = vmatprep.subr.bf16.mxu0 0
        %1511 = vmatpush1.bf16.msra.mxu0 %v709
        %1512 = vmatprep.subr.bf16.mxu0 0
        %1513 = vmatpush1.bf16.msra.mxu0 %v710
        %1514 = vmatprep.subr.bf16.mxu0 0
        %1515 = vmatpush1.bf16.msra.mxu0 %v711
        %1516 = vmatprep.subr.bf16.mxu0 0
        %1517 = vmatpush1.bf16.msra.mxu0 %v712
        %1518 = vmatprep.subr.bf16.mxu0 0
        %1519 = vmatpush1.bf16.msra.mxu0 %v713
        %1520 = vmatprep.subr.bf16.mxu0 0
        %1521 = vmatpush1.bf16.msra.mxu0 %v714
        %1522 = vmatprep.subr.bf16.mxu0 0
        %1523 = vmatpush1.bf16.msra.mxu0 0
        %1524 = vmatprep.subr.bf16.mxu0 0
        %1525 = vmatpush1.bf16.msra.mxu0 0
        %1526 = vmatprep.subr.bf16.mxu0 0
        %1527 = vmatpush1.bf16.msra.mxu0 0
        %1528 = vmatprep.subr.bf16.mxu0 0
        %1529 = vmatpush1.bf16.msra.mxu0 0
        %1530 = vmatprep.subr.bf16.mxu0 0
        %1531 = vmatpush1.bf16.msra.mxu0 0
        %1532 = vmatprep.subr.bf16.mxu0 0
        %1533 = vmatpush1.bf16.msra.mxu0 0
        %1534 = vmatprep.subr.bf16.mxu0 0
        %1535 = vmatpush1.bf16.msra.mxu0 0
        %1536 = vmatprep.subr.bf16.mxu0 0
        %1537 = vmatpush1.bf16.msra.mxu0 0
        %1538 = vmatprep.mubr.bf16.mxu0 0
        %1539 = vmatmul.mubr.bf16.gmra.mrb[0].mxu0 %v1505
        %v1540 = vpop.f32.mrb[0].mxu0
        %v1541 = vadd.f32 0.0, %v1540
        %v1542 = vpop.f32.mrb[0].mxu0
        %v1543 = vpop.f32.mrb[0].mxu0
        %v1544 = vpop.f32.mrb[0].mxu0
        %1545 = vdwg.mxu0
        %v1546 = vsub.f32 %v1502, %v1541
        %v1547 = vmul.f32 %v1546, %v1546
        %v1548 = vpack.c.bf16 %v1547, %v1547
        %1549 = vmatprep.subr.bf16.mxu0 0
        %1550 = vmatpush1.bf16.msra.mxu0 %v707
        %1551 = vmatprep.subr.bf16.mxu0 0
        %1552 = vmatpush1.bf16.msra.mxu0 %v708
        %1553 = vmatprep.subr.bf16.mxu0 0
        %1554 = vmatpush1.bf16.msra.mxu0 %v709
        %1555 = vmatprep.subr.bf16.mxu0 0
        %1556 = vmatpush1.bf16.msra.mxu0 %v710
        %1557 = vmatprep.subr.bf16.mxu0 0
        %1558 = vmatpush1.bf16.msra.mxu0 %v711
        %1559 = vmatprep.subr.bf16.mxu0 0
        %1560 = vmatpush1.bf16.msra.mxu0 %v712
        %1561 = vmatprep.subr.bf16.mxu0 0
        %1562 = vmatpush1.bf16.msra.mxu0 %v713
        %1563 = vmatprep.subr.bf16.mxu0 0
        %1564 = vmatpush1.bf16.msra.mxu0 %v714
        %1565 = vmatprep.subr.bf16.mxu0 0
        %1566 = vmatpush1.bf16.msra.mxu0 0
        %1567 = vmatprep.subr.bf16.mxu0 0
        %1568 = vmatpush1.bf16.msra.mxu0 0
        %1569 = vmatprep.subr.bf16.mxu0 0
        %1570 = vmatpush1.bf16.msra.mxu0 0
        %1571 = vmatprep.subr.bf16.mxu0 0
        %1572 = vmatpush1.bf16.msra.mxu0 0
        %1573 = vmatprep.subr.bf16.mxu0 0
        %1574 = vmatpush1.bf16.msra.mxu0 0
        %1575 = vmatprep.subr.bf16.mxu0 0
        %1576 = vmatpush1.bf16.msra.mxu0 0
        %1577 = vmatprep.subr.bf16.mxu0 0
        %1578 = vmatpush1.bf16.msra.mxu0 0
        %1579 = vmatprep.subr.bf16.mxu0 0
        %1580 = vmatpush1.bf16.msra.mxu0 0
        %1581 = vmatprep.mubr.bf16.mxu0 0
        %1582 = vmatmul.mubr.bf16.gmra.mrb[0].mxu0 %v1548
        %v1583 = vpop.f32.mrb[0].mxu0
        %v1584 = vadd.f32 1e-12, %v1583
        %v1585 = vpop.f32.mrb[0].mxu0
        %v1586 = vpop.f32.mrb[0].mxu0
        %v1587 = vpop.f32.mrb[0].mxu0
        %1588 = vdwg.mxu0
        %v1589 = vrsqrt.pop %v1584
        %v1590 = vmul.f32 %v1546, %v1589
        %v1592 = vlaneseq
        %v1593 = vshrl.u32 %v1592, 7
        %v1594 = vsub.s32 0, %v1593
        %v1595 = vrot.slane %v1503, %v1594
        %v1597 = vmul.f32 %v1590, %v1595
        %v1599 = vlaneseq
        %v1600 = vshrl.u32 %v1599, 7
        %v1601 = vsub.s32 0, %v1600
        %v1602 = vrot.slane %v1504, %v1601
        %v1604 = vadd.f32 %v1597, %v1602
        %1605 = vst [vmem:[%s540] sm:$0xff] %v1604
        %s1606 = sand.u32 %s340, 1
        %s1607 = scalar_lea.sflag [#allocation4], %s1606
        %s1608 = sand.u32 %s340, 1
        %s1609 = smul.addr %s1608, 8
        %s1610 = scalar_lea.vmem [#allocation11], %s1609
        // Predicated region
        $region97: #{tpu_custom_call.1} parent=75 // pred_check
          %p1611 = pneg %p350
        $region98: #{tpu_custom_call.1} parent=75 // pred_check_branch
          %1613 = sbr.rel (%p1611) target = $region100
        $region99: #{tpu_custom_call.1} parent=75 // pred_region
          %s1615 = ssub.s32 128, 128
          %1616 = vsyncadd %s1607, %s1615
          %s1617 = smul.addr %s33, 128
          %s1618 = scalar_lea.hbm %s14, %s1617
          %s1620 = sshll.u32 %s1610, 4
          %s1621 = int_to_ptr.vmem [resolvable:$true] %s1620
          %1623 = dma.vmem_to_hbm [thread:$0]  %s1621, 128, %s1618, %s1607
        $region100: #{tpu_custom_call.1} parent=75 // pred_fallthru
          _
      $region76: #{tpu_custom_call.1} parent=5 // pred_fallthru
        _
      %p1624 = scmp.le.s32.totalorder 2, %s28
      // Predicated region
      $region101: #{tpu_custom_call.1} parent=5 // pred_check
        %p1625 = pneg %p1624
      $region102: #{tpu_custom_call.1} parent=5 // pred_check_branch
        %1627 = sbr.rel (%p1625) target = $region104
      $region103: #{tpu_custom_call.1} parent=5 // pred_region
        %s1628 = ssub.s32 %s28, 2
        // Predicated region
        $region105: #{tpu_custom_call.1} parent=103 // pred_check
          %p1629 = pneg %p356
        $region106: #{tpu_custom_call.1} parent=103 // pred_check_branch
          %1631 = sbr.rel (%p1629) target = $region108
        $region107: #{tpu_custom_call.1} parent=103 // pred_region
          %s1632 = sand.u32 %s341, 1
          %s1633 = scalar_lea.sflag [#allocation4], %s1632
          %s1634 = sand.u32 %s341, 1
          %s1635 = smul.addr %s1634, 8
          %s1636 = scalar_lea.vmem [#allocation11], %s1635
          %1637 = dma.done %s1633, 128
        $region108: #{tpu_custom_call.1} parent=103 // pred_fallthru
          _
      $region104: #{tpu_custom_call.1} parent=5 // pred_fallthru
        _
    $region6: #{tpu_custom_call.1} parent=1 // loop_footer
      %s32 = sadd.s32 1, %s28
    $region7: #{tpu_custom_call.1} parent=1 // loop_footer_branch
      %27 = sbr.rel target = $region3
    $region8: #{tpu_custom_call.1} parent=1 // loop_exit
      _
    %1638 = vsyncpa [#allocation3], 1
    %s1639 = scalar_lea.sflag [#allocation3], 1
    %1640 = vsyncpa %s1639, 1
    %1641 = vsyncpa [#allocation6], 1
    %1642 = vsyncpa [#allocation9], 1
    %1643 = vsyncpa [#allocation4], 1
    %s1644 = scalar_lea.sflag [#allocation4], 1
    %1645 = vsyncpa %s1644, 1

// kernel: tpu_custom_call.1
$region0: #{tpu_custom_call.1}
  #allocation0 [shape = 'u32[]', space=smem, size = 0x4, offset = 0x4, fixed_abs, tag = 'smem constant byte address 0x4 - core index']
  #allocation1 [shape = 'u32[144,128]{1,0:T(1,128)}', space=vmem, size = 0x12000, scoped, tag = 'internal scratch']
  %s0 = inlined_call_operand.hbm [shape: f32[2,8,128], index: 0, kind: input, shape index: {}]
  %s1 = inlined_call_operand.vmem [shape: bf16[16,8], index: 1, kind: input, shape index: {}]
  %s2 = inlined_call_operand.vmem [shape: bf16[8,16], index: 2, kind: input, shape index: {}]
  %s3 = inlined_call_operand.vmem [shape: f32[16,128], index: 3, kind: input, shape index: {}]
  %s4 = inlined_call_operand.hbm [shape: f32[16,128], index: 4, kind: input, shape index: {}]
  %s5 = inlined_call_operand.hbm [shape: bf16[128,128], index: 5, kind: input, shape index: {}]
  %s6 = inlined_call_operand.vmem [shape: f32[1,128], index: 6, kind: input, shape index: {}]
  %s7 = inlined_call_operand.vmem [shape: f32[1,128], index: 7, kind: input, shape index: {}]
  %s8 = inlined_call_operand.hbm [shape: bf16[128,512], index: 8, kind: input, shape index: {}]
  %s9 = inlined_call_operand.vmem [shape: f32[1,512], index: 9, kind: input, shape index: {}]
  %s10 = inlined_call_operand.hbm [shape: bf16[512,128], index: 10, kind: input, shape index: {}]
  %s11 = inlined_call_operand.vmem [shape: f32[1,128], index: 11, kind: input, shape index: {}]
  %s12 = inlined_call_operand.vmem [shape: f32[1,128], index: 12, kind: input, shape index: {}]
  %s13 = inlined_call_operand.vmem [shape: f32[1,128], index: 13, kind: input, shape index: {}]
  %s14 = inlined_call_operand.hbm [shape: f32[2,8,128], index: 14, kind: output, shape index: {}]
  %s15 = sld [smem:[#allocation0]]
  $region109: #{tpu_custom_call.1} parent=0
    _
  %s17 = ssub.s32 1, %s15
  %s18 = scalar_select 0, %s17, %s15
  $region1: #{tpu_custom_call.1} parent=0
    #allocation2 [shape = 'u8[8192]{0}', space=vmem, size = 0x2000, scoped, tag = 'input window, operand 0']
    #allocation3 [shape = 's32[2]{0}', space=sflag, size = 0x8, scoped, tag = 'scoped memory for tpu_custom_call.1']
    #allocation4 [shape = 's32[2]{0}', space=sflag, size = 0x8, scoped, tag = 'scoped memory for tpu_custom_call.1']
    #allocation5 [shape = 'u8[8192]{0}', space=vmem, size = 0x2000, scoped, tag = 'input window, operand 4, single buffered']
    #allocation6 [shape = 's32[1]{0}', space=sflag, size = 0x4, scoped, tag = 'scoped memory for tpu_custom_call.1']
    #allocation7 [shape = 'u8[32768]{0}', space=vmem, size = 0x8000, scoped, tag = 'input window, operand 5, single buffered']
    #allocation8 [shape = 'u8[131072]{0}', space=vmem, size = 0x20000, scoped, tag = 'input window, operand 8, single buffered']
    #allocation9 [shape = 's32[1]{0}', space=sflag, size = 0x4, scoped, tag = 'scoped memory for tpu_custom_call.1']
    #allocation10 [shape = 'u8[131072]{0}', space=vmem, size = 0x20000, scoped, tag = 'input window, operand 10, single buffered']
    #allocation11 [shape = 'u8[8192]{0}', space=vmem, size = 0x2000, scoped, tag = 'output window, operand 0']
    %19 = vsyncpa [#allocation3], 0
    %s20 = scalar_lea.sflag [#allocation3], 1
    %21 = vsyncpa %s20, 0
    %22 = vsyncpa [#allocation6], 0
    %23 = vsyncpa [#allocation9], 0
    %24 = vsyncpa [#allocation4], 0
    %s25 = scalar_lea.sflag [#allocation4], 1
    %26 = vsyncpa %s25, 0
    loop: start=0, step=1, limit=4
    $region2: #{tpu_custom_call.1} parent=1 // loop_pre_header
      _
    $region3: #{tpu_custom_call.1} parent=1 // loop_header
      %s28 = sphi 0, %s32
      %p29 = scmp.ge.s32.totalorder %s28, 4
      %s38 = sphi 0, %s40
      %s41 = sphi 0, %s38
      %s42 = sphi 0, %s41
      %s58 = sphi 0, %s42
      %s62 = sphi 0, %s62
      %s64 = sphi 0, %s62
      %s65 = sphi 0, %s64
      %s79 = sphi 0, %s65
      %s83 = sphi 0, %s83
      %s85 = sphi 0, %s83
      %s86 = sphi 0, %s85
      %s100 = sphi 0, %s86
      %s104 = sphi 0, %s104
      %s106 = sphi 0, %s104
      %s107 = sphi 0, %s106
      %s121 = sphi 0, %s107
      %s125 = sphi 0, %s125
      %s127 = sphi 0, %s125
      %s128 = sphi 0, %s127
      %s142 = sphi 0, %s128
      %s146 = sphi 0, %s146
      %s148 = sphi 0, %s146
      %s149 = sphi 0, %s148
      %s163 = sphi 0, %s149
      %s167 = sphi 0, %s167
      %s169 = sphi 0, %s167
      %s170 = sphi 0, %s169
      %s184 = sphi 0, %s170
      %s188 = sphi 0, %s188
      %s190 = sphi 0, %s188
      %s191 = sphi 0, %s190
      %s205 = sphi 0, %s191
      %s209 = sphi 0, %s209
      %s211 = sphi 0, %s209
      %s212 = sphi 0, %s211
      %s226 = sphi 0, %s212
      %s230 = sphi 0, %s230
      %s232 = sphi 0, %s230
      %s233 = sphi 0, %s232
      %s247 = sphi 0, %s233
      %s251 = sphi 0, %s251
      %s253 = sphi 0, %s251
      %s254 = sphi 0, %s253
      %s268 = sphi 0, %s254
      %s272 = sphi 0, %s272
      %s274 = sphi 0, %s272
      %s275 = sphi 0, %s274
      %s289 = sphi 0, %s275
      %s293 = sphi 0, %s293
      %s295 = sphi 0, %s293
      %s296 = sphi 0, %s295
      %s310 = sphi 0, %s296
      %s314 = sphi 0, %s314
      %s316 = sphi 0, %s314
      %s317 = sphi 0, %s316
      %s331 = sphi 0, %s317
      %s337 = sphi 0, %s339
      %s340 = sphi 0, %s337
      %s341 = sphi 0, %s340
      %s357 = sphi 0, %s341
    $region4: #{tpu_custom_call.1} parent=1 // loop_header_branch
      %31 = sbr.rel (%p29) target = $region8
    $region5: #{tpu_custom_call.1} parent=1 // loop_body
      %s33 = ssub.s32 %s28, 1
      %s34 = ssub.s32 %s28, 2
      %s35 = sadd.s32 %s28, 1
      %s36 = ssub.s32 %s28, %s35
      %p37 = scmp.eq.s32.totalorder %s36, 0
      %s39 = sadd.s32 %s38, 1
      %s40 = scalar_select %p37, %s38, %s39
      %p43 = pneg %p37
      %p44 = scmp.eq.s32.totalorder %s28, 1
      %p45 = por %p43, %p44
      %p46 = scmp.ne.s32.totalorder %s38, %s41
      %p47 = scmp.eq.s32.totalorder %s28, 0
      %p48 = por %p46, %p47
      %p49 = scmp.ne.s32.totalorder %s38, %s41
      %p50 = scmp.eq.s32.totalorder %s33, 1
      %p51 = por %p49, %p50
      %p52 = scmp.ne.s32.totalorder %s41, %s42
      %p53 = scmp.eq.s32.totalorder %s33, 0
      %p54 = por %p52, %p53
      %p55 = scmp.ne.s32.totalorder %s41, %s42
      %p56 = scmp.eq.s32.totalorder %s34, 1
      %p57 = por %p55, %p56
      %p59 = scmp.ne.s32.totalorder %s42, %s58
      %p60 = scmp.eq.s32.totalorder %s34, 0
      %p61 = por %p59, %p60
      %s63 = sadd.s32 %s62, 1
      %p66 = scmp.eq.s32.totalorder %s28, 1
      %p67 = scmp.ne.s32.totalorder %s62, %s64
      %p68 = scmp.eq.s32.totalorder %s28, 0
      %p69 = por %p67, %p68
      %p70 = scmp.ne.s32.totalorder %s62, %s64
      %p71 = scmp.eq.s32.totalorder %s33, 1
      %p72 = por %p70, %p71
      %p73 = scmp.ne.s32.totalorder %s64, %s65
      %p74 = scmp.eq.s32.totalorder %s33, 0
      %p75 = por %p73, %p74
      %p76 = scmp.ne.s32.totalorder %s64, %s65
      %p77 = scmp.eq.s32.totalorder %s34, 1
      %p78 = por %p76, %p77
      %p80 = scmp.ne.s32.totalorder %s65, %s79
      %p81 = scmp.eq.s32.totalorder %s34, 0
      %p82 = por %p80, %p81
      %s84 = sadd.s32 %s83, 1
      %p87 = scmp.eq.s32.totalorder %s28, 1
      %p88 = scmp.ne.s32.totalorder %s83, %s85
      %p89 = scmp.eq.s32.totalorder %s28, 0
      %p90 = por %p88, %p89
      %p91 = scmp.ne.s32.totalorder %s83, %s85
      %p92 = scmp.eq.s32.totalorder %s33, 1
      %p93 = por %p91, %p92
      %p94 = scmp.ne.s32.totalorder %s85, %s86
      %p95 = scmp.eq.s32.totalorder %s33, 0
      %p96 = por %p94, %p95
      %p97 = scmp.ne.s32.totalorder %s85, %s86
      %p98 = scmp.eq.s32.totalorder %s34, 1
      %p99 = por %p97, %p98
      %p101 = scmp.ne.s32.totalorder %s86, %s100
      %p102 = scmp.eq.s32.totalorder %s34, 0
      %p103 = por %p101, %p102
      %s105 = sadd.s32 %s104, 1
      %p108 = scmp.eq.s32.totalorder %s28, 1
      %p109 = scmp.ne.s32.totalorder %s104, %s106
      %p110 = scmp.eq.s32.totalorder %s28, 0
      %p111 = por %p109, %p110
      %p112 = scmp.ne.s32.totalorder %s104, %s106
      %p113 = scmp.eq.s32.totalorder %s33, 1
      %p114 = por %p112, %p113
      %p115 = scmp.ne.s32.totalorder %s106, %s107
      %p116 = scmp.eq.s32.totalorder %s33, 0
      %p117 = por %p115, %p116
      %p118 = scmp.ne.s32.totalorder %s106, %s107
      %p119 = scmp.eq.s32.totalorder %s34, 1
      %p120 = por %p118, %p119
      %p122 = scmp.ne.s32.totalorder %s107, %s121
      %p123 = scmp.eq.s32.totalorder %s34, 0
      %p124 = por %p122, %p123
      %s126 = sadd.s32 %s125, 1
      %p129 = scmp.eq.s32.totalorder %s28, 1
      %p130 = scmp.ne.s32.totalorder %s125, %s127
      %p131 = scmp.eq.s32.totalorder %s28, 0
      %p132 = por %p130, %p131
      %p133 = scmp.ne.s32.totalorder %s125, %s127
      %p134 = scmp.eq.s32.totalorder %s33, 1
      %p135 = por %p133, %p134
      %p136 = scmp.ne.s32.totalorder %s127, %s128
      %p137 = scmp.eq.s32.totalorder %s33, 0
      %p138 = por %p136, %p137
      %p139 = scmp.ne.s32.totalorder %s127, %s128
      %p140 = scmp.eq.s32.totalorder %s34, 1
      %p141 = por %p139, %p140
      %p143 = scmp.ne.s32.totalorder %s128, %s142
      %p144 = scmp.eq.s32.totalorder %s34, 0
      %p145 = por %p143, %p144
      %s147 = sadd.s32 %s146, 1
      %p150 = scmp.eq.s32.totalorder %s28, 1
      %p151 = scmp.ne.s32.totalorder %s146, %s148
      %p152 = scmp.eq.s32.totalorder %s28, 0
      %p153 = por %p151, %p152
      %p154 = scmp.ne.s32.totalorder %s146, %s148
      %p155 = scmp.eq.s32.totalorder %s33, 1
      %p156 = por %p154, %p155
      %p157 = scmp.ne.s32.totalorder %s148, %s149
      %p158 = scmp.eq.s32.totalorder %s33, 0
      %p159 = por %p157, %p158
      %p160 = scmp.ne.s32.totalorder %s148, %s149
      %p161 = scmp.eq.s32.totalorder %s34, 1
      %p162 = por %p160, %p161
      %p164 = scmp.ne.s32.totalorder %s149, %s163
      %p165 = scmp.eq.s32.totalorder %s34, 0
      %p166 = por %p164, %p165
      %s168 = sadd.s32 %s167, 1
      %p171 = scmp.eq.s32.totalorder %s28, 1
      %p172 = scmp.ne.s32.totalorder %s167, %s169
      %p173 = scmp.eq.s32.totalorder %s28, 0
      %p174 = por %p172, %p173
      %p175 = scmp.ne.s32.totalorder %s167, %s169
      %p176 = scmp.eq.s32.totalorder %s33, 1
      %p177 = por %p175, %p176
      %p178 = scmp.ne.s32.totalorder %s169, %s170
      %p179 = scmp.eq.s32.totalorder %s33, 0
      %p180 = por %p178, %p179
      %p181 = scmp.ne.s32.totalorder %s169, %s170
      %p182 = scmp.eq.s32.totalorder %s34, 1
      %p183 = por %p181, %p182
      %p185 = scmp.ne.s32.totalorder %s170, %s184
      %p186 = scmp.eq.s32.totalorder %s34, 0
      %p187 = por %p185, %p186
      %s189 = sadd.s32 %s188, 1
      %p192 = scmp.eq.s32.totalorder %s28, 1
      %p193 = scmp.ne.s32.totalorder %s188, %s190
      %p194 = scmp.eq.s32.totalorder %s28, 0
      %p195 = por %p193, %p194
      %p196 = scmp.ne.s32.totalorder %s188, %s190
      %p197 = scmp.eq.s32.totalorder %s33, 1
      %p198 = por %p196, %p197
      %p199 = scmp.ne.s32.totalorder %s190, %s191
      %p200 = scmp.eq.s32.totalorder %s33, 0
      %p201 = por %p199, %p200
      %p202 = scmp.ne.s32.totalorder %s190, %s191
      %p203 = scmp.eq.s32.totalorder %s34, 1
      %p204 = por %p202, %p203
      %p206 = scmp.ne.s32.totalorder %s191, %s205
      %p207 = scmp.eq.s32.totalorder %s34, 0
      %p208 = por %p206, %p207
      %s210 = sadd.s32 %s209, 1
      %p213 = scmp.eq.s32.totalorder %s28, 1
      %p214 = scmp.ne.s32.totalorder %s209, %s211
      %p215 = scmp.eq.s32.totalorder %s28, 0
      %p216 = por %p214, %p215
      %p217 = scmp.ne.s32.totalorder %s209, %s211
      %p218 = scmp.eq.s32.totalorder %s33, 1
      %p219 = por %p217, %p218
      %p220 = scmp.ne.s32.totalorder %s211, %s212
      %p221 = scmp.eq.s32.totalorder %s33, 0
      %p222 = por %p220, %p221
      %p223 = scmp.ne.s32.totalorder %s211, %s212
      %p224 = scmp.eq.s32.totalorder %s34, 1
      %p225 = por %p223, %p224
      %p227 = scmp.ne.s32.totalorder %s212, %s226
      %p228 = scmp.eq.s32.totalorder %s34, 0
      %p229 = por %p227, %p228
      %s231 = sadd.s32 %s230, 1
      %p234 = scmp.eq.s32.totalorder %s28, 1
      %p235 = scmp.ne.s32.totalorder %s230, %s232
      %p236 = scmp.eq.s32.totalorder %s28, 0
      %p237 = por %p235, %p236
      %p238 = scmp.ne.s32.totalorder %s230, %s232
      %p239 = scmp.eq.s32.totalorder %s33, 1
      %p240 = por %p238, %p239
      %p241 = scmp.ne.s32.totalorder %s232, %s233
      %p242 = scmp.eq.s32.totalorder %s33, 0
      %p243 = por %p241, %p242
      %p244 = scmp.ne.s32.totalorder %s232, %s233
      %p245 = scmp.eq.s32.totalorder %s34, 1
      %p246 = por %p244, %p245
      %p248 = scmp.ne.s32.totalorder %s233, %s247
      %p249 = scmp.eq.s32.totalorder %s34, 0
      %p250 = por %p248, %p249
      %s252 = sadd.s32 %s251, 1
      %p255 = scmp.eq.s32.totalorder %s28, 1
      %p256 = scmp.ne.s32.totalorder %s251, %s253
      %p257 = scmp.eq.s32.totalorder %s28, 0
      %p258 = por %p256, %p257
      %p259 = scmp.ne.s32.totalorder %s251, %s253
      %p260 = scmp.eq.s32.totalorder %s33, 1
      %p261 = por %p259, %p260
      %p262 = scmp.ne.s32.totalorder %s253, %s254
      %p263 = scmp.eq.s32.totalorder %s33, 0
      %p264 = por %p262, %p263
      %p265 = scmp.ne.s32.totalorder %s253, %s254
      %p266 = scmp.eq.s32.totalorder %s34, 1
      %p267 = por %p265, %p266
      %p269 = scmp.ne.s32.totalorder %s254, %s268
      %p270 = scmp.eq.s32.totalorder %s34, 0
      %p271 = por %p269, %p270
      %s273 = sadd.s32 %s272, 1
      %p276 = scmp.eq.s32.totalorder %s28, 1
      %p277 = scmp.ne.s32.totalorder %s272, %s274
      %p278 = scmp.eq.s32.totalorder %s28, 0
      %p279 = por %p277, %p278
      %p280 = scmp.ne.s32.totalorder %s272, %s274
      %p281 = scmp.eq.s32.totalorder %s33, 1
      %p282 = por %p280, %p281
      %p283 = scmp.ne.s32.totalorder %s274, %s275
      %p284 = scmp.eq.s32.totalorder %s33, 0
      %p285 = por %p283, %p284
      %p286 = scmp.ne.s32.totalorder %s274, %s275
      %p287 = scmp.eq.s32.totalorder %s34, 1
      %p288 = por %p286, %p287
      %p290 = scmp.ne.s32.totalorder %s275, %s289
      %p291 = scmp.eq.s32.totalorder %s34, 0
      %p292 = por %p290, %p291
      %s294 = sadd.s32 %s293, 1
      %p297 = scmp.eq.s32.totalorder %s28, 1
      %p298 = scmp.ne.s32.totalorder %s293, %s295
      %p299 = scmp.eq.s32.totalorder %s28, 0
      %p300 = por %p298, %p299
      %p301 = scmp.ne.s32.totalorder %s293, %s295
      %p302 = scmp.eq.s32.totalorder %s33, 1
      %p303 = por %p301, %p302
      %p304 = scmp.ne.s32.totalorder %s295, %s296
      %p305 = scmp.eq.s32.totalorder %s33, 0
      %p306 = por %p304, %p305
      %p307 = scmp.ne.s32.totalorder %s295, %s296
      %p308 = scmp.eq.s32.totalorder %s34, 1
      %p309 = por %p307, %p308
      %p311 = scmp.ne.s32.totalorder %s296, %s310
      %p312 = scmp.eq.s32.totalorder %s34, 0
      %p313 = por %p311, %p312
      %s315 = sadd.s32 %s314, 1
      %p318 = scmp.eq.s32.totalorder %s28, 1
      %p319 = scmp.ne.s32.totalorder %s314, %s316
      %p320 = scmp.eq.s32.totalorder %s28, 0
      %p321 = por %p319, %p320
      %p322 = scmp.ne.s32.totalorder %s314, %s316
      %p323 = scmp.eq.s32.totalorder %s33, 1
      %p324 = por %p322, %p323
      %p325 = scmp.ne.s32.totalorder %s316, %s317
      %p326 = scmp.eq.s32.totalorder %s33, 0
      %p327 = por %p325, %p326
      %p328 = scmp.ne.s32.totalorder %s316, %s317
      %p329 = scmp.eq.s32.totalorder %s34, 1
      %p330 = por %p328, %p329
      %p332 = scmp.ne.s32.totalorder %s317, %s331
      %p333 = scmp.eq.s32.totalorder %s34, 0
      %p334 = por %p332, %p333
      %s335 = ssub.s32 %s28, %s35
      %p336 = scmp.eq.s32.totalorder %s335, 0
      %s338 = sadd.s32 %s337, 1
      %s339 = scalar_select %p336, %s337, %s338
      %p342 = pneg %p336
      %p343 = scmp.eq.s32.totalorder %s28, 1
      %p344 = por %p342, %p343
      %p345 = scmp.ne.s32.totalorder %s337, %s340
      %p346 = scmp.eq.s32.totalorder %s28, 0
      %p347 = por %p345, %p346
      %p348 = scmp.ne.s32.totalorder %s337, %s340
      %p349 = scmp.eq.s32.totalorder %s33, 1
      %p350 = por %p348, %p349
      %p351 = scmp.ne.s32.totalorder %s340, %s341
      %p352 = scmp.eq.s32.totalorder %s33, 0
      %p353 = por %p351, %p352
      %p354 = scmp.ne.s32.totalorder %s340, %s341
      %p355 = scmp.eq.s32.totalorder %s34, 1
      %p356 = por %p354, %p355
      %p358 = scmp.ne.s32.totalorder %s341, %s357
      %p359 = scmp.eq.s32.totalorder %s34, 0
      %p360 = por %p358, %p359
      %p361 = scmp.le.s32.totalorder 1, %s28
      %p362 = scmp.lt.s32.totalorder %s28, 3
      %p363 = pnand %p361, %p362
      %p364 = pneg %p363
      // Predicated region
      $region9: #{tpu_custom_call.1} parent=5 // pred_check
        _
      $region10: #{tpu_custom_call.1} parent=5 // pred_check_branch
        %366 = sbr.rel (%p363) target = $region12
      $region11: #{tpu_custom_call.1} parent=5 // pred_region
        %s367 = ssub.s32 %s28, 1
        // Predicated region
        $region13: #{tpu_custom_call.1} parent=11 // pred_check
          %p368 = pneg %p75
        $region14: #{tpu_custom_call.1} parent=11 // pred_check_branch
          %370 = sbr.rel (%p368) target = $region16
        $region15: #{tpu_custom_call.1} parent=11 // pred_region
          _
        $region16: #{tpu_custom_call.1} parent=11 // pred_fallthru
          _
        // Predicated region
        $region17: #{tpu_custom_call.1} parent=11 // pred_check
          %p371 = pneg %p96
        $region18: #{tpu_custom_call.1} parent=11 // pred_check_branch
          %373 = sbr.rel (%p371) target = $region20
        $region19: #{tpu_custom_call.1} parent=11 // pred_region
          _
        $region20: #{tpu_custom_call.1} parent=11 // pred_fallthru
          _
        // Predicated region
        $region21: #{tpu_custom_call.1} parent=11 // pred_check
          %p374 = pneg %p117
        $region22: #{tpu_custom_call.1} parent=11 // pred_check_branch
          %376 = sbr.rel (%p374) target = $region24
        $region23: #{tpu_custom_call.1} parent=11 // pred_region
          _
        $region24: #{tpu_custom_call.1} parent=11 // pred_fallthru
          _
        // Predicated region
        $region25: #{tpu_custom_call.1} parent=11 // pred_check
          %p377 = pneg %p138
        $region26: #{tpu_custom_call.1} parent=11 // pred_check_branch
          %379 = sbr.rel (%p377) target = $region28
        $region27: #{tpu_custom_call.1} parent=11 // pred_region
          %s381 = ssub.s32 256, 256
          %382 = vsyncadd [#allocation6], %s381
          %s383 = sshll.u32 [#allocation5], 4
          %s384 = int_to_ptr.vmem [resolvable:$true] %s383
          %389 = dma.hbm_to_vmem [thread:$0]  %s4, 256, %s384, [#allocation6], 128, 128, 8
        $region28: #{tpu_custom_call.1} parent=11 // pred_fallthru
          _
        // Predicated region
        $region29: #{tpu_custom_call.1} parent=11 // pred_check
          %p390 = pneg %p159
        $region30: #{tpu_custom_call.1} parent=11 // pred_check_branch
          %392 = sbr.rel (%p390) target = $region32
        $region31: #{tpu_custom_call.1} parent=11 // pred_region
          %s394 = ssub.s32 1024, 1024
          %395 = vsyncadd [#allocation6], %s394
          %s396 = sshll.u32 [#allocation7], 4
          %s397 = int_to_ptr.vmem [resolvable:$true] %s396
          %402 = dma.hbm_to_vmem [thread:$0]  %s5, 1024, %s397, [#allocation6], 64, 64, 4
        $region32: #{tpu_custom_call.1} parent=11 // pred_fallthru
          _
        // Predicated region
        $region33: #{tpu_custom_call.1} parent=11 // pred_check
          %p403 = pneg %p180
        $region34: #{tpu_custom_call.1} parent=11 // pred_check_branch
          %405 = sbr.rel (%p403) target = $region36
        $region35: #{tpu_custom_call.1} parent=11 // pred_region
          _
        $region36: #{tpu_custom_call.1} parent=11 // pred_fallthru
          _
        // Predicated region
        $region37: #{tpu_custom_call.1} parent=11 // pred_check
          %p406 = pneg %p201
        $region38: #{tpu_custom_call.1} parent=11 // pred_check_branch
          %408 = sbr.rel (%p406) target = $region40
        $region39: #{tpu_custom_call.1} parent=11 // pred_region
          _
        $region40: #{tpu_custom_call.1} parent=11 // pred_fallthru
          _
        // Predicated region
        $region41: #{tpu_custom_call.1} parent=11 // pred_check
          %p409 = pneg %p222
        $region42: #{tpu_custom_call.1} parent=11 // pred_check_branch
          %411 = sbr.rel (%p409) target = $region44
        $region43: #{tpu_custom_call.1} parent=11 // pred_region
          %s413 = ssub.s32 4096, 4096
          %414 = vsyncadd [#allocation9], %s413
          %s415 = sshll.u32 [#allocation8], 4
          %s416 = int_to_ptr.vmem [resolvable:$true] %s415
          %421 = dma.hbm_to_vmem [thread:$0]  %s8, 4096, %s416, [#allocation9], 256, 256, 16
        $region44: #{tpu_custom_call.1} parent=11 // pred_fallthru
          _
        // Predicated region
        $region45: #{tpu_custom_call.1} parent=11 // pred_check
          %p422 = pneg %p243
        $region46: #{tpu_custom_call.1} parent=11 // pred_check_branch
          %424 = sbr.rel (%p422) target = $region48
        $region47: #{tpu_custom_call.1} parent=11 // pred_region
          _
        $region48: #{tpu_custom_call.1} parent=11 // pred_fallthru
          _
        // Predicated region
        $region49: #{tpu_custom_call.1} parent=11 // pred_check
          %p425 = pneg %p264
        $region50: #{tpu_custom_call.1} parent=11 // pred_check_branch
          %427 = sbr.rel (%p425) target = $region52
        $region51: #{tpu_custom_call.1} parent=11 // pred_region
          %s429 = ssub.s32 4096, 4096
          %430 = vsyncadd [#allocation9], %s429
          %s431 = sshll.u32 [#allocation10], 4
          %s432 = int_to_ptr.vmem [resolvable:$true] %s431
          %437 = dma.hbm_to_vmem [thread:$0]  %s10, 4096, %s432, [#allocation9], 64, 64, 4
        $region52: #{tpu_custom_call.1} parent=11 // pred_fallthru
          _
        // Predicated region
        $region53: #{tpu_custom_call.1} parent=11 // pred_check
          %p438 = pneg %p285
        $region54: #{tpu_custom_call.1} parent=11 // pred_check_branch
          %440 = sbr.rel (%p438) target = $region56
        $region55: #{tpu_custom_call.1} parent=11 // pred_region
          _
        $region56: #{tpu_custom_call.1} parent=11 // pred_fallthru
          _
        // Predicated region
        $region57: #{tpu_custom_call.1} parent=11 // pred_check
          %p441 = pneg %p306
        $region58: #{tpu_custom_call.1} parent=11 // pred_check_branch
          %443 = sbr.rel (%p441) target = $region60
        $region59: #{tpu_custom_call.1} parent=11 // pred_region
          _
        $region60: #{tpu_custom_call.1} parent=11 // pred_fallthru
          _
        // Predicated region
        $region61: #{tpu_custom_call.1} parent=11 // pred_check
          %p444 = pneg %p327
        $region62: #{tpu_custom_call.1} parent=11 // pred_check_branch
          %446 = sbr.rel (%p444) target = $region64
        $region63: #{tpu_custom_call.1} parent=11 // pred_region
          _
        $region64: #{tpu_custom_call.1} parent=11 // pred_fallthru
          _
      $region12: #{tpu_custom_call.1} parent=5 // pred_fallthru
        _
      %p447 = scmp.lt.s32.totalorder %s28, 2
      // Predicated region
      $region65: #{tpu_custom_call.1} parent=5 // pred_check
        %p448 = pneg %p447
      $region66: #{tpu_custom_call.1} parent=5 // pred_check_branch
        %450 = sbr.rel (%p448) target = $region68
      $region67: #{tpu_custom_call.1} parent=5 // pred_region
        // Predicated region
        $region69: #{tpu_custom_call.1} parent=67 // pred_check
          %p451 = pneg %p48
        $region70: #{tpu_custom_call.1} parent=67 // pred_check_branch
          %453 = sbr.rel (%p451) target = $region72
        $region71: #{tpu_custom_call.1} parent=67 // pred_region
          %s454 = sand.u32 %s38, 1
          %s455 = scalar_lea.sflag [#allocation3], %s454
          %s456 = sand.u32 %s38, 1
          %s457 = smul.addr %s456, 8
          %s458 = scalar_lea.vmem [#allocation2], %s457
          %s460 = ssub.s32 128, 128
          %461 = vsyncadd %s455, %s460
          %s462 = smul.addr %s28, 128
          %s463 = scalar_lea.hbm %s0, %s462
          %s465 = sshll.u32 %s458, 4
          %s466 = int_to_ptr.vmem [resolvable:$true] %s465
          %468 = dma.hbm_to_vmem [thread:$0]  %s463, 128, %s466, %s455
        $region72: #{tpu_custom_call.1} parent=67 // pred_fallthru
          _
      $region68: #{tpu_custom_call.1} parent=5 // pred_fallthru
        _
      %p469 = scmp.le.s32.totalorder 1, %s28
      %p470 = scmp.lt.s32.totalorder %s28, 3
      %p471 = pnand %p469, %p470
      %p472 = pneg %p471
      // Predicated region
      $region73: #{tpu_custom_call.1} parent=5 // pred_check
        _
      $region74: #{tpu_custom_call.1} parent=5 // pred_check_branch
        %474 = sbr.rel (%p471) target = $region76
      $region75: #{tpu_custom_call.1} parent=5 // pred_region
        %s475 = ssub.s32 %s28, 1
        %s476 = sand.u32 %s41, 1
        %s477 = scalar_lea.sflag [#allocation3], %s476
        %s478 = sand.u32 %s41, 1
        %s479 = smul.addr %s478, 8
        %s480 = scalar_lea.vmem [#allocation2], %s479
        // Predicated region
        $region77: #{tpu_custom_call.1} parent=75 // pred_check
          %p481 = pneg %p54
        $region78: #{tpu_custom_call.1} parent=75 // pred_check_branch
          %483 = sbr.rel (%p481) target = $region80
        $region79: #{tpu_custom_call.1} parent=75 // pred_region
          %484 = dma.done %s477, 128
        $region80: #{tpu_custom_call.1} parent=75 // pred_fallthru
          _
        // Predicated region
        $region81: #{tpu_custom_call.1} parent=75 // pred_check
          %p485 = pneg %p138
        $region82: #{tpu_custom_call.1} parent=75 // pred_check_branch
          %487 = sbr.rel (%p485) target = $region84
        $region83: #{tpu_custom_call.1} parent=75 // pred_region
          %488 = dma.done [#allocation6], 256
        $region84: #{tpu_custom_call.1} parent=75 // pred_fallthru
          _
        // Predicated region
        $region85: #{tpu_custom_call.1} parent=75 // pred_check
          %p489 = pneg %p159
        $region86: #{tpu_custom_call.1} parent=75 // pred_check_branch
          %491 = sbr.rel (%p489) target = $region88
        $region87: #{tpu_custom_call.1} parent=75 // pred_region
          %492 = dma.done [#allocation6], 1024
        $region88: #{tpu_custom_call.1} parent=75 // pred_fallthru
          _
        // Predicated region
        $region89: #{tpu_custom_call.1} parent=75 // pred_check
          %p493 = pneg %p222
        $region90: #{tpu_custom_call.1} parent=75 // pred_check_branch
          %495 = sbr.rel (%p493) target = $region92
        $region91: #{tpu_custom_call.1} parent=75 // pred_region
          %496 = dma.done [#allocation9], 4096
        $region92: #{tpu_custom_call.1} parent=75 // pred_fallthru
          _
        // Predicated region
        $region93: #{tpu_custom_call.1} parent=75 // pred_check
          %p497 = pneg %p264
        $region94: #{tpu_custom_call.1} parent=75 // pred_check_branch
          %499 = sbr.rel (%p497) target = $region96
        $region95: #{tpu_custom_call.1} parent=75 // pred_region
          %500 = dma.done [#allocation9], 4096
        $region96: #{tpu_custom_call.1} parent=75 // pred_fallthru
          _
        %s501 = sand.u32 %s41, 1
        %s502 = scalar_lea.sflag [#allocation3], %s501
        %s503 = sand.u32 %s41, 1
        %s504 = smul.addr %s503, 8
        %s505 = scalar_lea.vmem [#allocation2], %s504
        %p506 = pneg %p54
        %p507 = pneg %p51
        %p508 = pneg %p75
        %p509 = pneg %p72
        %p510 = pneg %p96
        %p511 = pneg %p93
        %p512 = pneg %p117
        %p513 = pneg %p114
        %p514 = pneg %p138
        %p515 = pneg %p135
        %p516 = pneg %p159
        %p517 = pneg %p156
        %p518 = pneg %p180
        %p519 = pneg %p177
        %p520 = pneg %p201
        %p521 = pneg %p198
        %p522 = pneg %p222
        %p523 = pneg %p219
        %p524 = pneg %p243
        %p525 = pneg %p240
        %p526 = pneg %p264
        %p527 = pneg %p261
        %p528 = pneg %p285
        %p529 = pneg %p282
        %p530 = pneg %p306
        %p531 = pneg %p303
        %p532 = pneg %p327
        %p533 = pneg %p324
        %p534 = pneg %p353
        %p535 = pneg %p350
        %s536 = sand.u32 %s340, 1
        %s537 = scalar_lea.sflag [#allocation4], %s536
        %s538 = sand.u32 %s340, 1
        %s539 = smul.addr %s538, 8
        %s540 = scalar_lea.vmem [#allocation11], %s539
        %v542 = vld [vmem:[%s480] sm:$0xff]
        %v543 = vld [vmem:[%s1] sm:$0xf]
        %v544 = vld [vmem:[%s1 + $0x4] sm:$0xf]
        %v545 = vpack.c.bf16 %v542, %v542
        %v548 = vunpack.c.l.b16 %v543
        %v549 = vunpack.c.l.b16 %v544
        %v550 = vpack.c.b16 %v549, %v548
        %vm551 = vcmask 64512
        %v553 = vsel %vm551, %v550, 0
        %vm555 = vcmask 1043456
        %v557 = vsel %vm555, %v545, 0
        %559 = vmatprep.subr.bf16.mxu0 0
        %560 = vmatpush1.bf16.msra.mxu0 %v557
        %561 = vmatprep.subr.bf16.mxu0 0
        %562 = vmatpush1.bf16.msra.mxu0 0
        %563 = vmatprep.subr.bf16.mxu0 0
        %564 = vmatpush1.bf16.msra.mxu0 0
        %565 = vmatprep.subr.bf16.mxu0 0
        %566 = vmatpush1.bf16.msra.mxu0 0
        %567 = vmatprep.subr.bf16.mxu0 0
        %568 = vmatpush1.bf16.msra.mxu0 0
        %569 = vmatprep.subr.bf16.mxu0 0
        %570 = vmatpush1.bf16.msra.mxu0 0
        %571 = vmatprep.subr.bf16.mxu0 0
        %572 = vmatpush1.bf16.msra.mxu0 0
        %573 = vmatprep.subr.bf16.mxu0 0
        %574 = vmatpush1.bf16.msra.mxu0 0
        %575 = vmatprep.subr.bf16.mxu0 0
        %576 = vmatpush1.bf16.msra.mxu0 0
        %577 = vmatprep.subr.bf16.mxu0 0
        %578 = vmatpush1.bf16.msra.mxu0 0
        %579 = vmatprep.subr.bf16.mxu0 0
        %580 = vmatpush1.bf16.msra.mxu0 0
        %581 = vmatprep.subr.bf16.mxu0 0
        %582 = vmatpush1.bf16.msra.mxu0 0
        %583 = vmatprep.subr.bf16.mxu0 0
        %584 = vmatpush1.bf16.msra.mxu0 0
        %585 = vmatprep.subr.bf16.mxu0 0
        %586 = vmatpush1.bf16.msra.mxu0 0
        %587 = vmatprep.subr.bf16.mxu0 0
        %588 = vmatpush1.bf16.msra.mxu0 0
        %589 = vmatprep.subr.bf16.mxu0 0
        %590 = vmatpush1.bf16.msra.mxu0 0
        %591 = vmatprep.mubr.bf16.mxu0 0
        %592 = vmatmul.mubr.bf16.gmra.mrb[0].mxu0 %v553
        %v593 = vpop.f32.mrb[0].mxu0
        %v594 = vadd.f32 0.0, %v593
        %v595 = vpop.f32.mrb[0].mxu0
        %v596 = vpop.f32.mrb[0].mxu0
        %v597 = vadd.f32 0.0, %v596
        %v598 = vpop.f32.mrb[0].mxu0
        %599 = vdwg.mxu0
        %v600 = vld [vmem:[%s3] sm:$0xff]
        %v601 = vld [vmem:[%s3 + $0x8] sm:$0xff]
        %v602 = vmul.f32 %v594, %v600
        %v603 = vmul.f32 %v597, %v601
        %v604 = vld [vmem:[#allocation5] sm:$0xff]
        %v605 = vld [vmem:[#allocation5 + $0x8] sm:$0xff]
        %v606 = vmul.f32 %v597, %v604
        %v607 = vmul.f32 %v594, %v605
        %v608 = vadd.f32 %v602, %v606
        %v609 = vadd.f32 %v603, %v607
        %v610 = vld [vmem:[%s2] sm:$0xf]
        %v611 = vpack.c.bf16 %v609, %v608
        %v612 = vld [vmem:[#allocation7] sm:$0xf]
        %v613 = vld [vmem:[#allocation7 + $0x4] sm:$0xf]
        %v614 = vld [vmem:[#allocation7 + $0x8] sm:$0xf]
        %v615 = vld [vmem:[#allocation7 + $0xc] sm:$0xf]
        %v616 = vld [vmem:[#allocation7 + $0x10] sm:$0xf]
        %v617 = vld [vmem:[#allocation7 + $0x14] sm:$0xf]
        %v618 = vld [vmem:[#allocation7 + $0x18] sm:$0xf]
        %v619 = vld [vmem:[#allocation7 + $0x1c] sm:$0xf]
        %v620 = vld [vmem:[#allocation7 + $0x20] sm:$0xf]
        %v621 = vld [vmem:[#allocation7 + $0x24] sm:$0xf]
        %v622 = vld [vmem:[#allocation7 + $0x28] sm:$0xf]
        %v623 = vld [vmem:[#allocation7 + $0x2c] sm:$0xf]
        %v624 = vld [vmem:[#allocation7 + $0x30] sm:$0xf]
        %v625 = vld [vmem:[#allocation7 + $0x34] sm:$0xf]
        %v626 = vld [vmem:[#allocation7 + $0x38] sm:$0xf]
        %v627 = vld [vmem:[#allocation7 + $0x3c] sm:$0xf]
        %vm628 = vcmask 130048
        %v630 = vsel %vm628, %v610, 0
        %632 = vmatprep.subr.bf16.mxu0 0
        %633 = vmatpush1.bf16.msra.mxu0 %v611
        %634 = vmatprep.subr.bf16.mxu0 0
        %635 = vmatpush1.bf16.msra.mxu0 0
        %636 = vmatprep.subr.bf16.mxu0 0
        %637 = vmatpush1.bf16.msra.mxu0 0
        %638 = vmatprep.subr.bf16.mxu0 0
        %639 = vmatpush1.bf16.msra.mxu0 0
        %640 = vmatprep.subr.bf16.mxu0 0
        %641 = vmatpush1.bf16.msra.mxu0 0
        %642 = vmatprep.subr.bf16.mxu0 0
        %643 = vmatpush1.bf16.msra.mxu0 0
        %644 = vmatprep.subr.bf16.mxu0 0
        %645 = vmatpush1.bf16.msra.mxu0 0
        %646 = vmatprep.subr.bf16.mxu0 0
        %647 = vmatpush1.bf16.msra.mxu0 0
        %648 = vmatprep.subr.bf16.mxu0 0
        %649 = vmatpush1.bf16.msra.mxu0 0
        %650 = vmatprep.subr.bf16.mxu0 0
        %651 = vmatpush1.bf16.msra.mxu0 0
        %652 = vmatprep.subr.bf16.mxu0 0
        %653 = vmatpush1.bf16.msra.mxu0 0
        %654 = vmatprep.subr.bf16.mxu0 0
        %655 = vmatpush1.bf16.msra.mxu0 0
        %656 = vmatprep.subr.bf16.mxu0 0
        %657 = vmatpush1.bf16.msra.mxu0 0
        %658 = vmatprep.subr.bf16.mxu0 0
        %659 = vmatpush1.bf16.msra.mxu0 0
        %660 = vmatprep.subr.bf16.mxu0 0
        %661 = vmatpush1.bf16.msra.mxu0 0
        %662 = vmatprep.subr.bf16.mxu0 0
        %663 = vmatpush1.bf16.msra.mxu0 0
        %664 = vmatprep.mubr.bf16.mxu0 0
        %665 = vmatmul.mubr.bf16.gmra.mrb[0].mxu0 %v630
        %v666 = vpop.f32.mrb[0].mxu0
        %v667 = vadd.f32 %v542, %v666
        %v668 = vpop.f32.mrb[0].mxu0
        %v669 = vpop.f32.mrb[0].mxu0
        %v670 = vpop.f32.mrb[0].mxu0
        %671 = vdwg.mxu0
        %v672 = vld [vmem:[%s6] sm:$0x1]
        %v673 = vld [vmem:[%s7] sm:$0x1]
        %v674 = vpack.c.bf16 %v667, %v667
        %v691 = vunpack.c.l.b16 %v612
        %v692 = vunpack.c.l.b16 %v613
        %v693 = vunpack.c.l.b16 %v614
        %v694 = vunpack.c.l.b16 %v615
        %v695 = vunpack.c.l.b16 %v616
        %v696 = vunpack.c.l.b16 %v617
        %v697 = vunpack.c.l.b16 %v618
        %v698 = vunpack.c.l.b16 %v619
        %v699 = vunpack.c.l.b16 %v620
        %v700 = vunpack.c.l.b16 %v621
        %v701 = vunpack.c.l.b16 %v622
        %v702 = vunpack.c.l.b16 %v623
        %v703 = vunpack.c.l.b16 %v624
        %v704 = vunpack.c.l.b16 %v625
        %v705 = vunpack.c.l.b16 %v626
        %v706 = vunpack.c.l.b16 %v627
        %v707 = vpack.c.b16 %v692, %v691
        %v708 = vpack.c.b16 %v694, %v693
        %v709 = vpack.c.b16 %v696, %v695
        %v710 = vpack.c.b16 %v698, %v697
        %v711 = vpack.c.b16 %v700, %v699
        %v712 = vpack.c.b16 %v702, %v701
        %v713 = vpack.c.b16 %v704, %v703
        %v714 = vpack.c.b16 %v706, %v705
        %723 = vmatprep.subr.bf16.mxu0 0
        %724 = vmatpush1.bf16.msra.mxu0 %v707
        %725 = vmatprep.subr.bf16.mxu0 0
        %726 = vmatpush1.bf16.msra.mxu0 %v708
        %727 = vmatprep.subr.bf16.mxu0 0
        %728 = vmatpush1.bf16.msra.mxu0 %v709
        %729 = vmatprep.subr.bf16.mxu0 0
        %730 = vmatpush1.bf16.msra.mxu0 %v710
        %731 = vmatprep.subr.bf16.mxu0 0
        %732 = vmatpush1.bf16.msra.mxu0 %v711
        %733 = vmatprep.subr.bf16.mxu0 0
        %734 = vmatpush1.bf16.msra.mxu0 %v712
        %735 = vmatprep.subr.bf16.mxu0 0
        %736 = vmatpush1.bf16.msra.mxu0 %v713
        %737 = vmatprep.subr.bf16.mxu0 0
        %738 = vmatpush1.bf16.msra.mxu0 %v714
        %739 = vmatprep.subr.bf16.mxu0 0
        %740 = vmatpush1.bf16.msra.mxu0 0
        %741 = vmatprep.subr.bf16.mxu0 0
        %742 = vmatpush1.bf16.msra.mxu0 0
        %743 = vmatprep.subr.bf16.mxu0 0
        %744 = vmatpush1.bf16.msra.mxu0 0
        %745 = vmatprep.subr.bf16.mxu0 0
        %746 = vmatpush1.bf16.msra.mxu0 0
        %747 = vmatprep.subr.bf16.mxu0 0
        %748 = vmatpush1.bf16.msra.mxu0 0
        %749 = vmatprep.subr.bf16.mxu0 0
        %750 = vmatpush1.bf16.msra.mxu0 0
        %751 = vmatprep.subr.bf16.mxu0 0
        %752 = vmatpush1.bf16.msra.mxu0 0
        %753 = vmatprep.subr.bf16.mxu0 0
        %754 = vmatpush1.bf16.msra.mxu0 0
        %755 = vmatprep.mubr.bf16.mxu0 0
        %756 = vmatmul.mubr.bf16.gmra.mrb[0].mxu0 %v674
        %v757 = vpop.f32.mrb[0].mxu0
        %v758 = vadd.f32 0.0, %v757
        %v759 = vpop.f32.mrb[0].mxu0
        %v760 = vpop.f32.mrb[0].mxu0
        %v761 = vpop.f32.mrb[0].mxu0
        %762 = vdwg.mxu0
        %v763 = vsub.f32 %v667, %v758
        %v764 = vmul.f32 %v763, %v763
        %v765 = vpack.c.bf16 %v764, %v764
        %766 = vmatprep.subr.bf16.mxu0 0
        %767 = vmatpush1.bf16.msra.mxu0 %v707
        %768 = vmatprep.subr.bf16.mxu0 0
        %769 = vmatpush1.bf16.msra.mxu0 %v708
        %770 = vmatprep.subr.bf16.mxu0 0
        %771 = vmatpush1.bf16.msra.mxu0 %v709
        %772 = vmatprep.subr.bf16.mxu0 0
        %773 = vmatpush1.bf16.msra.mxu0 %v710
        %774 = vmatprep.subr.bf16.mxu0 0
        %775 = vmatpush1.bf16.msra.mxu0 %v711
        %776 = vmatprep.subr.bf16.mxu0 0
        %777 = vmatpush1.bf16.msra.mxu0 %v712
        %778 = vmatprep.subr.bf16.mxu0 0
        %779 = vmatpush1.bf16.msra.mxu0 %v713
        %780 = vmatprep.subr.bf16.mxu0 0
        %781 = vmatpush1.bf16.msra.mxu0 %v714
        %782 = vmatprep.subr.bf16.mxu0 0
        %783 = vmatpush1.bf16.msra.mxu0 0
        %784 = vmatprep.subr.bf16.mxu0 0
        %785 = vmatpush1.bf16.msra.mxu0 0
        %786 = vmatprep.subr.bf16.mxu0 0
        %787 = vmatpush1.bf16.msra.mxu0 0
        %788 = vmatprep.subr.bf16.mxu0 0
        %789 = vmatpush1.bf16.msra.mxu0 0
        %790 = vmatprep.subr.bf16.mxu0 0
        %791 = vmatpush1.bf16.msra.mxu0 0
        %792 = vmatprep.subr.bf16.mxu0 0
        %793 = vmatpush1.bf16.msra.mxu0 0
        %794 = vmatprep.subr.bf16.mxu0 0
        %795 = vmatpush1.bf16.msra.mxu0 0
        %796 = vmatprep.subr.bf16.mxu0 0
        %797 = vmatpush1.bf16.msra.mxu0 0
        %798 = vmatprep.mubr.bf16.mxu0 0
        %799 = vmatmul.mubr.bf16.gmra.mrb[0].mxu0 %v765
        %v800 = vpop.f32.mrb[0].mxu0
        %v801 = vadd.f32 1e-12, %v800
        %v802 = vpop.f32.mrb[0].mxu0
        %v803 = vpop.f32.mrb[0].mxu0
        %v804 = vpop.f32.mrb[0].mxu0
        %805 = vdwg.mxu0
        %v806 = vrsqrt.pop %v801
        %v807 = vmul.f32 %v763, %v806
        %v809 = vlaneseq
        %v810 = vshrl.u32 %v809, 7
        %v811 = vsub.s32 0, %v810
        %v812 = vrot.slane %v672, %v811
        %v814 = vmul.f32 %v807, %v812
        %v816 = vlaneseq
        %v817 = vshrl.u32 %v816, 7
        %v818 = vsub.s32 0, %v817
        %v819 = vrot.slane %v673, %v818
        %v821 = vadd.f32 %v814, %v819
        %v822 = vpack.c.bf16 %v821, %v821
        %v823 = vld [vmem:[#allocation8] sm:$0xff]
        %v824 = vld [vmem:[#allocation8 + $0x8] sm:$0xff]
        %v825 = vld [vmem:[#allocation8 + $0x10] sm:$0xff]
        %v826 = vld [vmem:[#allocation8 + $0x18] sm:$0xff]
        %v827 = vld [vmem:[#allocation8 + $0x20] sm:$0xff]
        %v828 = vld [vmem:[#allocation8 + $0x28] sm:$0xff]
        %v829 = vld [vmem:[#allocation8 + $0x30] sm:$0xff]
        %v830 = vld [vmem:[#allocation8 + $0x38] sm:$0xff]
        %v831 = vld [vmem:[#allocation8 + $0x40] sm:$0xff]
        %v832 = vld [vmem:[#allocation8 + $0x48] sm:$0xff]
        %v833 = vld [vmem:[#allocation8 + $0x50] sm:$0xff]
        %v834 = vld [vmem:[#allocation8 + $0x58] sm:$0xff]
        %v835 = vld [vmem:[#allocation8 + $0x60] sm:$0xff]
        %v836 = vld [vmem:[#allocation8 + $0x68] sm:$0xff]
        %v837 = vld [vmem:[#allocation8 + $0x70] sm:$0xff]
        %v838 = vld [vmem:[#allocation8 + $0x78] sm:$0xff]
        %v839 = vld [vmem:[#allocation8 + $0x80] sm:$0xff]
        %v840 = vld [vmem:[#allocation8 + $0x88] sm:$0xff]
        %v841 = vld [vmem:[#allocation8 + $0x90] sm:$0xff]
        %v842 = vld [vmem:[#allocation8 + $0x98] sm:$0xff]
        %v843 = vld [vmem:[#allocation8 + $0xa0] sm:$0xff]
        %v844 = vld [vmem:[#allocation8 + $0xa8] sm:$0xff]
        %v845 = vld [vmem:[#allocation8 + $0xb0] sm:$0xff]
        %v846 = vld [vmem:[#allocation8 + $0xb8] sm:$0xff]
        %v847 = vld [vmem:[#allocation8 + $0xc0] sm:$0xff]
        %v848 = vld [vmem:[#allocation8 + $0xc8] sm:$0xff]
        %v849 = vld [vmem:[#allocation8 + $0xd0] sm:$0xff]
        %v850 = vld [vmem:[#allocation8 + $0xd8] sm:$0xff]
        %v851 = vld [vmem:[#allocation8 + $0xe0] sm:$0xff]
        %v852 = vld [vmem:[#allocation8 + $0xe8] sm:$0xff]
        %v853 = vld [vmem:[#allocation8 + $0xf0] sm:$0xff]
        %v854 = vld [vmem:[#allocation8 + $0xf8] sm:$0xff]
        %v855 = vld [vmem:[%s9] sm:$0xf]
        %v857 = vlaneseq
        %v858 = vshrl.u32 %v857, 7
        %v859 = vsub.s32 0, %v858
        %v860 = vrot.slane %v855, %v859
        %v861 = vlaneseq
        %v862 = vshrl.u32 %v861, 7
        %v863 = vsub.s32 1, %v862
        %v864 = vrot.slane %v855, %v863
        %v865 = vlaneseq
        %v866 = vshrl.u32 %v865, 7
        %v867 = vsub.s32 2, %v866
        %v868 = vrot.slane %v855, %v867
        %v869 = vlaneseq
        %v870 = vshrl.u32 %v869, 7
        %v871 = vsub.s32 3, %v870
        %v872 = vrot.slane %v855, %v871
        %v909 = vunpack.c.l.b16 %v823
        %v910 = vunpack.c.h.b16 %v823
        %v911 = vunpack.c.l.b16 %v824
        %v912 = vunpack.c.h.b16 %v824
        %v913 = vunpack.c.l.b16 %v825
        %v914 = vunpack.c.h.b16 %v825
        %v915 = vunpack.c.l.b16 %v826
        %v916 = vunpack.c.h.b16 %v826
        %v917 = vunpack.c.l.b16 %v827
        %v918 = vunpack.c.h.b16 %v827
        %v919 = vunpack.c.l.b16 %v828
        %v920 = vunpack.c.h.b16 %v828
        %v921 = vunpack.c.l.b16 %v829
        %v922 = vunpack.c.h.b16 %v829
        %v923 = vunpack.c.l.b16 %v830
        %v924 = vunpack.c.h.b16 %v830
        %v925 = vunpack.c.l.b16 %v831
        %v926 = vunpack.c.h.b16 %v831
        %v927 = vunpack.c.l.b16 %v832
        %v928 = vunpack.c.h.b16 %v832
        %v929 = vunpack.c.l.b16 %v833
        %v930 = vunpack.c.h.b16 %v833
        %v931 = vunpack.c.l.b16 %v834
        %v932 = vunpack.c.h.b16 %v834
        %v933 = vunpack.c.l.b16 %v835
        %v934 = vunpack.c.h.b16 %v835
        %v935 = vunpack.c.l.b16 %v836
        %v936 = vunpack.c.h.b16 %v836
        %v937 = vunpack.c.l.b16 %v837
        %v938 = vunpack.c.h.b16 %v837
        %v939 = vunpack.c.l.b16 %v838
        %v940 = vunpack.c.h.b16 %v838
        %v941 = vunpack.c.l.b16 %v839
        %v942 = vunpack.c.h.b16 %v839
        %v943 = vunpack.c.l.b16 %v840
        %v944 = vunpack.c.h.b16 %v840
        %v945 = vunpack.c.l.b16 %v841
        %v946 = vunpack.c.h.b16 %v841
        %v947 = vunpack.c.l.b16 %v842
        %v948 = vunpack.c.h.b16 %v842
        %v949 = vunpack.c.l.b16 %v843
        %v950 = vunpack.c.h.b16 %v843
        %v951 = vunpack.c.l.b16 %v844
        %v952 = vunpack.c.h.b16 %v844
        %v953 = vunpack.c.l.b16 %v845
        %v954 = vunpack.c.h.b16 %v845
        %v955 = vunpack.c.l.b16 %v846
        %v956 = vunpack.c.h.b16 %v846
        %v957 = vunpack.c.l.b16 %v847
        %v958 = vunpack.c.h.b16 %v847
        %v959 = vunpack.c.l.b16 %v848
        %v960 = vunpack.c.h.b16 %v848
        %v961 = vunpack.c.l.b16 %v849
        %v962 = vunpack.c.h.b16 %v849
        %v963 = vunpack.c.l.b16 %v850
        %v964 = vunpack.c.h.b16 %v850
        %v965 = vunpack.c.l.b16 %v851
        %v966 = vunpack.c.h.b16 %v851
        %v967 = vunpack.c.l.b16 %v852
        %v968 = vunpack.c.h.b16 %v852
        %v969 = vunpack.c.l.b16 %v853
        %v970 = vunpack.c.h.b16 %v853
        %v971 = vunpack.c.l.b16 %v854
        %v972 = vunpack.c.h.b16 %v854
        %v973 = vpack.c.b16 %v913, %v909
        %v974 = vpack.c.b16 %v914, %v910
        %v975 = vpack.c.b16 %v915, %v911
        %v976 = vpack.c.b16 %v916, %v912
        %v977 = vpack.c.b16 %v921, %v917
        %v978 = vpack.c.b16 %v922, %v918
        %v979 = vpack.c.b16 %v923, %v919
        %v980 = vpack.c.b16 %v924, %v920
        %v981 = vpack.c.b16 %v929, %v925
        %v982 = vpack.c.b16 %v930, %v926
        %v983 = vpack.c.b16 %v931, %v927
        %v984 = vpack.c.b16 %v932, %v928
        %v985 = vpack.c.b16 %v937, %v933
        %v986 = vpack.c.b16 %v938, %v934
        %v987 = vpack.c.b16 %v939, %v935
        %v988 = vpack.c.b16 %v940, %v936
        %v989 = vpack.c.b16 %v945, %v941
        %v990 = vpack.c.b16 %v946, %v942
        %v991 = vpack.c.b16 %v947, %v943
        %v992 = vpack.c.b16 %v948, %v944
        %v993 = vpack.c.b16 %v953, %v949
        %v994 = vpack.c.b16 %v954, %v950
        %v995 = vpack.c.b16 %v955, %v951
        %v996 = vpack.c.b16 %v956, %v952
        %v997 = vpack.c.b16 %v961, %v957
        %v998 = vpack.c.b16 %v962, %v958
        %v999 = vpack.c.b16 %v963, %v959
        %v1000 = vpack.c.b16 %v964, %v960
        %v1001 = vpack.c.b16 %v969, %v965
        %v1002 = vpack.c.b16 %v970, %v966
        %v1003 = vpack.c.b16 %v971, %v967
        %v1004 = vpack.c.b16 %v972, %v968
        %1037 = vmatprep.subr.bf16.mxu0 %v974
        %1038 = vmatpush1.bf16.msra.mxu0 %v973
        %1039 = vmatprep.subr.bf16.mxu0 %v978
        %1040 = vmatpush1.bf16.msra.mxu0 %v977
        %1041 = vmatprep.subr.bf16.mxu0 %v982
        %1042 = vmatpush1.bf16.msra.mxu0 %v981
        %1043 = vmatprep.subr.bf16.mxu0 %v986
        %1044 = vmatpush1.bf16.msra.mxu0 %v985
        %1045 = vmatprep.subr.bf16.mxu0 %v990
        %1046 = vmatpush1.bf16.msra.mxu0 %v989
        %1047 = vmatprep.subr.bf16.mxu0 %v994
        %1048 = vmatpush1.bf16.msra.mxu0 %v993
        %1049 = vmatprep.subr.bf16.mxu0 %v998
        %1050 = vmatpush1.bf16.msra.mxu0 %v997
        %1051 = vmatprep.subr.bf16.mxu0 %v1002
        %1052 = vmatpush1.bf16.msra.mxu0 %v1001
        %1053 = vmatprep.subr.bf16.mxu0 0
        %1054 = vmatpush1.bf16.msra.mxu0 0
        %1055 = vmatprep.subr.bf16.mxu0 0
        %1056 = vmatpush1.bf16.msra.mxu0 0
        %1057 = vmatprep.subr.bf16.mxu0 0
        %1058 = vmatpush1.bf16.msra.mxu0 0
        %1059 = vmatprep.subr.bf16.mxu0 0
        %1060 = vmatpush1.bf16.msra.mxu0 0
        %1061 = vmatprep.subr.bf16.mxu0 0
        %1062 = vmatpush1.bf16.msra.mxu0 0
        %1063 = vmatprep.subr.bf16.mxu0 0
        %1064 = vmatpush1.bf16.msra.mxu0 0
        %1065 = vmatprep.subr.bf16.mxu0 0
        %1066 = vmatpush1.bf16.msra.mxu0 0
        %1067 = vmatprep.subr.bf16.mxu0 0
        %1068 = vmatpush1.bf16.msra.mxu0 0
        %1069 = vmatprep.mubr.bf16.mxu0 0
        %1070 = vmatmul.mubr.bf16.gmra.mrb[0].mxu0 %v822
        %v1071 = vpop.f32.mrb[0].mxu0
        %v1072 = vadd.f32 %v860, %v1071
        %v1073 = vpop.f32.mrb[0].mxu0
        %v1074 = vadd.f32 %v864, %v1073
        %v1075 = vpop.f32.mrb[0].mxu0
        %v1076 = vpop.f32.mrb[0].mxu0
        %1077 = vdwg.mxu0
        %1078 = vmatprep.subr.bf16.mxu0 %v976
        %1079 = vmatpush1.bf16.msra.mxu0 %v975
        %1080 = vmatprep.subr.bf16.mxu0 %v980
        %1081 = vmatpush1.bf16.msra.mxu0 %v979
        %1082 = vmatprep.subr.bf16.mxu0 %v984
        %1083 = vmatpush1.bf16.msra.mxu0 %v983
        %1084 = vmatprep.subr.bf16.mxu0 %v988
        %1085 = vmatpush1.bf16.msra.mxu0 %v987
        %1086 = vmatprep.subr.bf16.mxu0 %v992
        %1087 = vmatpush1.bf16.msra.mxu0 %v991
        %1088 = vmatprep.subr.bf16.mxu0 %v996
        %1089 = vmatpush1.bf16.msra.mxu0 %v995
        %1090 = vmatprep.subr.bf16.mxu0 %v1000
        %1091 = vmatpush1.bf16.msra.mxu0 %v999
        %1092 = vmatprep.subr.bf16.mxu0 %v1004
        %1093 = vmatpush1.bf16.msra.mxu0 %v1003
        %1094 = vmatprep.subr.bf16.mxu0 0
        %1095 = vmatpush1.bf16.msra.mxu0 0
        %1096 = vmatprep.subr.bf16.mxu0 0
        %1097 = vmatpush1.bf16.msra.mxu0 0
        %1098 = vmatprep.subr.bf16.mxu0 0
        %1099 = vmatpush1.bf16.msra.mxu0 0
        %1100 = vmatprep.subr.bf16.mxu0 0
        %1101 = vmatpush1.bf16.msra.mxu0 0
        %1102 = vmatprep.subr.bf16.mxu0 0
        %1103 = vmatpush1.bf16.msra.mxu0 0
        %1104 = vmatprep.subr.bf16.mxu0 0
        %1105 = vmatpush1.bf16.msra.mxu0 0
        %1106 = vmatprep.subr.bf16.mxu0 0
        %1107 = vmatpush1.bf16.msra.mxu0 0
        %1108 = vmatprep.subr.bf16.mxu0 0
        %1109 = vmatpush1.bf16.msra.mxu0 0
        %1110 = vmatprep.mubr.bf16.mxu0 0
        %1111 = vmatmul.mubr.bf16.gmra.mrb[0].mxu0 %v822
        %v1112 = vpop.f32.mrb[0].mxu0
        %v1113 = vadd.f32 %v868, %v1112
        %v1114 = vpop.f32.mrb[0].mxu0
        %v1115 = vadd.f32 %v872, %v1114
        %v1116 = vpop.f32.mrb[0].mxu0
        %v1117 = vpop.f32.mrb[0].mxu0
        %1118 = vdwg.mxu0
        %v1119 = vmul.f32 %v1072, 0.5
        %v1120 = vmul.f32 %v1074, 0.5
        %v1121 = vmul.f32 %v1113, 0.5
        %v1122 = vmul.f32 %v1115, 0.5
        %v1123 = vmul.f32 %v1072, 0.044715
        %v1124 = vmul.f32 %v1074, 0.044715
        %v1125 = vmul.f32 %v1113, 0.044715
        %v1126 = vmul.f32 %v1115, 0.044715
        %v1127 = vmul.f32 %v1123, %v1072
        %v1128 = vmul.f32 %v1124, %v1074
        %v1129 = vmul.f32 %v1125, %v1113
        %v1130 = vmul.f32 %v1126, %v1115
        %v1131 = vmul.f32 %v1127, %v1072
        %v1132 = vmul.f32 %v1128, %v1074
        %v1133 = vmul.f32 %v1129, %v1113
        %v1134 = vmul.f32 %v1130, %v1115
        %v1135 = vadd.f32 %v1072, %v1131
        %v1136 = vadd.f32 %v1074, %v1132
        %v1137 = vadd.f32 %v1113, %v1133
        %v1138 = vadd.f32 %v1115, %v1134
        %v1139 = vmul.f32 %v1135, 0.7978846
        %v1140 = vmul.f32 %v1136, 0.7978846
        %v1141 = vmul.f32 %v1137, 0.7978846
        %v1142 = vmul.f32 %v1138, 0.7978846
        %v1143 = vtanh.pop %v1139
        %v1144 = vtanh.pop %v1140
        %v1145 = vtanh.pop %v1141
        %v1146 = vtanh.pop %v1142
        %v1147 = vadd.f32 %v1143, 1.0
        %v1148 = vadd.f32 %v1144, 1.0
        %v1149 = vadd.f32 %v1145, 1.0
        %v1150 = vadd.f32 %v1146, 1.0
        %v1151 = vmul.f32 %v1119, %v1147
        %v1152 = vmul.f32 %v1120, %v1148
        %v1153 = vmul.f32 %v1121, %v1149
        %v1154 = vmul.f32 %v1122, %v1150
        %v1155 = vpack.c.bf16 %v1151, %v1151
        %v1156 = vpack.c.bf16 %v1152, %v1152
        %v1157 = vpack.c.bf16 %v1153, %v1153
        %v1158 = vpack.c.bf16 %v1154, %v1154
        %v1159 = vld [vmem:[#allocation10] sm:$0xf]
        %v1160 = vld [vmem:[#allocation10 + $0x4] sm:$0xf]
        %v1161 = vld [vmem:[#allocation10 + $0x8] sm:$0xf]
        %v1162 = vld [vmem:[#allocation10 + $0xc] sm:$0xf]
        %v1163 = vld [vmem:[#allocation10 + $0x10] sm:$0xf]
        %v1164 = vld [vmem:[#allocation10 + $0x14] sm:$0xf]
        %v1165 = vld [vmem:[#allocation10 + $0x18] sm:$0xf]
        %v1166 = vld [vmem:[#allocation10 + $0x1c] sm:$0xf]
        %v1167 = vld [vmem:[#allocation10 + $0x20] sm:$0xf]
        %v1168 = vld [vmem:[#allocation10 + $0x24] sm:$0xf]
        %v1169 = vld [vmem:[#allocation10 + $0x28] sm:$0xf]
        %v1170 = vld [vmem:[#allocation10 + $0x2c] sm:$0xf]
        %v1171 = vld [vmem:[#allocation10 + $0x30] sm:$0xf]
        %v1172 = vld [vmem:[#allocation10 + $0x34] sm:$0xf]
        %v1173 = vld [vmem:[#allocation10 + $0x38] sm:$0xf]
        %v1174 = vld [vmem:[#allocation10 + $0x3c] sm:$0xf]
        %v1175 = vld [vmem:[#allocation10 + $0x40] sm:$0xf]
        %v1176 = vld [vmem:[#allocation10 + $0x44] sm:$0xf]
        %v1177 = vld [vmem:[#allocation10 + $0x48] sm:$0xf]
        %v1178 = vld [vmem:[#allocation10 + $0x4c] sm:$0xf]
        %v1179 = vld [vmem:[#allocation10 + $0x50] sm:$0xf]
        %v1180 = vld [vmem:[#allocation10 + $0x54] sm:$0xf]
        %v1181 = vld [vmem:[#allocation10 + $0x58] sm:$0xf]
        %v1182 = vld [vmem:[#allocation10 + $0x5c] sm:$0xf]
        %v1183 = vld [vmem:[#allocation10 + $0x60] sm:$0xf]
        %v1184 = vld [vmem:[#allocation10 + $0x64] sm:$0xf]
        %v1185 = vld [vmem:[#allocation10 + $0x68] sm:$0xf]
        %v1186 = vld [vmem:[#allocation10 + $0x6c] sm:$0xf]
        %v1187 = vld [vmem:[#allocation10 + $0x70] sm:$0xf]
        %v1188 = vld [vmem:[#allocation10 + $0x74] sm:$0xf]
        %v1189 = vld [vmem:[#allocation10 + $0x78] sm:$0xf]
        %v1190 = vld [vmem:[#allocation10 + $0x7c] sm:$0xf]
        %v1191 = vld [vmem:[#allocation10 + $0x80] sm:$0xf]
        %v1192 = vld [vmem:[#allocation10 + $0x84] sm:$0xf]
        %v1193 = vld [vmem:[#allocation10 + $0x88] sm:$0xf]
        %v1194 = vld [vmem:[#allocation10 + $0x8c] sm:$0xf]
        %v1195 = vld [vmem:[#allocation10 + $0x90] sm:$0xf]
        %v1196 = vld [vmem:[#allocation10 + $0x94] sm:$0xf]
        %v1197 = vld [vmem:[#allocation10 + $0x98] sm:$0xf]
        %v1198 = vld [vmem:[#allocation10 + $0x9c] sm:$0xf]
        %v1199 = vld [vmem:[#allocation10 + $0xa0] sm:$0xf]
        %v1200 = vld [vmem:[#allocation10 + $0xa4] sm:$0xf]
        %v1201 = vld [vmem:[#allocation10 + $0xa8] sm:$0xf]
        %v1202 = vld [vmem:[#allocation10 + $0xac] sm:$0xf]
        %v1203 = vld [vmem:[#allocation10 + $0xb0] sm:$0xf]
        %v1204 = vld [vmem:[#allocation10 + $0xb4] sm:$0xf]
        %v1205 = vld [vmem:[#allocation10 + $0xb8] sm:$0xf]
        %v1206 = vld [vmem:[#allocation10 + $0xbc] sm:$0xf]
        %v1207 = vld [vmem:[#allocation10 + $0xc0] sm:$0xf]
        %v1208 = vld [vmem:[#allocation10 + $0xc4] sm:$0xf]
        %v1209 = vld [vmem:[#allocation10 + $0xc8] sm:$0xf]
        %v1210 = vld [vmem:[#allocation10 + $0xcc] sm:$0xf]
        %v1211 = vld [vmem:[#allocation10 + $0xd0] sm:$0xf]
        %v1212 = vld [vmem:[#allocation10 + $0xd4] sm:$0xf]
        %v1213 = vld [vmem:[#allocation10 + $0xd8] sm:$0xf]
        %v1214 = vld [vmem:[#allocation10 + $0xdc] sm:$0xf]
        %v1215 = vld [vmem:[#allocation10 + $0xe0] sm:$0xf]
        %v1216 = vld [vmem:[#allocation10 + $0xe4] sm:$0xf]
        %v1217 = vld [vmem:[#allocation10 + $0xe8] sm:$0xf]
        %v1218 = vld [vmem:[#allocation10 + $0xec] sm:$0xf]
        %v1219 = vld [vmem:[#allocation10 + $0xf0] sm:$0xf]
        %v1220 = vld [vmem:[#allocation10 + $0xf4] sm:$0xf]
        %v1221 = vld [vmem:[#allocation10 + $0xf8] sm:$0xf]
        %v1222 = vld [vmem:[#allocation10 + $0xfc] sm:$0xf]
        %v1223 = vld [vmem:[%s11] sm:$0x1]
        %v1225 = vlaneseq
        %v1226 = vshrl.u32 %v1225, 7
        %v1227 = vsub.s32 0, %v1226
        %v1228 = vrot.slane %v1223, %v1227
        %v1294 = vunpack.c.l.b16 %v1159
        %v1295 = vunpack.c.l.b16 %v1160
        %v1296 = vunpack.c.l.b16 %v1161
        %v1297 = vunpack.c.l.b16 %v1162
        %v1298 = vunpack.c.l.b16 %v1163
        %v1299 = vunpack.c.l.b16 %v1164
        %v1300 = vunpack.c.l.b16 %v1165
        %v1301 = vunpack.c.l.b16 %v1166
        %v1302 = vunpack.c.l.b16 %v1167
        %v1303 = vunpack.c.l.b16 %v1168
        %v1304 = vunpack.c.l.b16 %v1169
        %v1305 = vunpack.c.l.b16 %v1170
        %v1306 = vunpack.c.l.b16 %v1171
        %v1307 = vunpack.c.l.b16 %v1172
        %v1308 = vunpack.c.l.b16 %v1173
        %v1309 = vunpack.c.l.b16 %v1174
        %v1310 = vunpack.c.l.b16 %v1175
        %v1311 = vunpack.c.l.b16 %v1176
        %v1312 = vunpack.c.l.b16 %v1177
        %v1313 = vunpack.c.l.b16 %v1178
        %v1314 = vunpack.c.l.b16 %v1179
        %v1315 = vunpack.c.l.b16 %v1180
        %v1316 = vunpack.c.l.b16 %v1181
        %v1317 = vunpack.c.l.b16 %v1182
        %v1318 = vunpack.c.l.b16 %v1183
        %v1319 = vunpack.c.l.b16 %v1184
        %v1320 = vunpack.c.l.b16 %v1185
        %v1321 = vunpack.c.l.b16 %v1186
        %v1322 = vunpack.c.l.b16 %v1187
        %v1323 = vunpack.c.l.b16 %v1188
        %v1324 = vunpack.c.l.b16 %v1189
        %v1325 = vunpack.c.l.b16 %v1190
        %v1326 = vunpack.c.l.b16 %v1191
        %v1327 = vunpack.c.l.b16 %v1192
        %v1328 = vunpack.c.l.b16 %v1193
        %v1329 = vunpack.c.l.b16 %v1194
        %v1330 = vunpack.c.l.b16 %v1195
        %v1331 = vunpack.c.l.b16 %v1196
        %v1332 = vunpack.c.l.b16 %v1197
        %v1333 = vunpack.c.l.b16 %v1198
        %v1334 = vunpack.c.l.b16 %v1199
        %v1335 = vunpack.c.l.b16 %v1200
        %v1336 = vunpack.c.l.b16 %v1201
        %v1337 = vunpack.c.l.b16 %v1202
        %v1338 = vunpack.c.l.b16 %v1203
        %v1339 = vunpack.c.l.b16 %v1204
        %v1340 = vunpack.c.l.b16 %v1205
        %v1341 = vunpack.c.l.b16 %v1206
        %v1342 = vunpack.c.l.b16 %v1207
        %v1343 = vunpack.c.l.b16 %v1208
        %v1344 = vunpack.c.l.b16 %v1209
        %v1345 = vunpack.c.l.b16 %v1210
        %v1346 = vunpack.c.l.b16 %v1211
        %v1347 = vunpack.c.l.b16 %v1212
        %v1348 = vunpack.c.l.b16 %v1213
        %v1349 = vunpack.c.l.b16 %v1214
        %v1350 = vunpack.c.l.b16 %v1215
        %v1351 = vunpack.c.l.b16 %v1216
        %v1352 = vunpack.c.l.b16 %v1217
        %v1353 = vunpack.c.l.b16 %v1218
        %v1354 = vunpack.c.l.b16 %v1219
        %v1355 = vunpack.c.l.b16 %v1220
        %v1356 = vunpack.c.l.b16 %v1221
        %v1357 = vunpack.c.l.b16 %v1222
        %v1358 = vpack.c.b16 %v1295, %v1294
        %v1359 = vpack.c.b16 %v1297, %v1296
        %v1360 = vpack.c.b16 %v1299, %v1298
        %v1361 = vpack.c.b16 %v1301, %v1300
        %v1362 = vpack.c.b16 %v1303, %v1302
        %v1363 = vpack.c.b16 %v1305, %v1304
        %v1364 = vpack.c.b16 %v1307, %v1306
        %v1365 = vpack.c.b16 %v1309, %v1308
        %v1366 = vpack.c.b16 %v1311, %v1310
        %v1367 = vpack.c.b16 %v1313, %v1312
        %v1368 = vpack.c.b16 %v1315, %v1314
        %v1369 = vpack.c.b16 %v1317, %v1316
        %v1370 = vpack.c.b16 %v1319, %v1318
        %v1371 = vpack.c.b16 %v1321, %v1320
        %v1372 = vpack.c.b16 %v1323, %v1322
        %v1373 = vpack.c.b16 %v1325, %v1324
        %v1374 = vpack.c.b16 %v1327, %v1326
        %v1375 = vpack.c.b16 %v1329, %v1328
        %v1376 = vpack.c.b16 %v1331, %v1330
        %v1377 = vpack.c.b16 %v1333, %v1332
        %v1378 = vpack.c.b16 %v1335, %v1334
        %v1379 = vpack.c.b16 %v1337, %v1336
        %v1380 = vpack.c.b16 %v1339, %v1338
        %v1381 = vpack.c.b16 %v1341, %v1340
        %v1382 = vpack.c.b16 %v1343, %v1342
        %v1383 = vpack.c.b16 %v1345, %v1344
        %v1384 = vpack.c.b16 %v1347, %v1346
        %v1385 = vpack.c.b16 %v1349, %v1348
        %v1386 = vpack.c.b16 %v1351, %v1350
        %v1387 = vpack.c.b16 %v1353, %v1352
        %v1388 = vpack.c.b16 %v1355, %v1354
        %v1389 = vpack.c.b16 %v1357, %v1356
        %1422 = vmatprep.subr.bf16.mxu0 0
        %1423 = vmatpush1.bf16.msra.mxu0 %v1358
        %1424 = vmatprep.subr.bf16.mxu0 0
        %1425 = vmatpush1.bf16.msra.mxu0 %v1359
        %1426 = vmatprep.subr.bf16.mxu0 0
        %1427 = vmatpush1.bf16.msra.mxu0 %v1360
        %1428 = vmatprep.subr.bf16.mxu0 0
        %1429 = vmatpush1.bf16.msra.mxu0 %v1361
        %1430 = vmatprep.subr.bf16.mxu0 0
        %1431 = vmatpush1.bf16.msra.mxu0 %v1362
        %1432 = vmatprep.subr.bf16.mxu0 0
        %1433 = vmatpush1.bf16.msra.mxu0 %v1363
        %1434 = vmatprep.subr.bf16.mxu0 0
        %1435 = vmatpush1.bf16.msra.mxu0 %v1364
        %1436 = vmatprep.subr.bf16.mxu0 0
        %1437 = vmatpush1.bf16.msra.mxu0 %v1365
        %1438 = vmatprep.subr.bf16.mxu0 0
        %1439 = vmatpush1.bf16.msra.mxu0 %v1366
        %1440 = vmatprep.subr.bf16.mxu0 0
        %1441 = vmatpush1.bf16.msra.mxu0 %v1367
        %1442 = vmatprep.subr.bf16.mxu0 0
        %1443 = vmatpush1.bf16.msra.mxu0 %v1368
        %1444 = vmatprep.subr.bf16.mxu0 0
        %1445 = vmatpush1.bf16.msra.mxu0 %v1369
        %1446 = vmatprep.subr.bf16.mxu0 0
        %1447 = vmatpush1.bf16.msra.mxu0 %v1370
        %1448 = vmatprep.subr.bf16.mxu0 0
        %1449 = vmatpush1.bf16.msra.mxu0 %v1371
        %1450 = vmatprep.subr.bf16.mxu0 0
        %1451 = vmatpush1.bf16.msra.mxu0 %v1372
        %1452 = vmatprep.subr.bf16.mxu0 0
        %1453 = vmatpush1.bf16.msra.mxu0 %v1373
        %1454 = vmatprep.mubr.bf16.mxu0 %v1156
        %1455 = vmatmul.mubr.bf16.gmra.mrb[0].mxu0 %v1155
        %v1456 = vpop.f32.mrb[0].mxu0
        %v1457 = vadd.f32 %v1228, %v1456
        %v1458 = vpop.f32.mrb[0].mxu0
        %v1459 = vpop.f32.mrb[0].mxu0
        %v1460 = vpop.f32.mrb[0].mxu0
        %1461 = vdwg.mxu0
        %1462 = vmatprep.subr.bf16.mxu0 0
        %1463 = vmatpush1.bf16.msra.mxu0 %v1374
        %1464 = vmatprep.subr.bf16.mxu0 0
        %1465 = vmatpush1.bf16.msra.mxu0 %v1375
        %1466 = vmatprep.subr.bf16.mxu0 0
        %1467 = vmatpush1.bf16.msra.mxu0 %v1376
        %1468 = vmatprep.subr.bf16.mxu0 0
        %1469 = vmatpush1.bf16.msra.mxu0 %v1377
        %1470 = vmatprep.subr.bf16.mxu0 0
        %1471 = vmatpush1.bf16.msra.mxu0 %v1378
        %1472 = vmatprep.subr.bf16.mxu0 0
        %1473 = vmatpush1.bf16.msra.mxu0 %v1379
        %1474 = vmatprep.subr.bf16.mxu0 0
        %1475 = vmatpush1.bf16.msra.mxu0 %v1380
        %1476 = vmatprep.subr.bf16.mxu0 0
        %1477 = vmatpush1.bf16.msra.mxu0 %v1381
        %1478 = vmatprep.subr.bf16.mxu0 0
        %1479 = vmatpush1.bf16.msra.mxu0 %v1382
        %1480 = vmatprep.subr.bf16.mxu0 0
        %1481 = vmatpush1.bf16.msra.mxu0 %v1383
        %1482 = vmatprep.subr.bf16.mxu0 0
        %1483 = vmatpush1.bf16.msra.mxu0 %v1384
        %1484 = vmatprep.subr.bf16.mxu0 0
        %1485 = vmatpush1.bf16.msra.mxu0 %v1385
        %1486 = vmatprep.subr.bf16.mxu0 0
        %1487 = vmatpush1.bf16.msra.mxu0 %v1386
        %1488 = vmatprep.subr.bf16.mxu0 0
        %1489 = vmatpush1.bf16.msra.mxu0 %v1387
        %1490 = vmatprep.subr.bf16.mxu0 0
        %1491 = vmatpush1.bf16.msra.mxu0 %v1388
        %1492 = vmatprep.subr.bf16.mxu0 0
        %1493 = vmatpush1.bf16.msra.mxu0 %v1389
        %1494 = vmatprep.mubr.bf16.mxu0 %v1158
        %1495 = vmatmul.mubr.bf16.gmra.mrb[0].mxu0 %v1157
        %v1496 = vpop.f32.mrb[0].mxu0
        %v1497 = vadd.f32 %v1457, %v1496
        %v1498 = vpop.f32.mrb[0].mxu0
        %v1499 = vpop.f32.mrb[0].mxu0
        %v1500 = vpop.f32.mrb[0].mxu0
        %1501 = vdwg.mxu0
        %v1502 = vadd.f32 %v1497, %v821
        %v1503 = vld [vmem:[%s12] sm:$0x1]
        %v1504 = vld [vmem:[%s13] sm:$0x1]
        %v1505 = vpack.c.bf16 %v1502, %v1502
        %1506 = vmatprep.subr.bf16.mxu0 0
        %1507 = vmatpush1.bf16.msra.mxu0 %v707
        %1508 = vmatprep.subr.bf16.mxu0 0
        %1509 = vmatpush1.bf16.msra.mxu0 %v708
        %1510 = vmatprep.subr.bf16.mxu0 0
        %1511 = vmatpush1.bf16.msra.mxu0 %v709
        %1512 = vmatprep.subr.bf16.mxu0 0
        %1513 = vmatpush1.bf16.msra.mxu0 %v710
        %1514 = vmatprep.subr.bf16.mxu0 0
        %1515 = vmatpush1.bf16.msra.mxu0 %v711
        %1516 = vmatprep.subr.bf16.mxu0 0
        %1517 = vmatpush1.bf16.msra.mxu0 %v712
        %1518 = vmatprep.subr.bf16.mxu0 0
        %1519 = vmatpush1.bf16.msra.mxu0 %v713
        %1520 = vmatprep.subr.bf16.mxu0 0
        %1521 = vmatpush1.bf16.msra.mxu0 %v714
        %1522 = vmatprep.subr.bf16.mxu0 0
        %1523 = vmatpush1.bf16.msra.mxu0 0
        %1524 = vmatprep.subr.bf16.mxu0 0
        %1525 = vmatpush1.bf16.msra.mxu0 0
        %1526 = vmatprep.subr.bf16.mxu0 0
        %1527 = vmatpush1.bf16.msra.mxu0 0
        %1528 = vmatprep.subr.bf16.mxu0 0
        %1529 = vmatpush1.bf16.msra.mxu0 0
        %1530 = vmatprep.subr.bf16.mxu0 0
        %1531 = vmatpush1.bf16.msra.mxu0 0
        %1532 = vmatprep.subr.bf16.mxu0 0
        %1533 = vmatpush1.bf16.msra.mxu0 0
        %1534 = vmatprep.subr.bf16.mxu0 0
        %1535 = vmatpush1.bf16.msra.mxu0 0
        %1536 = vmatprep.subr.bf16.mxu0 0
        %1537 = vmatpush1.bf16.msra.mxu0 0
        %1538 = vmatprep.mubr.bf16.mxu0 0
        %1539 = vmatmul.mubr.bf16.gmra.mrb[0].mxu0 %v1505
        %v1540 = vpop.f32.mrb[0].mxu0
        %v1541 = vadd.f32 0.0, %v1540
        %v1542 = vpop.f32.mrb[0].mxu0
        %v1543 = vpop.f32.mrb[0].mxu0
        %v1544 = vpop.f32.mrb[0].mxu0
        %1545 = vdwg.mxu0
        %v1546 = vsub.f32 %v1502, %v1541
        %v1547 = vmul.f32 %v1546, %v1546
        %v1548 = vpack.c.bf16 %v1547, %v1547
        %1549 = vmatprep.subr.bf16.mxu0 0
        %1550 = vmatpush1.bf16.msra.mxu0 %v707
        %1551 = vmatprep.subr.bf16.mxu0 0
        %1552 = vmatpush1.bf16.msra.mxu0 %v708
        %1553 = vmatprep.subr.bf16.mxu0 0
        %1554 = vmatpush1.bf16.msra.mxu0 %v709
        %1555 = vmatprep.subr.bf16.mxu0 0
        %1556 = vmatpush1.bf16.msra.mxu0 %v710
        %1557 = vmatprep.subr.bf16.mxu0 0
        %1558 = vmatpush1.bf16.msra.mxu0 %v711
        %1559 = vmatprep.subr.bf16.mxu0 0
        %1560 = vmatpush1.bf16.msra.mxu0 %v712
        %1561 = vmatprep.subr.bf16.mxu0 0
        %1562 = vmatpush1.bf16.msra.mxu0 %v713
        %1563 = vmatprep.subr.bf16.mxu0 0
        %1564 = vmatpush1.bf16.msra.mxu0 %v714
        %1565 = vmatprep.subr.bf16.mxu0 0
        %1566 = vmatpush1.bf16.msra.mxu0 0
        %1567 = vmatprep.subr.bf16.mxu0 0
        %1568 = vmatpush1.bf16.msra.mxu0 0
        %1569 = vmatprep.subr.bf16.mxu0 0
        %1570 = vmatpush1.bf16.msra.mxu0 0
        %1571 = vmatprep.subr.bf16.mxu0 0
        %1572 = vmatpush1.bf16.msra.mxu0 0
        %1573 = vmatprep.subr.bf16.mxu0 0
        %1574 = vmatpush1.bf16.msra.mxu0 0
        %1575 = vmatprep.subr.bf16.mxu0 0
        %1576 = vmatpush1.bf16.msra.mxu0 0
        %1577 = vmatprep.subr.bf16.mxu0 0
        %1578 = vmatpush1.bf16.msra.mxu0 0
        %1579 = vmatprep.subr.bf16.mxu0 0
        %1580 = vmatpush1.bf16.msra.mxu0 0
        %1581 = vmatprep.mubr.bf16.mxu0 0
        %1582 = vmatmul.mubr.bf16.gmra.mrb[0].mxu0 %v1548
        %v1583 = vpop.f32.mrb[0].mxu0
        %v1584 = vadd.f32 1e-12, %v1583
        %v1585 = vpop.f32.mrb[0].mxu0
        %v1586 = vpop.f32.mrb[0].mxu0
        %v1587 = vpop.f32.mrb[0].mxu0
        %1588 = vdwg.mxu0
        %v1589 = vrsqrt.pop %v1584
        %v1590 = vmul.f32 %v1546, %v1589
        %v1592 = vlaneseq
        %v1593 = vshrl.u32 %v1592, 7
        %v1594 = vsub.s32 0, %v1593
        %v1595 = vrot.slane %v1503, %v1594
        %v1597 = vmul.f32 %v1590, %v1595
        %v1599 = vlaneseq
        %v1600 = vshrl.u32 %v1599, 7
        %v1601 = vsub.s32 0, %v1600
        %v1602 = vrot.slane %v1504, %v1601
        %v1604 = vadd.f32 %v1597, %v1602
        %1605 = vst [vmem:[%s540] sm:$0xff] %v1604
        %s1606 = sand.u32 %s340, 1
        %s1607 = scalar_lea.sflag [#allocation4], %s1606
        %s1608 = sand.u32 %s340, 1
        %s1609 = smul.addr %s1608, 8
        %s1610 = scalar_lea.vmem [#allocation11], %s1609
        // Predicated region
        $region97: #{tpu_custom_call.1} parent=75 // pred_check
          %p1611 = pneg %p350
        $region98: #{tpu_custom_call.1} parent=75 // pred_check_branch
          %1613 = sbr.rel (%p1611) target = $region100
        $region99: #{tpu_custom_call.1} parent=75 // pred_region
          %s1615 = ssub.s32 128, 128
          %1616 = vsyncadd %s1607, %s1615
          %s1617 = smul.addr %s33, 128
          %s1618 = scalar_lea.hbm %s14, %s1617
          %s1620 = sshll.u32 %s1610, 4
          %s1621 = int_to_ptr.vmem [resolvable:$true] %s1620
          %1623 = dma.vmem_to_hbm [thread:$0]  %s1621, 128, %s1618, %s1607
        $region100: #{tpu_custom_call.1} parent=75 // pred_fallthru
          _
      $region76: #{tpu_custom_call.1} parent=5 // pred_fallthru
        _
      %p1624 = scmp.le.s32.totalorder 2, %s28
      // Predicated region
      $region101: #{tpu_custom_call.1} parent=5 // pred_check
        %p1625 = pneg %p1624
      $region102: #{tpu_custom_call.1} parent=5 // pred_check_branch
        %1627 = sbr.rel (%p1625) target = $region104
      $region103: #{tpu_custom_call.1} parent=5 // pred_region
        %s1628 = ssub.s32 %s28, 2
        // Predicated region
        $region105: #{tpu_custom_call.1} parent=103 // pred_check
          %p1629 = pneg %p356
        $region106: #{tpu_custom_call.1} parent=103 // pred_check_branch
          %1631 = sbr.rel (%p1629) target = $region108
        $region107: #{tpu_custom_call.1} parent=103 // pred_region
          %s1632 = sand.u32 %s341, 1
          %s1633 = scalar_lea.sflag [#allocation4], %s1632
          %s1634 = sand.u32 %s341, 1
          %s1635 = smul.addr %s1634, 8
          %s1636 = scalar_lea.vmem [#allocation11], %s1635
          %1637 = dma.done %s1633, 128
        $region108: #{tpu_custom_call.1} parent=103 // pred_fallthru
          _
      $region104: #{tpu_custom_call.1} parent=5 // pred_fallthru
        _
    $region6: #{tpu_custom_call.1} parent=1 // loop_footer
      %s32 = sadd.s32 1, %s28
    $region7: #{tpu_custom_call.1} parent=1 // loop_footer_branch
      %27 = sbr.rel target = $region3
    $region8: #{tpu_custom_call.1} parent=1 // loop_exit
      _
    %1638 = vsyncpa [#allocation3], 1
    %s1639 = scalar_lea.sflag [#allocation3], 1
    %1640 = vsyncpa %s1639, 1
    %1641 = vsyncpa [#allocation6], 1
    %1642 = vsyncpa [#allocation9], 1
    %1643 = vsyncpa [#allocation4], 1
    %s1644 = scalar_lea.sflag [#allocation4], 1
    %1645 = vsyncpa %s1644, 1

</llo_original>
